<compile_context>
chip_gen: v5e
topology: v5e:2x2
jax: 0.10.0
libtpu: 0.0.40
codegen_flags: <defaults>
</compile_context>

<pallas_src>
import math
import functools

import jax
import jax.numpy as jnp
import numpy as np
from jax.experimental import pallas as pl
from jax.experimental.pallas import tpu as pltpu

# ---- model hyperparameters (match the PyTorch module) ----
HIDDEN_DIM = 32
NHEAD = 4
NUM_LAYERS = 3
DIM_FF = 2048          # nn.TransformerEncoderLayer default dim_feedforward
LN_EPS = 1e-5
HEAD_DIM = HIDDEN_DIM // NHEAD


def _layer_norm(x, g, b, eps=LN_EPS):
    mu = jnp.mean(x, axis=-1, keepdims=True)
    xc = x - mu
    var = jnp.mean(xc * xc, axis=-1, keepdims=True)
    return xc * jax.lax.rsqrt(var + eps) * g + b


# --------------------------------------------------------------------------
# Single fused kernel: embedding + PE + NUM_LAYERS post-norm encoder layers.
# One grid step processes `bblk` batch elements (bblk*seq rows per matmul).
# --------------------------------------------------------------------------
def fused_encoder_kernel(src_ref, emb_w_ref, emb_b_ref, pe_ref,
                         wqkv_ref, bqkv_ref, wo_ref, bo_ref,
                         ln1w_ref, ln1b_ref,
                         w1_ref, b1_ref, w2_ref, b2_ref,
                         ln2w_ref, ln2b_ref,
                         o_ref, *, nhead, num_layers, bblk, seq):
    F = src_ref.shape[-1]
    H = emb_w_ref.shape[1]
    hd = H // nhead
    scale = 1.0 / math.sqrt(hd)
    M = bblk * seq                                    # rows per grid step

    # ---- embedding Linear(F -> H) + bias + positional encoding (broadcast in-kernel) --
    x = src_ref[...].reshape(M, F)                    # leading-dim merge (cheap)
    x = jnp.dot(x, emb_w_ref[...], preferred_element_type=jnp.float32) + emb_b_ref[...]
    x = (x.reshape(bblk, seq, H) + pe_ref[...][None]).reshape(M, H)

    # ---- encoder layers, fully unrolled, all weights resident in VMEM ----
    for l in range(num_layers):
        # --- MHA: one fused (H, 3H) QKV matmul; heads folded into the batch axis ---
        qkv = jnp.dot(x, wqkv_ref[l], preferred_element_type=jnp.float32) + bqkv_ref[l]
        qh = jnp.concatenate(
            [qkv[:, h * hd:(h + 1) * hd].reshape(bblk, seq, hd) for h in range(nhead)],
            axis=0)                                   # (nhead*bblk, S, hd)
        kh = jnp.concatenate(
            [qkv[:, H + h * hd:H + (h + 1) * hd].reshape(bblk, seq, hd)
             for h in range(nhead)], axis=0)
        vh = jnp.concatenate(
            [qkv[:, 2 * H + h * hd:2 * H + (h + 1) * hd].reshape(bblk, seq, hd)
             for h in range(nhead)], axis=0)

        # single batched score / softmax / context chain over all heads
        s = jnp.einsum("bqd,bkd->bqk", qh, kh,
                       preferred_element_type=jnp.float32) * scale
        s = s - jnp.max(s, axis=-1, keepdims=True)
        p = jnp.exp(s)
        p = p / jnp.sum(p, axis=-1, keepdims=True)
        ctx = jnp.einsum("bqk,bkd->bqd", p, vh,
                         preferred_element_type=jnp.float32)   # (nhead*bblk, S, hd)

        # output projection: accumulate per head with aligned sublane slices of the
        # lane-dense (H, H) Wo (avoids an unaligned lane-dim concat of the contexts).
        wo_l = wo_ref[l]                              # (H, H)
        attn = jnp.zeros((M, H), jnp.float32)
        for h in range(nhead):
            ctx_h = ctx[h * bblk:(h + 1) * bblk].reshape(M, hd)
            attn = attn + jnp.dot(ctx_h, wo_l[h * hd:(h + 1) * hd, :],
                                  preferred_element_type=jnp.float32)
        attn = attn + bo_ref[l]

        # add & norm 1 (post-norm)
        x = _layer_norm(x + attn, ln1w_ref[l], ln1b_ref[l])

        # --- feed-forward: relu(x @ W1 + b1) @ W2^T + b2 (W2 stored lane-dense (H, DFF),
        #     contracted as a transposed RHS so no (2048, 32) lane-padded operand) ---
        hdn = jnp.dot(x, w1_ref[l], preferred_element_type=jnp.float32) + b1_ref[l]
        hdn = jnp.maximum(hdn, 0.0)
        ff = jax.lax.dot_general(hdn, w2_ref[l], (((1,), (1,)), ((), ())),
                                 preferred_element_type=jnp.float32) + b2_ref[l]

        # add & norm 2
        x = _layer_norm(x + ff, ln2w_ref[l], ln2b_ref[l])

    o_ref[...] = x.reshape(bblk, seq, H)


# --------------------------------------------------------------------------
# Wrapper
# --------------------------------------------------------------------------
def _pick_block_b(B, S, *, target_rows=256, max_rows=512):
    """Pick a batch block: >=2 grid steps when possible (v7x megacore), >=target_rows
    rows per step if achievable, rows/step capped so FFN temporaries fit VMEM."""
    divisors = [d for d in range(1, B + 1) if B % d == 0]
    cands = [d for d in divisors if B // d >= 2] or [1]      # keep >=2 parallel steps
    capped = [d for d in cands if d * S <= max_rows]
    cands = capped or [min(cands)]
    for d in cands:                                          # ascending
        if d * S >= target_rows:
            return d
    return cands[-1]


def _const_spec(shape):
    return pl.BlockSpec(shape, lambda i: tuple(0 for _ in shape))


def transformer_encoder_forward(src, params, *, block_b=None):
    """Full forward pass of the PyTorch TransformerEncoder module (one pallas_call)."""
    B, S, F = src.shape
    H = params["emb_w"].shape[1]
    L = NUM_LAYERS
    DFF = params["w1"].shape[-1]

    if block_b is None:
        block_b = _pick_block_b(B, S)
    assert B % block_b == 0

    kernel = functools.partial(fused_encoder_kernel, nhead=NHEAD,
                               num_layers=L, bblk=block_b, seq=S)

    return pl.pallas_call(
        kernel,
        out_shape=jax.ShapeDtypeStruct((B, S, H), jnp.float32),
        grid=(B // block_b,),
        in_specs=[
            pl.BlockSpec((block_b, S, F), lambda i: (i, 0, 0)),   # src
            _const_spec((F, H)),                                  # emb_w
            _const_spec((1, H)),                                  # emb_b
            _const_spec((S, H)),                                  # pe
            _const_spec((L, H, 3 * H)),                           # wqkv (lane-dense)
            _const_spec((L, 1, 3 * H)),                           # bqkv
            _const_spec((L, H, H)),                               # wo   (lane-dense)
            _const_spec((L, 1, H)),                               # bo
            _const_spec((L, 1, H)),                               # ln1_w
            _const_spec((L, 1, H)),                               # ln1_b
            _const_spec((L, H, DFF)),                             # w1
            _const_spec((L, 1, DFF)),                             # b1
            _const_spec((L, H, DFF)),                             # w2 (lane-dense)
            _const_spec((L, 1, H)),                               # b2
            _const_spec((L, 1, H)),                               # ln2_w
            _const_spec((L, 1, H)),                               # ln2_b
        ],
        out_specs=pl.BlockSpec((block_b, S, H), lambda i: (i, 0, 0)),
        compiler_params=pltpu.CompilerParams(
            dimension_semantics=("parallel",),
            vmem_limit_bytes=48 * 1024 * 1024),
    )(src, params["emb_w"], params["emb_b"], params["pe"],
      params["wqkv"], params["bqkv"], params["wo"], params["bo"],
      params["ln1_w"], params["ln1_b"],
      params["w1"], params["b1"], params["w2"], params["b2"],
      params["ln2_w"], params["ln2_b"])


# --------------------------------------------------------------------------
# Parameter construction (deterministic, in-script)
# --------------------------------------------------------------------------
def make_positional_encoding(seq_len, d_model):
    position = np.arange(0, seq_len, dtype=np.float32)[:, None]
    div_term = np.exp(np.arange(0, d_model, 2, dtype=np.float32)
                      * (-np.log(10000.0) / d_model))
    pe = np.zeros((seq_len, d_model), dtype=np.float32)
    pe[:, 0::2] = np.sin(position * div_term)
    pe[:, 1::2] = np.cos(position * div_term)
    return jnp.asarray(pe)


def make_params(key, n_features, seq_len):
    H, DFF, L = HIDDEN_DIM, DIM_FF, NUM_LAYERS
    ks = jax.random.split(key, 10)

    def rnd(k, shape, scale):
        return (jax.random.normal(k, shape, jnp.float32) * scale).astype(jnp.float32)

    return {
        # embedding Linear(n_features -> H), stored pre-transposed as (F, H)
        "emb_w": rnd(ks[0], (n_features, H), 1.0 / math.sqrt(n_features)),
        "emb_b": rnd(ks[1], (1, H), 0.02),
        "pe": make_positional_encoding(seq_len, H),
        # attention: fused, lane-dense QKV + output projection weights
        "wqkv": rnd(ks[2], (L, H, 3 * H), 1.0 / math.sqrt(H)),
        "bqkv": rnd(ks[3], (L, 1, 3 * H), 0.02),
        "wo": rnd(ks[4], (L, H, H), 1.0 / math.sqrt(H)),
        "bo": rnd(ks[5], (L, 1, H), 0.02),
        "ln1_w": jnp.ones((L, 1, H), jnp.float32),
        "ln1_b": jnp.zeros((L, 1, H), jnp.float32),
        # FFN: w1 (H, DFF); w2 stored lane-dense as (H, DFF), used transposed
        "w1": rnd(ks[6], (L, H, DFF), 1.0 / math.sqrt(H)),
        "b1": rnd(ks[7], (L, 1, DFF), 0.02),
        "w2": rnd(ks[8], (L, H, DFF), 1.0 / math.sqrt(DFF)),
        "b2": rnd(ks[9], (L, 1, H), 0.02),
        "ln2_w": jnp.ones((L, 1, H), jnp.float32),
        "ln2_b": jnp.zeros((L, 1, H), jnp.float32),
    }


# --------------------------------------------------------------------------
# Pure-JAX reference (standard full-matrix MHA reconstructed from the fused
# lane-dense weights) for correctness check.  Runs at the same default matmul
# precision as the kernel (single-pass bf16 MXU), hence the 2e-2 tolerance.
# --------------------------------------------------------------------------
def reference_forward(src, params):
    H, hd, NH = HIDDEN_DIM, HEAD_DIM, NHEAD
    x = src @ params["emb_w"] + params["emb_b"] + params["pe"][None]
    B, S, _ = x.shape
    for l in range(NUM_LAYERS):
        Wq = params["wqkv"][l][:, :H]
        Wk = params["wqkv"][l][:, H:2 * H]
        Wv = params["wqkv"][l][:, 2 * H:]
        bq = params["bqkv"][l][0, :H]
        bk = params["bqkv"][l][0, H:2 * H]
        bv = params["bqkv"][l][0, 2 * H:]
        Wo = params["wo"][l]
        bo = params["bo"][l][0]

        q = x @ Wq + bq
        k = x @ Wk + bk
        v = x @ Wv + bv
        qh = q.reshape(B, S, NH, hd).transpose(0, 2, 1, 3)
        kh = k.reshape(B, S, NH, hd).transpose(0, 2, 1, 3)
        vh = v.reshape(B, S, NH, hd).transpose(0, 2, 1, 3)
        s = jnp.einsum("bhqd,bhkd->bhqk", qh, kh) / math.sqrt(hd)
        p = jax.nn.softmax(s, axis=-1)
        ctx = jnp.einsum("bhqk,bhkd->bhqd", p, vh).transpose(0, 2, 1, 3).reshape(B, S, H)
        attn = ctx @ Wo + bo
        x = _layer_norm(x + attn, params["ln1_w"][l], params["ln1_b"][l])

        ff = jnp.maximum(x @ params["w1"][l] + params["b1"][l], 0.0)
        ff = ff @ params["w2"][l].T + params["b2"][l]
        x = _layer_norm(x + ff, params["ln2_w"][l], params["ln2_b"][l])
    return x


# --------------------------------------------------------------------------
if __name__ == "__main__":
    B, S, F = 2, 8, 16    # batch, seq, n_features

    key = jax.random.PRNGKey(0)
    k_params, k_src = jax.random.split(key)
    params = make_params(k_params, n_features=F, seq_len=S)
    src = jax.random.normal(k_src, (B, S, F), jnp.float32)

    out = jax.block_until_ready(transformer_encoder_forward(src, params))
    ref = jax.block_until_ready(reference_forward(src, params))
    # both kernel and reference run at default (single-pass bf16) matmul precision
    np.testing.assert_allclose(np.asarray(out), np.asarray(ref), rtol=2e-2, atol=2e-2)

    assert out.shape == (B, S, HIDDEN_DIM)
    print("KERNEL_OK")
</pallas_src>

<mosaic_0001>
module attributes {stable_mosaic.version = 11 : i64} {
  func.func @fused_encoder_kernel(%arg0: i32, %arg1: memref<1x8x16xf32, #tpu.memory_space<vmem>>, %arg2: memref<16x32xf32, #tpu.memory_space<vmem>>, %arg3: memref<1x32xf32, #tpu.memory_space<vmem>>, %arg4: memref<8x32xf32, #tpu.memory_space<vmem>>, %arg5: memref<3x32x96xf32, #tpu.memory_space<vmem>>, %arg6: memref<3x1x96xf32, #tpu.memory_space<vmem>>, %arg7: memref<3x32x32xf32, #tpu.memory_space<vmem>>, %arg8: memref<3x1x32xf32, #tpu.memory_space<vmem>>, %arg9: memref<3x1x32xf32, #tpu.memory_space<vmem>>, %arg10: memref<3x1x32xf32, #tpu.memory_space<vmem>>, %arg11: memref<3x32x2048xf32, #tpu.memory_space<vmem>>, %arg12: memref<3x1x2048xf32, #tpu.memory_space<vmem>>, %arg13: memref<3x32x2048xf32, #tpu.memory_space<vmem>>, %arg14: memref<3x1x32xf32, #tpu.memory_space<vmem>>, %arg15: memref<3x1x32xf32, #tpu.memory_space<vmem>>, %arg16: memref<3x1x32xf32, #tpu.memory_space<vmem>>, %arg17: memref<1x8x32xf32, #tpu.memory_space<vmem>>) attributes {dimension_semantics = [#tpu.dimension_semantics<parallel>], iteration_bounds = array<i64: 2>, scalar_prefetch = 0 : i64, scratch_operands = 0 : i64, tpu.core_type = #tpu.core_type<tc>, window_params = [{transform_indices = @transform_0, window_bounds = array<i64: 1, 8, 16>}, {pipeline_mode = #tpu.pipeline_mode<synchronous>, transform_indices = @transform_1, window_bounds = array<i64: 16, 32>}, {pipeline_mode = #tpu.pipeline_mode<synchronous>, transform_indices = @transform_2, window_bounds = array<i64: 1, 32>}, {pipeline_mode = #tpu.pipeline_mode<synchronous>, transform_indices = @transform_3, window_bounds = array<i64: 8, 32>}, {pipeline_mode = #tpu.pipeline_mode<synchronous>, transform_indices = @transform_4, window_bounds = array<i64: 3, 32, 96>}, {pipeline_mode = #tpu.pipeline_mode<synchronous>, transform_indices = @transform_5, window_bounds = array<i64: 3, 1, 96>}, {pipeline_mode = #tpu.pipeline_mode<synchronous>, transform_indices = @transform_6, window_bounds = array<i64: 3, 32, 32>}, {pipeline_mode = #tpu.pipeline_mode<synchronous>, transform_indices = @transform_7, window_bounds = array<i64: 3, 1, 32>}, {pipeline_mode = #tpu.pipeline_mode<synchronous>, transform_indices = @transform_8, window_bounds = array<i64: 3, 1, 32>}, {pipeline_mode = #tpu.pipeline_mode<synchronous>, transform_indices = @transform_9, window_bounds = array<i64: 3, 1, 32>}, {pipeline_mode = #tpu.pipeline_mode<synchronous>, transform_indices = @transform_10, window_bounds = array<i64: 3, 32, 2048>}, {pipeline_mode = #tpu.pipeline_mode<synchronous>, transform_indices = @transform_11, window_bounds = array<i64: 3, 1, 2048>}, {pipeline_mode = #tpu.pipeline_mode<synchronous>, transform_indices = @transform_12, window_bounds = array<i64: 3, 32, 2048>}, {pipeline_mode = #tpu.pipeline_mode<synchronous>, transform_indices = @transform_13, window_bounds = array<i64: 3, 1, 32>}, {pipeline_mode = #tpu.pipeline_mode<synchronous>, transform_indices = @transform_14, window_bounds = array<i64: 3, 1, 32>}, {pipeline_mode = #tpu.pipeline_mode<synchronous>, transform_indices = @transform_15, window_bounds = array<i64: 3, 1, 32>}, {transform_indices = @transform_16, window_bounds = array<i64: 1, 8, 32>}]} {
    %c0 = arith.constant 0 : index
    %c0_0 = arith.constant 0 : index
    %c0_1 = arith.constant 0 : index
    %0 = vector.load %arg1[%c0, %c0_0, %c0_1] : memref<1x8x16xf32, #tpu.memory_space<vmem>>, vector<1x8x16xf32>
    %1 = vector.shape_cast %0 : vector<1x8x16xf32> to vector<8x16xf32>
    %c0_2 = arith.constant 0 : index
    %c0_3 = arith.constant 0 : index
    %2 = vector.load %arg2[%c0_2, %c0_3] : memref<16x32xf32, #tpu.memory_space<vmem>>, vector<16x32xf32>
    %cst = arith.constant dense<0.000000e+00> : vector<8x32xf32>
    %3 = tpu.matmul %1, %2, %cst {dimension_numbers = #tpu.dot_dimension_numbers<[1], [0], [0], [1], [0, 0, 1, 1], [], []>} : vector<8x16xf32>, vector<16x32xf32>, vector<8x32xf32> -> vector<8x32xf32>
    %c0_4 = arith.constant 0 : index
    %c0_5 = arith.constant 0 : index
    %4 = vector.load %arg3[%c0_4, %c0_5] : memref<1x32xf32, #tpu.memory_space<vmem>>, vector<1x32xf32>
    %5 = vector.broadcast %4 : vector<1x32xf32> to vector<8x32xf32>
    %6 = arith.addf %3, %5 : vector<8x32xf32>
    %7 = vector.shape_cast %6 : vector<8x32xf32> to vector<1x8x32xf32>
    %c0_6 = arith.constant 0 : index
    %c0_7 = arith.constant 0 : index
    %8 = vector.load %arg4[%c0_6, %c0_7] : memref<8x32xf32, #tpu.memory_space<vmem>>, vector<8x32xf32>
    %9 = vector.shape_cast %8 : vector<8x32xf32> to vector<1x8x32xf32>
    %10 = arith.addf %7, %9 : vector<1x8x32xf32>
    %11 = vector.shape_cast %10 : vector<1x8x32xf32> to vector<8x32xf32>
    %c0_8 = arith.constant 0 : index
    %c0_9 = arith.constant 0 : index
    %c0_10 = arith.constant 0 : index
    %12 = vector.load %arg5[%c0_8, %c0_9, %c0_10] : memref<3x32x96xf32, #tpu.memory_space<vmem>>, vector<1x32x96xf32>
    %13 = vector.shape_cast %12 : vector<1x32x96xf32> to vector<32x96xf32>
    %cst_11 = arith.constant dense<0.000000e+00> : vector<8x96xf32>
    %14 = tpu.matmul %11, %13, %cst_11 {dimension_numbers = #tpu.dot_dimension_numbers<[1], [0], [0], [1], [0, 0, 1, 1], [], []>} : vector<8x32xf32>, vector<32x96xf32>, vector<8x96xf32> -> vector<8x96xf32>
    %c0_12 = arith.constant 0 : index
    %c0_13 = arith.constant 0 : index
    %c0_14 = arith.constant 0 : index
    %15 = vector.load %arg6[%c0_12, %c0_13, %c0_14] : memref<3x1x96xf32, #tpu.memory_space<vmem>>, vector<1x1x96xf32>
    %16 = vector.shape_cast %15 : vector<1x1x96xf32> to vector<1x96xf32>
    %17 = vector.broadcast %16 : vector<1x96xf32> to vector<8x96xf32>
    %18 = arith.addf %14, %17 : vector<8x96xf32>
    %19 = vector.extract_strided_slice %18 {offsets = [0, 0], sizes = [8, 8], strides = [1, 1]} : vector<8x96xf32> to vector<8x8xf32>
    %20 = vector.shape_cast %19 : vector<8x8xf32> to vector<1x8x8xf32>
    %21 = vector.extract_strided_slice %18 {offsets = [0, 8], sizes = [8, 8], strides = [1, 1]} : vector<8x96xf32> to vector<8x8xf32>
    %22 = vector.shape_cast %21 : vector<8x8xf32> to vector<1x8x8xf32>
    %23 = vector.extract_strided_slice %18 {offsets = [0, 16], sizes = [8, 8], strides = [1, 1]} : vector<8x96xf32> to vector<8x8xf32>
    %24 = vector.shape_cast %23 : vector<8x8xf32> to vector<1x8x8xf32>
    %25 = vector.extract_strided_slice %18 {offsets = [0, 24], sizes = [8, 8], strides = [1, 1]} : vector<8x96xf32> to vector<8x8xf32>
    %26 = vector.shape_cast %25 : vector<8x8xf32> to vector<1x8x8xf32>
    %27 = tpu.concatenate %20, %22, %24, %26 in 0 : vector<1x8x8xf32>, vector<1x8x8xf32>, vector<1x8x8xf32>, vector<1x8x8xf32> -> vector<4x8x8xf32>
    %28 = vector.extract_strided_slice %18 {offsets = [0, 32], sizes = [8, 8], strides = [1, 1]} : vector<8x96xf32> to vector<8x8xf32>
    %29 = vector.shape_cast %28 : vector<8x8xf32> to vector<1x8x8xf32>
    %30 = vector.extract_strided_slice %18 {offsets = [0, 40], sizes = [8, 8], strides = [1, 1]} : vector<8x96xf32> to vector<8x8xf32>
    %31 = vector.shape_cast %30 : vector<8x8xf32> to vector<1x8x8xf32>
    %32 = vector.extract_strided_slice %18 {offsets = [0, 48], sizes = [8, 8], strides = [1, 1]} : vector<8x96xf32> to vector<8x8xf32>
    %33 = vector.shape_cast %32 : vector<8x8xf32> to vector<1x8x8xf32>
    %34 = vector.extract_strided_slice %18 {offsets = [0, 56], sizes = [8, 8], strides = [1, 1]} : vector<8x96xf32> to vector<8x8xf32>
    %35 = vector.shape_cast %34 : vector<8x8xf32> to vector<1x8x8xf32>
    %36 = tpu.concatenate %29, %31, %33, %35 in 0 : vector<1x8x8xf32>, vector<1x8x8xf32>, vector<1x8x8xf32>, vector<1x8x8xf32> -> vector<4x8x8xf32>
    %37 = vector.extract_strided_slice %18 {offsets = [0, 64], sizes = [8, 8], strides = [1, 1]} : vector<8x96xf32> to vector<8x8xf32>
    %38 = vector.shape_cast %37 : vector<8x8xf32> to vector<1x8x8xf32>
    %39 = vector.extract_strided_slice %18 {offsets = [0, 72], sizes = [8, 8], strides = [1, 1]} : vector<8x96xf32> to vector<8x8xf32>
    %40 = vector.shape_cast %39 : vector<8x8xf32> to vector<1x8x8xf32>
    %41 = vector.extract_strided_slice %18 {offsets = [0, 80], sizes = [8, 8], strides = [1, 1]} : vector<8x96xf32> to vector<8x8xf32>
    %42 = vector.shape_cast %41 : vector<8x8xf32> to vector<1x8x8xf32>
    %43 = vector.extract_strided_slice %18 {offsets = [0, 88], sizes = [8, 8], strides = [1, 1]} : vector<8x96xf32> to vector<8x8xf32>
    %44 = vector.shape_cast %43 : vector<8x8xf32> to vector<1x8x8xf32>
    %45 = tpu.concatenate %38, %40, %42, %44 in 0 : vector<1x8x8xf32>, vector<1x8x8xf32>, vector<1x8x8xf32>, vector<1x8x8xf32> -> vector<4x8x8xf32>
    "tpu.trace_start"() <{level = 10 : i32, message = "bqd,bkd->bqk"}> : () -> ()
    %cst_15 = arith.constant dense<0.000000e+00> : vector<4x8x8xf32>
    %46 = tpu.matmul %27, %36, %cst_15 {dimension_numbers = #tpu.dot_dimension_numbers<[2], [2], [1], [1], [0, 0, 0, 1, 1, 1], [0], [0]>} : vector<4x8x8xf32>, vector<4x8x8xf32>, vector<4x8x8xf32> -> vector<4x8x8xf32>
    "tpu.trace_stop"() : () -> ()
    %cst_16 = arith.constant 0.353553385 : f32
    %47 = vector.broadcast %cst_16 : f32 to vector<4x8x8xf32>
    %48 = arith.mulf %46, %47 : vector<4x8x8xf32>
    %cst_17 = arith.constant dense<0xFF800000> : vector<4x8xf32>
    %49 = vector.multi_reduction <maximumf>, %48, %cst_17 [2] : vector<4x8x8xf32> to vector<4x8xf32>
    %50 = vector.shape_cast %49 : vector<4x8xf32> to vector<4x8x1xf32>
    %51 = vector.broadcast %50 : vector<4x8x1xf32> to vector<4x8x8xf32>
    %52 = arith.subf %48, %51 : vector<4x8x8xf32>
    %53 = math.exp %52 : vector<4x8x8xf32>
    %cst_18 = arith.constant dense<0.000000e+00> : vector<4x8xf32>
    %54 = vector.multi_reduction <add>, %53, %cst_18 [2] : vector<4x8x8xf32> to vector<4x8xf32>
    %55 = vector.shape_cast %54 : vector<4x8xf32> to vector<4x8x1xf32>
    %56 = vector.broadcast %55 : vector<4x8x1xf32> to vector<4x8x8xf32>
    %57 = arith.divf %53, %56 : vector<4x8x8xf32>
    "tpu.trace_start"() <{level = 10 : i32, message = "bqk,bkd->bqd"}> : () -> ()
    %cst_19 = arith.constant dense<0.000000e+00> : vector<4x8x8xf32>
    %58 = tpu.matmul %57, %45, %cst_19 {dimension_numbers = #tpu.dot_dimension_numbers<[2], [1], [1], [2], [0, 0, 0, 1, 1, 2], [0], [0]>} : vector<4x8x8xf32>, vector<4x8x8xf32>, vector<4x8x8xf32> -> vector<4x8x8xf32>
    "tpu.trace_stop"() : () -> ()
    %c0_20 = arith.constant 0 : index
    %c0_21 = arith.constant 0 : index
    %c0_22 = arith.constant 0 : index
    %59 = vector.load %arg7[%c0_20, %c0_21, %c0_22] : memref<3x32x32xf32, #tpu.memory_space<vmem>>, vector<1x32x32xf32>
    %60 = vector.shape_cast %59 : vector<1x32x32xf32> to vector<32x32xf32>
    %cst_23 = arith.constant 0.000000e+00 : f32
    %61 = vector.broadcast %cst_23 : f32 to vector<8x32xf32>
    %62 = vector.extract_strided_slice %58 {offsets = [0, 0, 0], sizes = [1, 8, 8], strides = [1, 1, 1]} : vector<4x8x8xf32> to vector<1x8x8xf32>
    %63 = vector.shape_cast %62 : vector<1x8x8xf32> to vector<8x8xf32>
    %64 = vector.extract_strided_slice %60 {offsets = [0, 0], sizes = [8, 32], strides = [1, 1]} : vector<32x32xf32> to vector<8x32xf32>
    %cst_24 = arith.constant dense<0.000000e+00> : vector<8x32xf32>
    %65 = tpu.matmul %63, %64, %cst_24 {dimension_numbers = #tpu.dot_dimension_numbers<[1], [0], [0], [1], [0, 0, 1, 1], [], []>} : vector<8x8xf32>, vector<8x32xf32>, vector<8x32xf32> -> vector<8x32xf32>
    %66 = arith.addf %61, %65 : vector<8x32xf32>
    %67 = vector.extract_strided_slice %58 {offsets = [1, 0, 0], sizes = [1, 8, 8], strides = [1, 1, 1]} : vector<4x8x8xf32> to vector<1x8x8xf32>
    %68 = vector.shape_cast %67 : vector<1x8x8xf32> to vector<8x8xf32>
    %69 = vector.extract_strided_slice %60 {offsets = [8, 0], sizes = [8, 32], strides = [1, 1]} : vector<32x32xf32> to vector<8x32xf32>
    %cst_25 = arith.constant dense<0.000000e+00> : vector<8x32xf32>
    %70 = tpu.matmul %68, %69, %cst_25 {dimension_numbers = #tpu.dot_dimension_numbers<[1], [0], [0], [1], [0, 0, 1, 1], [], []>} : vector<8x8xf32>, vector<8x32xf32>, vector<8x32xf32> -> vector<8x32xf32>
    %71 = arith.addf %66, %70 : vector<8x32xf32>
    %72 = vector.extract_strided_slice %58 {offsets = [2, 0, 0], sizes = [1, 8, 8], strides = [1, 1, 1]} : vector<4x8x8xf32> to vector<1x8x8xf32>
    %73 = vector.shape_cast %72 : vector<1x8x8xf32> to vector<8x8xf32>
    %74 = vector.extract_strided_slice %60 {offsets = [16, 0], sizes = [8, 32], strides = [1, 1]} : vector<32x32xf32> to vector<8x32xf32>
    %cst_26 = arith.constant dense<0.000000e+00> : vector<8x32xf32>
    %75 = tpu.matmul %73, %74, %cst_26 {dimension_numbers = #tpu.dot_dimension_numbers<[1], [0], [0], [1], [0, 0, 1, 1], [], []>} : vector<8x8xf32>, vector<8x32xf32>, vector<8x32xf32> -> vector<8x32xf32>
    %76 = arith.addf %71, %75 : vector<8x32xf32>
    %77 = vector.extract_strided_slice %58 {offsets = [3, 0, 0], sizes = [1, 8, 8], strides = [1, 1, 1]} : vector<4x8x8xf32> to vector<1x8x8xf32>
    %78 = vector.shape_cast %77 : vector<1x8x8xf32> to vector<8x8xf32>
    %79 = vector.extract_strided_slice %60 {offsets = [24, 0], sizes = [8, 32], strides = [1, 1]} : vector<32x32xf32> to vector<8x32xf32>
    %cst_27 = arith.constant dense<0.000000e+00> : vector<8x32xf32>
    %80 = tpu.matmul %78, %79, %cst_27 {dimension_numbers = #tpu.dot_dimension_numbers<[1], [0], [0], [1], [0, 0, 1, 1], [], []>} : vector<8x8xf32>, vector<8x32xf32>, vector<8x32xf32> -> vector<8x32xf32>
    %81 = arith.addf %76, %80 : vector<8x32xf32>
    %c0_28 = arith.constant 0 : index
    %c0_29 = arith.constant 0 : index
    %c0_30 = arith.constant 0 : index
    %82 = vector.load %arg8[%c0_28, %c0_29, %c0_30] : memref<3x1x32xf32, #tpu.memory_space<vmem>>, vector<1x1x32xf32>
    %83 = vector.shape_cast %82 : vector<1x1x32xf32> to vector<1x32xf32>
    %84 = vector.broadcast %83 : vector<1x32xf32> to vector<8x32xf32>
    %85 = arith.addf %81, %84 : vector<8x32xf32>
    %86 = arith.addf %11, %85 : vector<8x32xf32>
    %c0_31 = arith.constant 0 : index
    %c0_32 = arith.constant 0 : index
    %c0_33 = arith.constant 0 : index
    %87 = vector.load %arg9[%c0_31, %c0_32, %c0_33] : memref<3x1x32xf32, #tpu.memory_space<vmem>>, vector<1x1x32xf32>
    %88 = vector.shape_cast %87 : vector<1x1x32xf32> to vector<1x32xf32>
    %c0_34 = arith.constant 0 : index
    %c0_35 = arith.constant 0 : index
    %c0_36 = arith.constant 0 : index
    %89 = vector.load %arg10[%c0_34, %c0_35, %c0_36] : memref<3x1x32xf32, #tpu.memory_space<vmem>>, vector<1x1x32xf32>
    %90 = vector.shape_cast %89 : vector<1x1x32xf32> to vector<1x32xf32>
    %cst_37 = arith.constant dense<0.000000e+00> : vector<8xf32>
    %91 = vector.multi_reduction <add>, %86, %cst_37 [1] : vector<8x32xf32> to vector<8xf32>
    %92 = vector.shape_cast %91 : vector<8xf32> to vector<8x1xf32>
    %cst_38 = arith.constant 3.200000e+01 : f32
    %93 = vector.broadcast %cst_38 : f32 to vector<8x1xf32>
    %94 = arith.divf %92, %93 : vector<8x1xf32>
    %95 = vector.broadcast %94 : vector<8x1xf32> to vector<8x32xf32>
    %96 = arith.subf %86, %95 : vector<8x32xf32>
    %97 = arith.mulf %96, %96 : vector<8x32xf32>
    %cst_39 = arith.constant dense<0.000000e+00> : vector<8xf32>
    %98 = vector.multi_reduction <add>, %97, %cst_39 [1] : vector<8x32xf32> to vector<8xf32>
    %99 = vector.shape_cast %98 : vector<8xf32> to vector<8x1xf32>
    %cst_40 = arith.constant 3.200000e+01 : f32
    %100 = vector.broadcast %cst_40 : f32 to vector<8x1xf32>
    %101 = arith.divf %99, %100 : vector<8x1xf32>
    %cst_41 = arith.constant 9.99999974E-6 : f32
    %102 = vector.broadcast %cst_41 : f32 to vector<8x1xf32>
    %103 = arith.addf %101, %102 : vector<8x1xf32>
    %104 = math.rsqrt %103 : vector<8x1xf32>
    %105 = vector.broadcast %104 : vector<8x1xf32> to vector<8x32xf32>
    %106 = arith.mulf %96, %105 : vector<8x32xf32>
    %107 = vector.broadcast %88 : vector<1x32xf32> to vector<8x32xf32>
    %108 = arith.mulf %106, %107 : vector<8x32xf32>
    %109 = vector.broadcast %90 : vector<1x32xf32> to vector<8x32xf32>
    %110 = arith.addf %108, %109 : vector<8x32xf32>
    %c0_42 = arith.constant 0 : index
    %c0_43 = arith.constant 0 : index
    %c0_44 = arith.constant 0 : index
    %111 = vector.load %arg11[%c0_42, %c0_43, %c0_44] : memref<3x32x2048xf32, #tpu.memory_space<vmem>>, vector<1x32x2048xf32>
    %112 = vector.shape_cast %111 : vector<1x32x2048xf32> to vector<32x2048xf32>
    %cst_45 = arith.constant dense<0.000000e+00> : vector<8x2048xf32>
    %113 = tpu.matmul %110, %112, %cst_45 {dimension_numbers = #tpu.dot_dimension_numbers<[1], [0], [0], [1], [0, 0, 1, 1], [], []>} : vector<8x32xf32>, vector<32x2048xf32>, vector<8x2048xf32> -> vector<8x2048xf32>
    %c0_46 = arith.constant 0 : index
    %c0_47 = arith.constant 0 : index
    %c0_48 = arith.constant 0 : index
    %114 = vector.load %arg12[%c0_46, %c0_47, %c0_48] : memref<3x1x2048xf32, #tpu.memory_space<vmem>>, vector<1x1x2048xf32>
    %115 = vector.shape_cast %114 : vector<1x1x2048xf32> to vector<1x2048xf32>
    %116 = vector.broadcast %115 : vector<1x2048xf32> to vector<8x2048xf32>
    %117 = arith.addf %113, %116 : vector<8x2048xf32>
    %cst_49 = arith.constant 0.000000e+00 : f32
    %118 = vector.broadcast %cst_49 : f32 to vector<8x2048xf32>
    %119 = arith.maximumf %117, %118 : vector<8x2048xf32>
    %c0_50 = arith.constant 0 : index
    %c0_51 = arith.constant 0 : index
    %c0_52 = arith.constant 0 : index
    %120 = vector.load %arg13[%c0_50, %c0_51, %c0_52] : memref<3x32x2048xf32, #tpu.memory_space<vmem>>, vector<1x32x2048xf32>
    %121 = vector.shape_cast %120 : vector<1x32x2048xf32> to vector<32x2048xf32>
    %cst_53 = arith.constant dense<0.000000e+00> : vector<8x32xf32>
    %122 = tpu.matmul %119, %121, %cst_53 {dimension_numbers = #tpu.dot_dimension_numbers<[1], [1], [0], [0], [0, 0, 1, 0], [], []>} : vector<8x2048xf32>, vector<32x2048xf32>, vector<8x32xf32> -> vector<8x32xf32>
    %c0_54 = arith.constant 0 : index
    %c0_55 = arith.constant 0 : index
    %c0_56 = arith.constant 0 : index
    %123 = vector.load %arg14[%c0_54, %c0_55, %c0_56] : memref<3x1x32xf32, #tpu.memory_space<vmem>>, vector<1x1x32xf32>
    %124 = vector.shape_cast %123 : vector<1x1x32xf32> to vector<1x32xf32>
    %125 = vector.broadcast %124 : vector<1x32xf32> to vector<8x32xf32>
    %126 = arith.addf %122, %125 : vector<8x32xf32>
    %127 = arith.addf %110, %126 : vector<8x32xf32>
    %c0_57 = arith.constant 0 : index
    %c0_58 = arith.constant 0 : index
    %c0_59 = arith.constant 0 : index
    %128 = vector.load %arg15[%c0_57, %c0_58, %c0_59] : memref<3x1x32xf32, #tpu.memory_space<vmem>>, vector<1x1x32xf32>
    %129 = vector.shape_cast %128 : vector<1x1x32xf32> to vector<1x32xf32>
    %c0_60 = arith.constant 0 : index
    %c0_61 = arith.constant 0 : index
    %c0_62 = arith.constant 0 : index
    %130 = vector.load %arg16[%c0_60, %c0_61, %c0_62] : memref<3x1x32xf32, #tpu.memory_space<vmem>>, vector<1x1x32xf32>
    %131 = vector.shape_cast %130 : vector<1x1x32xf32> to vector<1x32xf32>
    %cst_63 = arith.constant dense<0.000000e+00> : vector<8xf32>
    %132 = vector.multi_reduction <add>, %127, %cst_63 [1] : vector<8x32xf32> to vector<8xf32>
    %133 = vector.shape_cast %132 : vector<8xf32> to vector<8x1xf32>
    %cst_64 = arith.constant 3.200000e+01 : f32
    %134 = vector.broadcast %cst_64 : f32 to vector<8x1xf32>
    %135 = arith.divf %133, %134 : vector<8x1xf32>
    %136 = vector.broadcast %135 : vector<8x1xf32> to vector<8x32xf32>
    %137 = arith.subf %127, %136 : vector<8x32xf32>
    %138 = arith.mulf %137, %137 : vector<8x32xf32>
    %cst_65 = arith.constant dense<0.000000e+00> : vector<8xf32>
    %139 = vector.multi_reduction <add>, %138, %cst_65 [1] : vector<8x32xf32> to vector<8xf32>
    %140 = vector.shape_cast %139 : vector<8xf32> to vector<8x1xf32>
    %cst_66 = arith.constant 3.200000e+01 : f32
    %141 = vector.broadcast %cst_66 : f32 to vector<8x1xf32>
    %142 = arith.divf %140, %141 : vector<8x1xf32>
    %cst_67 = arith.constant 9.99999974E-6 : f32
    %143 = vector.broadcast %cst_67 : f32 to vector<8x1xf32>
    %144 = arith.addf %142, %143 : vector<8x1xf32>
    %145 = math.rsqrt %144 : vector<8x1xf32>
    %146 = vector.broadcast %145 : vector<8x1xf32> to vector<8x32xf32>
    %147 = arith.mulf %137, %146 : vector<8x32xf32>
    %148 = vector.broadcast %129 : vector<1x32xf32> to vector<8x32xf32>
    %149 = arith.mulf %147, %148 : vector<8x32xf32>
    %150 = vector.broadcast %131 : vector<1x32xf32> to vector<8x32xf32>
    %151 = arith.addf %149, %150 : vector<8x32xf32>
    %c1 = arith.constant 1 : index
    %c0_68 = arith.constant 0 : index
    %c0_69 = arith.constant 0 : index
    %152 = vector.load %arg5[%c1, %c0_68, %c0_69] : memref<3x32x96xf32, #tpu.memory_space<vmem>>, vector<1x32x96xf32>
    %153 = vector.shape_cast %152 : vector<1x32x96xf32> to vector<32x96xf32>
    %cst_70 = arith.constant dense<0.000000e+00> : vector<8x96xf32>
    %154 = tpu.matmul %151, %153, %cst_70 {dimension_numbers = #tpu.dot_dimension_numbers<[1], [0], [0], [1], [0, 0, 1, 1], [], []>} : vector<8x32xf32>, vector<32x96xf32>, vector<8x96xf32> -> vector<8x96xf32>
    %c1_71 = arith.constant 1 : index
    %c0_72 = arith.constant 0 : index
    %c0_73 = arith.constant 0 : index
    %155 = vector.load %arg6[%c1_71, %c0_72, %c0_73] : memref<3x1x96xf32, #tpu.memory_space<vmem>>, vector<1x1x96xf32>
    %156 = vector.shape_cast %155 : vector<1x1x96xf32> to vector<1x96xf32>
    %157 = vector.broadcast %156 : vector<1x96xf32> to vector<8x96xf32>
    %158 = arith.addf %154, %157 : vector<8x96xf32>
    %159 = vector.extract_strided_slice %158 {offsets = [0, 0], sizes = [8, 8], strides = [1, 1]} : vector<8x96xf32> to vector<8x8xf32>
    %160 = vector.shape_cast %159 : vector<8x8xf32> to vector<1x8x8xf32>
    %161 = vector.extract_strided_slice %158 {offsets = [0, 8], sizes = [8, 8], strides = [1, 1]} : vector<8x96xf32> to vector<8x8xf32>
    %162 = vector.shape_cast %161 : vector<8x8xf32> to vector<1x8x8xf32>
    %163 = vector.extract_strided_slice %158 {offsets = [0, 16], sizes = [8, 8], strides = [1, 1]} : vector<8x96xf32> to vector<8x8xf32>
    %164 = vector.shape_cast %163 : vector<8x8xf32> to vector<1x8x8xf32>
    %165 = vector.extract_strided_slice %158 {offsets = [0, 24], sizes = [8, 8], strides = [1, 1]} : vector<8x96xf32> to vector<8x8xf32>
    %166 = vector.shape_cast %165 : vector<8x8xf32> to vector<1x8x8xf32>
    %167 = tpu.concatenate %160, %162, %164, %166 in 0 : vector<1x8x8xf32>, vector<1x8x8xf32>, vector<1x8x8xf32>, vector<1x8x8xf32> -> vector<4x8x8xf32>
    %168 = vector.extract_strided_slice %158 {offsets = [0, 32], sizes = [8, 8], strides = [1, 1]} : vector<8x96xf32> to vector<8x8xf32>
    %169 = vector.shape_cast %168 : vector<8x8xf32> to vector<1x8x8xf32>
    %170 = vector.extract_strided_slice %158 {offsets = [0, 40], sizes = [8, 8], strides = [1, 1]} : vector<8x96xf32> to vector<8x8xf32>
    %171 = vector.shape_cast %170 : vector<8x8xf32> to vector<1x8x8xf32>
    %172 = vector.extract_strided_slice %158 {offsets = [0, 48], sizes = [8, 8], strides = [1, 1]} : vector<8x96xf32> to vector<8x8xf32>
    %173 = vector.shape_cast %172 : vector<8x8xf32> to vector<1x8x8xf32>
    %174 = vector.extract_strided_slice %158 {offsets = [0, 56], sizes = [8, 8], strides = [1, 1]} : vector<8x96xf32> to vector<8x8xf32>
    %175 = vector.shape_cast %174 : vector<8x8xf32> to vector<1x8x8xf32>
    %176 = tpu.concatenate %169, %171, %173, %175 in 0 : vector<1x8x8xf32>, vector<1x8x8xf32>, vector<1x8x8xf32>, vector<1x8x8xf32> -> vector<4x8x8xf32>
    %177 = vector.extract_strided_slice %158 {offsets = [0, 64], sizes = [8, 8], strides = [1, 1]} : vector<8x96xf32> to vector<8x8xf32>
    %178 = vector.shape_cast %177 : vector<8x8xf32> to vector<1x8x8xf32>
    %179 = vector.extract_strided_slice %158 {offsets = [0, 72], sizes = [8, 8], strides = [1, 1]} : vector<8x96xf32> to vector<8x8xf32>
    %180 = vector.shape_cast %179 : vector<8x8xf32> to vector<1x8x8xf32>
    %181 = vector.extract_strided_slice %158 {offsets = [0, 80], sizes = [8, 8], strides = [1, 1]} : vector<8x96xf32> to vector<8x8xf32>
    %182 = vector.shape_cast %181 : vector<8x8xf32> to vector<1x8x8xf32>
    %183 = vector.extract_strided_slice %158 {offsets = [0, 88], sizes = [8, 8], strides = [1, 1]} : vector<8x96xf32> to vector<8x8xf32>
    %184 = vector.shape_cast %183 : vector<8x8xf32> to vector<1x8x8xf32>
    %185 = tpu.concatenate %178, %180, %182, %184 in 0 : vector<1x8x8xf32>, vector<1x8x8xf32>, vector<1x8x8xf32>, vector<1x8x8xf32> -> vector<4x8x8xf32>
    "tpu.trace_start"() <{level = 10 : i32, message = "bqd,bkd->bqk"}> : () -> ()
    %cst_74 = arith.constant dense<0.000000e+00> : vector<4x8x8xf32>
    %186 = tpu.matmul %167, %176, %cst_74 {dimension_numbers = #tpu.dot_dimension_numbers<[2], [2], [1], [1], [0, 0, 0, 1, 1, 1], [0], [0]>} : vector<4x8x8xf32>, vector<4x8x8xf32>, vector<4x8x8xf32> -> vector<4x8x8xf32>
    "tpu.trace_stop"() : () -> ()
    %cst_75 = arith.constant 0.353553385 : f32
    %187 = vector.broadcast %cst_75 : f32 to vector<4x8x8xf32>
    %188 = arith.mulf %186, %187 : vector<4x8x8xf32>
    %cst_76 = arith.constant dense<0xFF800000> : vector<4x8xf32>
    %189 = vector.multi_reduction <maximumf>, %188, %cst_76 [2] : vector<4x8x8xf32> to vector<4x8xf32>
    %190 = vector.shape_cast %189 : vector<4x8xf32> to vector<4x8x1xf32>
    %191 = vector.broadcast %190 : vector<4x8x1xf32> to vector<4x8x8xf32>
    %192 = arith.subf %188, %191 : vector<4x8x8xf32>
    %193 = math.exp %192 : vector<4x8x8xf32>
    %cst_77 = arith.constant dense<0.000000e+00> : vector<4x8xf32>
    %194 = vector.multi_reduction <add>, %193, %cst_77 [2] : vector<4x8x8xf32> to vector<4x8xf32>
    %195 = vector.shape_cast %194 : vector<4x8xf32> to vector<4x8x1xf32>
    %196 = vector.broadcast %195 : vector<4x8x1xf32> to vector<4x8x8xf32>
    %197 = arith.divf %193, %196 : vector<4x8x8xf32>
    "tpu.trace_start"() <{level = 10 : i32, message = "bqk,bkd->bqd"}> : () -> ()
    %cst_78 = arith.constant dense<0.000000e+00> : vector<4x8x8xf32>
    %198 = tpu.matmul %197, %185, %cst_78 {dimension_numbers = #tpu.dot_dimension_numbers<[2], [1], [1], [2], [0, 0, 0, 1, 1, 2], [0], [0]>} : vector<4x8x8xf32>, vector<4x8x8xf32>, vector<4x8x8xf32> -> vector<4x8x8xf32>
    "tpu.trace_stop"() : () -> ()
    %c1_79 = arith.constant 1 : index
    %c0_80 = arith.constant 0 : index
    %c0_81 = arith.constant 0 : index
    %199 = vector.load %arg7[%c1_79, %c0_80, %c0_81] : memref<3x32x32xf32, #tpu.memory_space<vmem>>, vector<1x32x32xf32>
    %200 = vector.shape_cast %199 : vector<1x32x32xf32> to vector<32x32xf32>
    %cst_82 = arith.constant 0.000000e+00 : f32
    %201 = vector.broadcast %cst_82 : f32 to vector<8x32xf32>
    %202 = vector.extract_strided_slice %198 {offsets = [0, 0, 0], sizes = [1, 8, 8], strides = [1, 1, 1]} : vector<4x8x8xf32> to vector<1x8x8xf32>
    %203 = vector.shape_cast %202 : vector<1x8x8xf32> to vector<8x8xf32>
    %204 = vector.extract_strided_slice %200 {offsets = [0, 0], sizes = [8, 32], strides = [1, 1]} : vector<32x32xf32> to vector<8x32xf32>
    %cst_83 = arith.constant dense<0.000000e+00> : vector<8x32xf32>
    %205 = tpu.matmul %203, %204, %cst_83 {dimension_numbers = #tpu.dot_dimension_numbers<[1], [0], [0], [1], [0, 0, 1, 1], [], []>} : vector<8x8xf32>, vector<8x32xf32>, vector<8x32xf32> -> vector<8x32xf32>
    %206 = arith.addf %201, %205 : vector<8x32xf32>
    %207 = vector.extract_strided_slice %198 {offsets = [1, 0, 0], sizes = [1, 8, 8], strides = [1, 1, 1]} : vector<4x8x8xf32> to vector<1x8x8xf32>
    %208 = vector.shape_cast %207 : vector<1x8x8xf32> to vector<8x8xf32>
    %209 = vector.extract_strided_slice %200 {offsets = [8, 0], sizes = [8, 32], strides = [1, 1]} : vector<32x32xf32> to vector<8x32xf32>
    %cst_84 = arith.constant dense<0.000000e+00> : vector<8x32xf32>
    %210 = tpu.matmul %208, %209, %cst_84 {dimension_numbers = #tpu.dot_dimension_numbers<[1], [0], [0], [1], [0, 0, 1, 1], [], []>} : vector<8x8xf32>, vector<8x32xf32>, vector<8x32xf32> -> vector<8x32xf32>
    %211 = arith.addf %206, %210 : vector<8x32xf32>
    %212 = vector.extract_strided_slice %198 {offsets = [2, 0, 0], sizes = [1, 8, 8], strides = [1, 1, 1]} : vector<4x8x8xf32> to vector<1x8x8xf32>
    %213 = vector.shape_cast %212 : vector<1x8x8xf32> to vector<8x8xf32>
    %214 = vector.extract_strided_slice %200 {offsets = [16, 0], sizes = [8, 32], strides = [1, 1]} : vector<32x32xf32> to vector<8x32xf32>
    %cst_85 = arith.constant dense<0.000000e+00> : vector<8x32xf32>
    %215 = tpu.matmul %213, %214, %cst_85 {dimension_numbers = #tpu.dot_dimension_numbers<[1], [0], [0], [1], [0, 0, 1, 1], [], []>} : vector<8x8xf32>, vector<8x32xf32>, vector<8x32xf32> -> vector<8x32xf32>
    %216 = arith.addf %211, %215 : vector<8x32xf32>
    %217 = vector.extract_strided_slice %198 {offsets = [3, 0, 0], sizes = [1, 8, 8], strides = [1, 1, 1]} : vector<4x8x8xf32> to vector<1x8x8xf32>
    %218 = vector.shape_cast %217 : vector<1x8x8xf32> to vector<8x8xf32>
    %219 = vector.extract_strided_slice %200 {offsets = [24, 0], sizes = [8, 32], strides = [1, 1]} : vector<32x32xf32> to vector<8x32xf32>
    %cst_86 = arith.constant dense<0.000000e+00> : vector<8x32xf32>
    %220 = tpu.matmul %218, %219, %cst_86 {dimension_numbers = #tpu.dot_dimension_numbers<[1], [0], [0], [1], [0, 0, 1, 1], [], []>} : vector<8x8xf32>, vector<8x32xf32>, vector<8x32xf32> -> vector<8x32xf32>
    %221 = arith.addf %216, %220 : vector<8x32xf32>
    %c1_87 = arith.constant 1 : index
    %c0_88 = arith.constant 0 : index
    %c0_89 = arith.constant 0 : index
    %222 = vector.load %arg8[%c1_87, %c0_88, %c0_89] : memref<3x1x32xf32, #tpu.memory_space<vmem>>, vector<1x1x32xf32>
    %223 = vector.shape_cast %222 : vector<1x1x32xf32> to vector<1x32xf32>
    %224 = vector.broadcast %223 : vector<1x32xf32> to vector<8x32xf32>
    %225 = arith.addf %221, %224 : vector<8x32xf32>
    %226 = arith.addf %151, %225 : vector<8x32xf32>
    %c1_90 = arith.constant 1 : index
    %c0_91 = arith.constant 0 : index
    %c0_92 = arith.constant 0 : index
    %227 = vector.load %arg9[%c1_90, %c0_91, %c0_92] : memref<3x1x32xf32, #tpu.memory_space<vmem>>, vector<1x1x32xf32>
    %228 = vector.shape_cast %227 : vector<1x1x32xf32> to vector<1x32xf32>
    %c1_93 = arith.constant 1 : index
    %c0_94 = arith.constant 0 : index
    %c0_95 = arith.constant 0 : index
    %229 = vector.load %arg10[%c1_93, %c0_94, %c0_95] : memref<3x1x32xf32, #tpu.memory_space<vmem>>, vector<1x1x32xf32>
    %230 = vector.shape_cast %229 : vector<1x1x32xf32> to vector<1x32xf32>
    %cst_96 = arith.constant dense<0.000000e+00> : vector<8xf32>
    %231 = vector.multi_reduction <add>, %226, %cst_96 [1] : vector<8x32xf32> to vector<8xf32>
    %232 = vector.shape_cast %231 : vector<8xf32> to vector<8x1xf32>
    %cst_97 = arith.constant 3.200000e+01 : f32
    %233 = vector.broadcast %cst_97 : f32 to vector<8x1xf32>
    %234 = arith.divf %232, %233 : vector<8x1xf32>
    %235 = vector.broadcast %234 : vector<8x1xf32> to vector<8x32xf32>
    %236 = arith.subf %226, %235 : vector<8x32xf32>
    %237 = arith.mulf %236, %236 : vector<8x32xf32>
    %cst_98 = arith.constant dense<0.000000e+00> : vector<8xf32>
    %238 = vector.multi_reduction <add>, %237, %cst_98 [1] : vector<8x32xf32> to vector<8xf32>
    %239 = vector.shape_cast %238 : vector<8xf32> to vector<8x1xf32>
    %cst_99 = arith.constant 3.200000e+01 : f32
    %240 = vector.broadcast %cst_99 : f32 to vector<8x1xf32>
    %241 = arith.divf %239, %240 : vector<8x1xf32>
    %cst_100 = arith.constant 9.99999974E-6 : f32
    %242 = vector.broadcast %cst_100 : f32 to vector<8x1xf32>
    %243 = arith.addf %241, %242 : vector<8x1xf32>
    %244 = math.rsqrt %243 : vector<8x1xf32>
    %245 = vector.broadcast %244 : vector<8x1xf32> to vector<8x32xf32>
    %246 = arith.mulf %236, %245 : vector<8x32xf32>
    %247 = vector.broadcast %228 : vector<1x32xf32> to vector<8x32xf32>
    %248 = arith.mulf %246, %247 : vector<8x32xf32>
    %249 = vector.broadcast %230 : vector<1x32xf32> to vector<8x32xf32>
    %250 = arith.addf %248, %249 : vector<8x32xf32>
    %c1_101 = arith.constant 1 : index
    %c0_102 = arith.constant 0 : index
    %c0_103 = arith.constant 0 : index
    %251 = vector.load %arg11[%c1_101, %c0_102, %c0_103] : memref<3x32x2048xf32, #tpu.memory_space<vmem>>, vector<1x32x2048xf32>
    %252 = vector.shape_cast %251 : vector<1x32x2048xf32> to vector<32x2048xf32>
    %cst_104 = arith.constant dense<0.000000e+00> : vector<8x2048xf32>
    %253 = tpu.matmul %250, %252, %cst_104 {dimension_numbers = #tpu.dot_dimension_numbers<[1], [0], [0], [1], [0, 0, 1, 1], [], []>} : vector<8x32xf32>, vector<32x2048xf32>, vector<8x2048xf32> -> vector<8x2048xf32>
    %c1_105 = arith.constant 1 : index
    %c0_106 = arith.constant 0 : index
    %c0_107 = arith.constant 0 : index
    %254 = vector.load %arg12[%c1_105, %c0_106, %c0_107] : memref<3x1x2048xf32, #tpu.memory_space<vmem>>, vector<1x1x2048xf32>
    %255 = vector.shape_cast %254 : vector<1x1x2048xf32> to vector<1x2048xf32>
    %256 = vector.broadcast %255 : vector<1x2048xf32> to vector<8x2048xf32>
    %257 = arith.addf %253, %256 : vector<8x2048xf32>
    %cst_108 = arith.constant 0.000000e+00 : f32
    %258 = vector.broadcast %cst_108 : f32 to vector<8x2048xf32>
    %259 = arith.maximumf %257, %258 : vector<8x2048xf32>
    %c1_109 = arith.constant 1 : index
    %c0_110 = arith.constant 0 : index
    %c0_111 = arith.constant 0 : index
    %260 = vector.load %arg13[%c1_109, %c0_110, %c0_111] : memref<3x32x2048xf32, #tpu.memory_space<vmem>>, vector<1x32x2048xf32>
    %261 = vector.shape_cast %260 : vector<1x32x2048xf32> to vector<32x2048xf32>
    %cst_112 = arith.constant dense<0.000000e+00> : vector<8x32xf32>
    %262 = tpu.matmul %259, %261, %cst_112 {dimension_numbers = #tpu.dot_dimension_numbers<[1], [1], [0], [0], [0, 0, 1, 0], [], []>} : vector<8x2048xf32>, vector<32x2048xf32>, vector<8x32xf32> -> vector<8x32xf32>
    %c1_113 = arith.constant 1 : index
    %c0_114 = arith.constant 0 : index
    %c0_115 = arith.constant 0 : index
    %263 = vector.load %arg14[%c1_113, %c0_114, %c0_115] : memref<3x1x32xf32, #tpu.memory_space<vmem>>, vector<1x1x32xf32>
    %264 = vector.shape_cast %263 : vector<1x1x32xf32> to vector<1x32xf32>
    %265 = vector.broadcast %264 : vector<1x32xf32> to vector<8x32xf32>
    %266 = arith.addf %262, %265 : vector<8x32xf32>
    %267 = arith.addf %250, %266 : vector<8x32xf32>
    %c1_116 = arith.constant 1 : index
    %c0_117 = arith.constant 0 : index
    %c0_118 = arith.constant 0 : index
    %268 = vector.load %arg15[%c1_116, %c0_117, %c0_118] : memref<3x1x32xf32, #tpu.memory_space<vmem>>, vector<1x1x32xf32>
    %269 = vector.shape_cast %268 : vector<1x1x32xf32> to vector<1x32xf32>
    %c1_119 = arith.constant 1 : index
    %c0_120 = arith.constant 0 : index
    %c0_121 = arith.constant 0 : index
    %270 = vector.load %arg16[%c1_119, %c0_120, %c0_121] : memref<3x1x32xf32, #tpu.memory_space<vmem>>, vector<1x1x32xf32>
    %271 = vector.shape_cast %270 : vector<1x1x32xf32> to vector<1x32xf32>
    %cst_122 = arith.constant dense<0.000000e+00> : vector<8xf32>
    %272 = vector.multi_reduction <add>, %267, %cst_122 [1] : vector<8x32xf32> to vector<8xf32>
    %273 = vector.shape_cast %272 : vector<8xf32> to vector<8x1xf32>
    %cst_123 = arith.constant 3.200000e+01 : f32
    %274 = vector.broadcast %cst_123 : f32 to vector<8x1xf32>
    %275 = arith.divf %273, %274 : vector<8x1xf32>
    %276 = vector.broadcast %275 : vector<8x1xf32> to vector<8x32xf32>
    %277 = arith.subf %267, %276 : vector<8x32xf32>
    %278 = arith.mulf %277, %277 : vector<8x32xf32>
    %cst_124 = arith.constant dense<0.000000e+00> : vector<8xf32>
    %279 = vector.multi_reduction <add>, %278, %cst_124 [1] : vector<8x32xf32> to vector<8xf32>
    %280 = vector.shape_cast %279 : vector<8xf32> to vector<8x1xf32>
    %cst_125 = arith.constant 3.200000e+01 : f32
    %281 = vector.broadcast %cst_125 : f32 to vector<8x1xf32>
    %282 = arith.divf %280, %281 : vector<8x1xf32>
    %cst_126 = arith.constant 9.99999974E-6 : f32
    %283 = vector.broadcast %cst_126 : f32 to vector<8x1xf32>
    %284 = arith.addf %282, %283 : vector<8x1xf32>
    %285 = math.rsqrt %284 : vector<8x1xf32>
    %286 = vector.broadcast %285 : vector<8x1xf32> to vector<8x32xf32>
    %287 = arith.mulf %277, %286 : vector<8x32xf32>
    %288 = vector.broadcast %269 : vector<1x32xf32> to vector<8x32xf32>
    %289 = arith.mulf %287, %288 : vector<8x32xf32>
    %290 = vector.broadcast %271 : vector<1x32xf32> to vector<8x32xf32>
    %291 = arith.addf %289, %290 : vector<8x32xf32>
    %c2 = arith.constant 2 : index
    %c0_127 = arith.constant 0 : index
    %c0_128 = arith.constant 0 : index
    %292 = vector.load %arg5[%c2, %c0_127, %c0_128] : memref<3x32x96xf32, #tpu.memory_space<vmem>>, vector<1x32x96xf32>
    %293 = vector.shape_cast %292 : vector<1x32x96xf32> to vector<32x96xf32>
    %cst_129 = arith.constant dense<0.000000e+00> : vector<8x96xf32>
    %294 = tpu.matmul %291, %293, %cst_129 {dimension_numbers = #tpu.dot_dimension_numbers<[1], [0], [0], [1], [0, 0, 1, 1], [], []>} : vector<8x32xf32>, vector<32x96xf32>, vector<8x96xf32> -> vector<8x96xf32>
    %c2_130 = arith.constant 2 : index
    %c0_131 = arith.constant 0 : index
    %c0_132 = arith.constant 0 : index
    %295 = vector.load %arg6[%c2_130, %c0_131, %c0_132] : memref<3x1x96xf32, #tpu.memory_space<vmem>>, vector<1x1x96xf32>
    %296 = vector.shape_cast %295 : vector<1x1x96xf32> to vector<1x96xf32>
    %297 = vector.broadcast %296 : vector<1x96xf32> to vector<8x96xf32>
    %298 = arith.addf %294, %297 : vector<8x96xf32>
    %299 = vector.extract_strided_slice %298 {offsets = [0, 0], sizes = [8, 8], strides = [1, 1]} : vector<8x96xf32> to vector<8x8xf32>
    %300 = vector.shape_cast %299 : vector<8x8xf32> to vector<1x8x8xf32>
    %301 = vector.extract_strided_slice %298 {offsets = [0, 8], sizes = [8, 8], strides = [1, 1]} : vector<8x96xf32> to vector<8x8xf32>
    %302 = vector.shape_cast %301 : vector<8x8xf32> to vector<1x8x8xf32>
    %303 = vector.extract_strided_slice %298 {offsets = [0, 16], sizes = [8, 8], strides = [1, 1]} : vector<8x96xf32> to vector<8x8xf32>
    %304 = vector.shape_cast %303 : vector<8x8xf32> to vector<1x8x8xf32>
    %305 = vector.extract_strided_slice %298 {offsets = [0, 24], sizes = [8, 8], strides = [1, 1]} : vector<8x96xf32> to vector<8x8xf32>
    %306 = vector.shape_cast %305 : vector<8x8xf32> to vector<1x8x8xf32>
    %307 = tpu.concatenate %300, %302, %304, %306 in 0 : vector<1x8x8xf32>, vector<1x8x8xf32>, vector<1x8x8xf32>, vector<1x8x8xf32> -> vector<4x8x8xf32>
    %308 = vector.extract_strided_slice %298 {offsets = [0, 32], sizes = [8, 8], strides = [1, 1]} : vector<8x96xf32> to vector<8x8xf32>
    %309 = vector.shape_cast %308 : vector<8x8xf32> to vector<1x8x8xf32>
    %310 = vector.extract_strided_slice %298 {offsets = [0, 40], sizes = [8, 8], strides = [1, 1]} : vector<8x96xf32> to vector<8x8xf32>
    %311 = vector.shape_cast %310 : vector<8x8xf32> to vector<1x8x8xf32>
    %312 = vector.extract_strided_slice %298 {offsets = [0, 48], sizes = [8, 8], strides = [1, 1]} : vector<8x96xf32> to vector<8x8xf32>
    %313 = vector.shape_cast %312 : vector<8x8xf32> to vector<1x8x8xf32>
    %314 = vector.extract_strided_slice %298 {offsets = [0, 56], sizes = [8, 8], strides = [1, 1]} : vector<8x96xf32> to vector<8x8xf32>
    %315 = vector.shape_cast %314 : vector<8x8xf32> to vector<1x8x8xf32>
    %316 = tpu.concatenate %309, %311, %313, %315 in 0 : vector<1x8x8xf32>, vector<1x8x8xf32>, vector<1x8x8xf32>, vector<1x8x8xf32> -> vector<4x8x8xf32>
    %317 = vector.extract_strided_slice %298 {offsets = [0, 64], sizes = [8, 8], strides = [1, 1]} : vector<8x96xf32> to vector<8x8xf32>
    %318 = vector.shape_cast %317 : vector<8x8xf32> to vector<1x8x8xf32>
    %319 = vector.extract_strided_slice %298 {offsets = [0, 72], sizes = [8, 8], strides = [1, 1]} : vector<8x96xf32> to vector<8x8xf32>
    %320 = vector.shape_cast %319 : vector<8x8xf32> to vector<1x8x8xf32>
    %321 = vector.extract_strided_slice %298 {offsets = [0, 80], sizes = [8, 8], strides = [1, 1]} : vector<8x96xf32> to vector<8x8xf32>
    %322 = vector.shape_cast %321 : vector<8x8xf32> to vector<1x8x8xf32>
    %323 = vector.extract_strided_slice %298 {offsets = [0, 88], sizes = [8, 8], strides = [1, 1]} : vector<8x96xf32> to vector<8x8xf32>
    %324 = vector.shape_cast %323 : vector<8x8xf32> to vector<1x8x8xf32>
    %325 = tpu.concatenate %318, %320, %322, %324 in 0 : vector<1x8x8xf32>, vector<1x8x8xf32>, vector<1x8x8xf32>, vector<1x8x8xf32> -> vector<4x8x8xf32>
    "tpu.trace_start"() <{level = 10 : i32, message = "bqd,bkd->bqk"}> : () -> ()
    %cst_133 = arith.constant dense<0.000000e+00> : vector<4x8x8xf32>
    %326 = tpu.matmul %307, %316, %cst_133 {dimension_numbers = #tpu.dot_dimension_numbers<[2], [2], [1], [1], [0, 0, 0, 1, 1, 1], [0], [0]>} : vector<4x8x8xf32>, vector<4x8x8xf32>, vector<4x8x8xf32> -> vector<4x8x8xf32>
    "tpu.trace_stop"() : () -> ()
    %cst_134 = arith.constant 0.353553385 : f32
    %327 = vector.broadcast %cst_134 : f32 to vector<4x8x8xf32>
    %328 = arith.mulf %326, %327 : vector<4x8x8xf32>
    %cst_135 = arith.constant dense<0xFF800000> : vector<4x8xf32>
    %329 = vector.multi_reduction <maximumf>, %328, %cst_135 [2] : vector<4x8x8xf32> to vector<4x8xf32>
    %330 = vector.shape_cast %329 : vector<4x8xf32> to vector<4x8x1xf32>
    %331 = vector.broadcast %330 : vector<4x8x1xf32> to vector<4x8x8xf32>
    %332 = arith.subf %328, %331 : vector<4x8x8xf32>
    %333 = math.exp %332 : vector<4x8x8xf32>
    %cst_136 = arith.constant dense<0.000000e+00> : vector<4x8xf32>
    %334 = vector.multi_reduction <add>, %333, %cst_136 [2] : vector<4x8x8xf32> to vector<4x8xf32>
    %335 = vector.shape_cast %334 : vector<4x8xf32> to vector<4x8x1xf32>
    %336 = vector.broadcast %335 : vector<4x8x1xf32> to vector<4x8x8xf32>
    %337 = arith.divf %333, %336 : vector<4x8x8xf32>
    "tpu.trace_start"() <{level = 10 : i32, message = "bqk,bkd->bqd"}> : () -> ()
    %cst_137 = arith.constant dense<0.000000e+00> : vector<4x8x8xf32>
    %338 = tpu.matmul %337, %325, %cst_137 {dimension_numbers = #tpu.dot_dimension_numbers<[2], [1], [1], [2], [0, 0, 0, 1, 1, 2], [0], [0]>} : vector<4x8x8xf32>, vector<4x8x8xf32>, vector<4x8x8xf32> -> vector<4x8x8xf32>
    "tpu.trace_stop"() : () -> ()
    %c2_138 = arith.constant 2 : index
    %c0_139 = arith.constant 0 : index
    %c0_140 = arith.constant 0 : index
    %339 = vector.load %arg7[%c2_138, %c0_139, %c0_140] : memref<3x32x32xf32, #tpu.memory_space<vmem>>, vector<1x32x32xf32>
    %340 = vector.shape_cast %339 : vector<1x32x32xf32> to vector<32x32xf32>
    %cst_141 = arith.constant 0.000000e+00 : f32
    %341 = vector.broadcast %cst_141 : f32 to vector<8x32xf32>
    %342 = vector.extract_strided_slice %338 {offsets = [0, 0, 0], sizes = [1, 8, 8], strides = [1, 1, 1]} : vector<4x8x8xf32> to vector<1x8x8xf32>
    %343 = vector.shape_cast %342 : vector<1x8x8xf32> to vector<8x8xf32>
    %344 = vector.extract_strided_slice %340 {offsets = [0, 0], sizes = [8, 32], strides = [1, 1]} : vector<32x32xf32> to vector<8x32xf32>
    %cst_142 = arith.constant dense<0.000000e+00> : vector<8x32xf32>
    %345 = tpu.matmul %343, %344, %cst_142 {dimension_numbers = #tpu.dot_dimension_numbers<[1], [0], [0], [1], [0, 0, 1, 1], [], []>} : vector<8x8xf32>, vector<8x32xf32>, vector<8x32xf32> -> vector<8x32xf32>
    %346 = arith.addf %341, %345 : vector<8x32xf32>
    %347 = vector.extract_strided_slice %338 {offsets = [1, 0, 0], sizes = [1, 8, 8], strides = [1, 1, 1]} : vector<4x8x8xf32> to vector<1x8x8xf32>
    %348 = vector.shape_cast %347 : vector<1x8x8xf32> to vector<8x8xf32>
    %349 = vector.extract_strided_slice %340 {offsets = [8, 0], sizes = [8, 32], strides = [1, 1]} : vector<32x32xf32> to vector<8x32xf32>
    %cst_143 = arith.constant dense<0.000000e+00> : vector<8x32xf32>
    %350 = tpu.matmul %348, %349, %cst_143 {dimension_numbers = #tpu.dot_dimension_numbers<[1], [0], [0], [1], [0, 0, 1, 1], [], []>} : vector<8x8xf32>, vector<8x32xf32>, vector<8x32xf32> -> vector<8x32xf32>
    %351 = arith.addf %346, %350 : vector<8x32xf32>
    %352 = vector.extract_strided_slice %338 {offsets = [2, 0, 0], sizes = [1, 8, 8], strides = [1, 1, 1]} : vector<4x8x8xf32> to vector<1x8x8xf32>
    %353 = vector.shape_cast %352 : vector<1x8x8xf32> to vector<8x8xf32>
    %354 = vector.extract_strided_slice %340 {offsets = [16, 0], sizes = [8, 32], strides = [1, 1]} : vector<32x32xf32> to vector<8x32xf32>
    %cst_144 = arith.constant dense<0.000000e+00> : vector<8x32xf32>
    %355 = tpu.matmul %353, %354, %cst_144 {dimension_numbers = #tpu.dot_dimension_numbers<[1], [0], [0], [1], [0, 0, 1, 1], [], []>} : vector<8x8xf32>, vector<8x32xf32>, vector<8x32xf32> -> vector<8x32xf32>
    %356 = arith.addf %351, %355 : vector<8x32xf32>
    %357 = vector.extract_strided_slice %338 {offsets = [3, 0, 0], sizes = [1, 8, 8], strides = [1, 1, 1]} : vector<4x8x8xf32> to vector<1x8x8xf32>
    %358 = vector.shape_cast %357 : vector<1x8x8xf32> to vector<8x8xf32>
    %359 = vector.extract_strided_slice %340 {offsets = [24, 0], sizes = [8, 32], strides = [1, 1]} : vector<32x32xf32> to vector<8x32xf32>
    %cst_145 = arith.constant dense<0.000000e+00> : vector<8x32xf32>
    %360 = tpu.matmul %358, %359, %cst_145 {dimension_numbers = #tpu.dot_dimension_numbers<[1], [0], [0], [1], [0, 0, 1, 1], [], []>} : vector<8x8xf32>, vector<8x32xf32>, vector<8x32xf32> -> vector<8x32xf32>
    %361 = arith.addf %356, %360 : vector<8x32xf32>
    %c2_146 = arith.constant 2 : index
    %c0_147 = arith.constant 0 : index
    %c0_148 = arith.constant 0 : index
    %362 = vector.load %arg8[%c2_146, %c0_147, %c0_148] : memref<3x1x32xf32, #tpu.memory_space<vmem>>, vector<1x1x32xf32>
    %363 = vector.shape_cast %362 : vector<1x1x32xf32> to vector<1x32xf32>
    %364 = vector.broadcast %363 : vector<1x32xf32> to vector<8x32xf32>
    %365 = arith.addf %361, %364 : vector<8x32xf32>
    %366 = arith.addf %291, %365 : vector<8x32xf32>
    %c2_149 = arith.constant 2 : index
    %c0_150 = arith.constant 0 : index
    %c0_151 = arith.constant 0 : index
    %367 = vector.load %arg9[%c2_149, %c0_150, %c0_151] : memref<3x1x32xf32, #tpu.memory_space<vmem>>, vector<1x1x32xf32>
    %368 = vector.shape_cast %367 : vector<1x1x32xf32> to vector<1x32xf32>
    %c2_152 = arith.constant 2 : index
    %c0_153 = arith.constant 0 : index
    %c0_154 = arith.constant 0 : index
    %369 = vector.load %arg10[%c2_152, %c0_153, %c0_154] : memref<3x1x32xf32, #tpu.memory_space<vmem>>, vector<1x1x32xf32>
    %370 = vector.shape_cast %369 : vector<1x1x32xf32> to vector<1x32xf32>
    %cst_155 = arith.constant dense<0.000000e+00> : vector<8xf32>
    %371 = vector.multi_reduction <add>, %366, %cst_155 [1] : vector<8x32xf32> to vector<8xf32>
    %372 = vector.shape_cast %371 : vector<8xf32> to vector<8x1xf32>
    %cst_156 = arith.constant 3.200000e+01 : f32
    %373 = vector.broadcast %cst_156 : f32 to vector<8x1xf32>
    %374 = arith.divf %372, %373 : vector<8x1xf32>
    %375 = vector.broadcast %374 : vector<8x1xf32> to vector<8x32xf32>
    %376 = arith.subf %366, %375 : vector<8x32xf32>
    %377 = arith.mulf %376, %376 : vector<8x32xf32>
    %cst_157 = arith.constant dense<0.000000e+00> : vector<8xf32>
    %378 = vector.multi_reduction <add>, %377, %cst_157 [1] : vector<8x32xf32> to vector<8xf32>
    %379 = vector.shape_cast %378 : vector<8xf32> to vector<8x1xf32>
    %cst_158 = arith.constant 3.200000e+01 : f32
    %380 = vector.broadcast %cst_158 : f32 to vector<8x1xf32>
    %381 = arith.divf %379, %380 : vector<8x1xf32>
    %cst_159 = arith.constant 9.99999974E-6 : f32
    %382 = vector.broadcast %cst_159 : f32 to vector<8x1xf32>
    %383 = arith.addf %381, %382 : vector<8x1xf32>
    %384 = math.rsqrt %383 : vector<8x1xf32>
    %385 = vector.broadcast %384 : vector<8x1xf32> to vector<8x32xf32>
    %386 = arith.mulf %376, %385 : vector<8x32xf32>
    %387 = vector.broadcast %368 : vector<1x32xf32> to vector<8x32xf32>
    %388 = arith.mulf %386, %387 : vector<8x32xf32>
    %389 = vector.broadcast %370 : vector<1x32xf32> to vector<8x32xf32>
    %390 = arith.addf %388, %389 : vector<8x32xf32>
    %c2_160 = arith.constant 2 : index
    %c0_161 = arith.constant 0 : index
    %c0_162 = arith.constant 0 : index
    %391 = vector.load %arg11[%c2_160, %c0_161, %c0_162] : memref<3x32x2048xf32, #tpu.memory_space<vmem>>, vector<1x32x2048xf32>
    %392 = vector.shape_cast %391 : vector<1x32x2048xf32> to vector<32x2048xf32>
    %cst_163 = arith.constant dense<0.000000e+00> : vector<8x2048xf32>
    %393 = tpu.matmul %390, %392, %cst_163 {dimension_numbers = #tpu.dot_dimension_numbers<[1], [0], [0], [1], [0, 0, 1, 1], [], []>} : vector<8x32xf32>, vector<32x2048xf32>, vector<8x2048xf32> -> vector<8x2048xf32>
    %c2_164 = arith.constant 2 : index
    %c0_165 = arith.constant 0 : index
    %c0_166 = arith.constant 0 : index
    %394 = vector.load %arg12[%c2_164, %c0_165, %c0_166] : memref<3x1x2048xf32, #tpu.memory_space<vmem>>, vector<1x1x2048xf32>
    %395 = vector.shape_cast %394 : vector<1x1x2048xf32> to vector<1x2048xf32>
    %396 = vector.broadcast %395 : vector<1x2048xf32> to vector<8x2048xf32>
    %397 = arith.addf %393, %396 : vector<8x2048xf32>
    %cst_167 = arith.constant 0.000000e+00 : f32
    %398 = vector.broadcast %cst_167 : f32 to vector<8x2048xf32>
    %399 = arith.maximumf %397, %398 : vector<8x2048xf32>
    %c2_168 = arith.constant 2 : index
    %c0_169 = arith.constant 0 : index
    %c0_170 = arith.constant 0 : index
    %400 = vector.load %arg13[%c2_168, %c0_169, %c0_170] : memref<3x32x2048xf32, #tpu.memory_space<vmem>>, vector<1x32x2048xf32>
    %401 = vector.shape_cast %400 : vector<1x32x2048xf32> to vector<32x2048xf32>
    %cst_171 = arith.constant dense<0.000000e+00> : vector<8x32xf32>
    %402 = tpu.matmul %399, %401, %cst_171 {dimension_numbers = #tpu.dot_dimension_numbers<[1], [1], [0], [0], [0, 0, 1, 0], [], []>} : vector<8x2048xf32>, vector<32x2048xf32>, vector<8x32xf32> -> vector<8x32xf32>
    %c2_172 = arith.constant 2 : index
    %c0_173 = arith.constant 0 : index
    %c0_174 = arith.constant 0 : index
    %403 = vector.load %arg14[%c2_172, %c0_173, %c0_174] : memref<3x1x32xf32, #tpu.memory_space<vmem>>, vector<1x1x32xf32>
    %404 = vector.shape_cast %403 : vector<1x1x32xf32> to vector<1x32xf32>
    %405 = vector.broadcast %404 : vector<1x32xf32> to vector<8x32xf32>
    %406 = arith.addf %402, %405 : vector<8x32xf32>
    %407 = arith.addf %390, %406 : vector<8x32xf32>
    %c2_175 = arith.constant 2 : index
    %c0_176 = arith.constant 0 : index
    %c0_177 = arith.constant 0 : index
    %408 = vector.load %arg15[%c2_175, %c0_176, %c0_177] : memref<3x1x32xf32, #tpu.memory_space<vmem>>, vector<1x1x32xf32>
    %409 = vector.shape_cast %408 : vector<1x1x32xf32> to vector<1x32xf32>
    %c2_178 = arith.constant 2 : index
    %c0_179 = arith.constant 0 : index
    %c0_180 = arith.constant 0 : index
    %410 = vector.load %arg16[%c2_178, %c0_179, %c0_180] : memref<3x1x32xf32, #tpu.memory_space<vmem>>, vector<1x1x32xf32>
    %411 = vector.shape_cast %410 : vector<1x1x32xf32> to vector<1x32xf32>
    %cst_181 = arith.constant dense<0.000000e+00> : vector<8xf32>
    %412 = vector.multi_reduction <add>, %407, %cst_181 [1] : vector<8x32xf32> to vector<8xf32>
    %413 = vector.shape_cast %412 : vector<8xf32> to vector<8x1xf32>
    %cst_182 = arith.constant 3.200000e+01 : f32
    %414 = vector.broadcast %cst_182 : f32 to vector<8x1xf32>
    %415 = arith.divf %413, %414 : vector<8x1xf32>
    %416 = vector.broadcast %415 : vector<8x1xf32> to vector<8x32xf32>
    %417 = arith.subf %407, %416 : vector<8x32xf32>
    %418 = arith.mulf %417, %417 : vector<8x32xf32>
    %cst_183 = arith.constant dense<0.000000e+00> : vector<8xf32>
    %419 = vector.multi_reduction <add>, %418, %cst_183 [1] : vector<8x32xf32> to vector<8xf32>
    %420 = vector.shape_cast %419 : vector<8xf32> to vector<8x1xf32>
    %cst_184 = arith.constant 3.200000e+01 : f32
    %421 = vector.broadcast %cst_184 : f32 to vector<8x1xf32>
    %422 = arith.divf %420, %421 : vector<8x1xf32>
    %cst_185 = arith.constant 9.99999974E-6 : f32
    %423 = vector.broadcast %cst_185 : f32 to vector<8x1xf32>
    %424 = arith.addf %422, %423 : vector<8x1xf32>
    %425 = math.rsqrt %424 : vector<8x1xf32>
    %426 = vector.broadcast %425 : vector<8x1xf32> to vector<8x32xf32>
    %427 = arith.mulf %417, %426 : vector<8x32xf32>
    %428 = vector.broadcast %409 : vector<1x32xf32> to vector<8x32xf32>
    %429 = arith.mulf %427, %428 : vector<8x32xf32>
    %430 = vector.broadcast %411 : vector<1x32xf32> to vector<8x32xf32>
    %431 = arith.addf %429, %430 : vector<8x32xf32>
    %432 = vector.shape_cast %431 : vector<8x32xf32> to vector<1x8x32xf32>
    %c0_186 = arith.constant 0 : index
    %c0_187 = arith.constant 0 : index
    %c0_188 = arith.constant 0 : index
    %433 = vector.load %arg17[%c0_186, %c0_187, %c0_188] : memref<1x8x32xf32, #tpu.memory_space<vmem>>, vector<1x8x32xf32>
    tpu.vector_store %arg17[%c0_186, %c0_187, %c0_188], %432 {strides = array<i32>} : memref<1x8x32xf32, #tpu.memory_space<vmem>>, vector<1x8x32xf32>,
    return
  }
  func.func @transform_0(%arg0: i32) -> (i32, i32, i32) {
    %c0_i32 = arith.constant 0 : i32
    %c0_i32_0 = arith.constant 0 : i32
    %c0_i32_1 = arith.constant 0 : i32
    return %arg0, %c0_i32, %c0_i32_0 : i32, i32, i32
  }
  func.func @transform_1(%arg0: i32) -> (i32, i32) {
    %c0_i32 = arith.constant 0 : i32
    %c0_i32_0 = arith.constant 0 : i32
    %c0_i32_1 = arith.constant 0 : i32
    return %c0_i32, %c0_i32_0 : i32, i32
  }
  func.func @transform_2(%arg0: i32) -> (i32, i32) {
    %c0_i32 = arith.constant 0 : i32
    %c0_i32_0 = arith.constant 0 : i32
    %c0_i32_1 = arith.constant 0 : i32
    return %c0_i32, %c0_i32_0 : i32, i32
  }
  func.func @transform_3(%arg0: i32) -> (i32, i32) {
    %c0_i32 = arith.constant 0 : i32
    %c0_i32_0 = arith.constant 0 : i32
    %c0_i32_1 = arith.constant 0 : i32
    return %c0_i32, %c0_i32_0 : i32, i32
  }
  func.func @transform_4(%arg0: i32) -> (i32, i32, i32) {
    %c0_i32 = arith.constant 0 : i32
    %c0_i32_0 = arith.constant 0 : i32
    %c0_i32_1 = arith.constant 0 : i32
    %c0_i32_2 = arith.constant 0 : i32
    return %c0_i32, %c0_i32_0, %c0_i32_1 : i32, i32, i32
  }
  func.func @transform_5(%arg0: i32) -> (i32, i32, i32) {
    %c0_i32 = arith.constant 0 : i32
    %c0_i32_0 = arith.constant 0 : i32
    %c0_i32_1 = arith.constant 0 : i32
    %c0_i32_2 = arith.constant 0 : i32
    return %c0_i32, %c0_i32_0, %c0_i32_1 : i32, i32, i32
  }
  func.func @transform_6(%arg0: i32) -> (i32, i32, i32) {
    %c0_i32 = arith.constant 0 : i32
    %c0_i32_0 = arith.constant 0 : i32
    %c0_i32_1 = arith.constant 0 : i32
    %c0_i32_2 = arith.constant 0 : i32
    return %c0_i32, %c0_i32_0, %c0_i32_1 : i32, i32, i32
  }
  func.func @transform_7(%arg0: i32) -> (i32, i32, i32) {
    %c0_i32 = arith.constant 0 : i32
    %c0_i32_0 = arith.constant 0 : i32
    %c0_i32_1 = arith.constant 0 : i32
    %c0_i32_2 = arith.constant 0 : i32
    return %c0_i32, %c0_i32_0, %c0_i32_1 : i32, i32, i32
  }
  func.func @transform_8(%arg0: i32) -> (i32, i32, i32) {
    %c0_i32 = arith.constant 0 : i32
    %c0_i32_0 = arith.constant 0 : i32
    %c0_i32_1 = arith.constant 0 : i32
    %c0_i32_2 = arith.constant 0 : i32
    return %c0_i32, %c0_i32_0, %c0_i32_1 : i32, i32, i32
  }
  func.func @transform_9(%arg0: i32) -> (i32, i32, i32) {
    %c0_i32 = arith.constant 0 : i32
    %c0_i32_0 = arith.constant 0 : i32
    %c0_i32_1 = arith.constant 0 : i32
    %c0_i32_2 = arith.constant 0 : i32
    return %c0_i32, %c0_i32_0, %c0_i32_1 : i32, i32, i32
  }
  func.func @transform_10(%arg0: i32) -> (i32, i32, i32) {
    %c0_i32 = arith.constant 0 : i32
    %c0_i32_0 = arith.constant 0 : i32
    %c0_i32_1 = arith.constant 0 : i32
    %c0_i32_2 = arith.constant 0 : i32
    return %c0_i32, %c0_i32_0, %c0_i32_1 : i32, i32, i32
  }
  func.func @transform_11(%arg0: i32) -> (i32, i32, i32) {
    %c0_i32 = arith.constant 0 : i32
    %c0_i32_0 = arith.constant 0 : i32
    %c0_i32_1 = arith.constant 0 : i32
    %c0_i32_2 = arith.constant 0 : i32
    return %c0_i32, %c0_i32_0, %c0_i32_1 : i32, i32, i32
  }
  func.func @transform_12(%arg0: i32) -> (i32, i32, i32) {
    %c0_i32 = arith.constant 0 : i32
    %c0_i32_0 = arith.constant 0 : i32
    %c0_i32_1 = arith.constant 0 : i32
    %c0_i32_2 = arith.constant 0 : i32
    return %c0_i32, %c0_i32_0, %c0_i32_1 : i32, i32, i32
  }
  func.func @transform_13(%arg0: i32) -> (i32, i32, i32) {
    %c0_i32 = arith.constant 0 : i32
    %c0_i32_0 = arith.constant 0 : i32
    %c0_i32_1 = arith.constant 0 : i32
    %c0_i32_2 = arith.constant 0 : i32
    return %c0_i32, %c0_i32_0, %c0_i32_1 : i32, i32, i32
  }
  func.func @transform_14(%arg0: i32) -> (i32, i32, i32) {
    %c0_i32 = arith.constant 0 : i32
    %c0_i32_0 = arith.constant 0 : i32
    %c0_i32_1 = arith.constant 0 : i32
    %c0_i32_2 = arith.constant 0 : i32
    return %c0_i32, %c0_i32_0, %c0_i32_1 : i32, i32, i32
  }
  func.func @transform_15(%arg0: i32) -> (i32, i32, i32) {
    %c0_i32 = arith.constant 0 : i32
    %c0_i32_0 = arith.constant 0 : i32
    %c0_i32_1 = arith.constant 0 : i32
    %c0_i32_2 = arith.constant 0 : i32
    return %c0_i32, %c0_i32_0, %c0_i32_1 : i32, i32, i32
  }
  func.func @transform_16(%arg0: i32) -> (i32, i32, i32) {
    %c0_i32 = arith.constant 0 : i32
    %c0_i32_0 = arith.constant 0 : i32
    %c0_i32_1 = arith.constant 0 : i32
    return %arg0, %c0_i32, %c0_i32_0 : i32, i32, i32
  }
}

</mosaic_0001>

<llo_original>
// kernel: tpu_custom_call.1
$region0: #{tpu_custom_call.1}
  #allocation0 [shape = 'u32[]', space=smem, size = 0x4, offset = 0x4, fixed_abs, tag = 'smem constant byte address 0x4 - core index']
  #allocation1 [shape = 'u32[72,128]{1,0:T(1,128)}', space=vmem, size = 0x9000, scoped, tag = 'internal scratch']
  %s0 = inlined_call_operand.hbm [shape: f32[2,8,16], index: 0, kind: input, shape index: {}]
  %s1 = inlined_call_operand.hbm [shape: f32[16,32], index: 1, kind: input, shape index: {}]
  %s2 = inlined_call_operand.hbm [shape: f32[1,32], index: 2, kind: input, shape index: {}]
  %s3 = inlined_call_operand.hbm [shape: f32[8,32], index: 3, kind: input, shape index: {}]
  %s4 = inlined_call_operand.hbm [shape: f32[3,32,96], index: 4, kind: input, shape index: {}]
  %s5 = inlined_call_operand.vmem [shape: f32[3,1,96], index: 5, kind: input, shape index: {}]
  %s6 = inlined_call_operand.hbm [shape: f32[3,32,32], index: 6, kind: input, shape index: {}]
  %s7 = inlined_call_operand.vmem [shape: f32[3,1,32], index: 7, kind: input, shape index: {}]
  %s8 = inlined_call_operand.hbm [shape: f32[3,1,32], index: 8, kind: input, shape index: {}]
  %s9 = inlined_call_operand.hbm [shape: f32[3,1,32], index: 9, kind: input, shape index: {}]
  %s10 = inlined_call_operand.hbm [shape: f32[3,32,2048], index: 10, kind: input, shape index: {}]
  %s11 = inlined_call_operand.hbm [shape: f32[3,1,2048], index: 11, kind: input, shape index: {}]
  %s12 = inlined_call_operand.hbm [shape: f32[3,32,2048], index: 12, kind: input, shape index: {}]
  %s13 = inlined_call_operand.vmem [shape: f32[3,1,32], index: 13, kind: input, shape index: {}]
  %s14 = inlined_call_operand.vmem [shape: f32[3,1,32], index: 14, kind: input, shape index: {}]
  %s15 = inlined_call_operand.hbm [shape: f32[3,1,32], index: 15, kind: input, shape index: {}]
  %s16 = inlined_call_operand.hbm [shape: f32[2,8,32], index: 16, kind: output, shape index: {}]
  %s17 = sld [smem:[#allocation0]]
  $region145: #{tpu_custom_call.1} parent=0
    _
  %s19 = ssub.s32 1, %s17
  %s20 = scalar_select 0, %s19, %s17
  $region1: #{tpu_custom_call.1} parent=0
    #allocation2 [shape = 'u8[8192]{0}', space=vmem, size = 0x2000, scoped, tag = 'input window, operand 0']
    #allocation3 [shape = 's32[2]{0}', space=sflag, size = 0x8, scoped, tag = 'scoped memory for tpu_custom_call.1']
    #allocation4 [shape = 's32[2]{0}', space=sflag, size = 0x8, scoped, tag = 'scoped memory for tpu_custom_call.1']
    #allocation5 [shape = 'u8[8192]{0}', space=vmem, size = 0x2000, scoped, tag = 'input window, operand 1, single buffered']
    #allocation6 [shape = 's32[1]{0}', space=sflag, size = 0x4, scoped, tag = 'scoped memory for tpu_custom_call.1']
    #allocation7 [shape = 'u8[512]{0}', space=vmem, size = 0x400, scoped, tag = 'input window, operand 2, single buffered']
    #allocation8 [shape = 'u8[4096]{0}', space=vmem, size = 0x1000, scoped, tag = 'input window, operand 3, single buffered']
    #allocation9 [shape = 's32[1]{0}', space=sflag, size = 0x4, scoped, tag = 'scoped memory for tpu_custom_call.1']
    #allocation10 [shape = 'u8[49152]{0}', space=vmem, size = 0xc000, scoped, tag = 'input window, operand 4, single buffered']
    #allocation11 [shape = 'u8[49152]{0}', space=vmem, size = 0xc000, scoped, tag = 'input window, operand 6, single buffered']
    #allocation12 [shape = 's32[1]{0}', space=sflag, size = 0x4, scoped, tag = 'scoped memory for tpu_custom_call.1']
    #allocation13 [shape = 'u8[1536]{0}', space=vmem, size = 0x800, scoped, tag = 'input window, operand 8, single buffered']
    #allocation14 [shape = 'u8[1536]{0}', space=vmem, size = 0x800, scoped, tag = 'input window, operand 9, single buffered']
    #allocation15 [shape = 's32[1]{0}', space=sflag, size = 0x4, scoped, tag = 'scoped memory for tpu_custom_call.1']
    #allocation16 [shape = 'u8[786432]{0}', space=vmem, size = 0xc0000, scoped, tag = 'input window, operand 10, single buffered']
    #allocation17 [shape = 'u8[24576]{0}', space=vmem, size = 0x6000, scoped, tag = 'input window, operand 11, single buffered']
    #allocation18 [shape = 's32[1]{0}', space=sflag, size = 0x4, scoped, tag = 'scoped memory for tpu_custom_call.1']
    #allocation19 [shape = 'u8[786432]{0}', space=vmem, size = 0xc0000, scoped, tag = 'input window, operand 12, single buffered']
    #allocation20 [shape = 'u8[1536]{0}', space=vmem, size = 0x800, scoped, tag = 'input window, operand 15, single buffered']
    #allocation21 [shape = 's32[1]{0}', space=sflag, size = 0x4, scoped, tag = 'scoped memory for tpu_custom_call.1']
    #allocation22 [shape = 'u8[8192]{0}', space=vmem, size = 0x2000, scoped, tag = 'output window, operand 0']
    %21 = vsyncpa [#allocation3], 0
    %s22 = scalar_lea.sflag [#allocation3], 1
    %23 = vsyncpa %s22, 0
    %24 = vsyncpa [#allocation6], 0
    %25 = vsyncpa [#allocation9], 0
    %26 = vsyncpa [#allocation12], 0
    %27 = vsyncpa [#allocation15], 0
    %28 = vsyncpa [#allocation18], 0
    %29 = vsyncpa [#allocation21], 0
    %30 = vsyncpa [#allocation4], 0
    %s31 = scalar_lea.sflag [#allocation4], 1
    %32 = vsyncpa %s31, 0
    loop: start=0, step=1, limit=4
    $region2: #{tpu_custom_call.1} parent=1 // loop_pre_header
      _
    $region3: #{tpu_custom_call.1} parent=1 // loop_header
      %s34 = sphi 0, %s38
      %p35 = scmp.ge.s32.totalorder %s34, 4
      %s44 = sphi 0, %s46
      %s47 = sphi 0, %s44
      %s48 = sphi 0, %s47
      %s64 = sphi 0, %s48
      %s68 = sphi 0, %s68
      %s70 = sphi 0, %s68
      %s71 = sphi 0, %s70
      %s85 = sphi 0, %s71
      %s89 = sphi 0, %s89
      %s91 = sphi 0, %s89
      %s92 = sphi 0, %s91
      %s106 = sphi 0, %s92
      %s110 = sphi 0, %s110
      %s112 = sphi 0, %s110
      %s113 = sphi 0, %s112
      %s127 = sphi 0, %s113
      %s131 = sphi 0, %s131
      %s133 = sphi 0, %s131
      %s134 = sphi 0, %s133
      %s148 = sphi 0, %s134
      %s152 = sphi 0, %s152
      %s154 = sphi 0, %s152
      %s155 = sphi 0, %s154
      %s169 = sphi 0, %s155
      %s173 = sphi 0, %s173
      %s175 = sphi 0, %s173
      %s176 = sphi 0, %s175
      %s190 = sphi 0, %s176
      %s194 = sphi 0, %s194
      %s196 = sphi 0, %s194
      %s197 = sphi 0, %s196
      %s211 = sphi 0, %s197
      %s215 = sphi 0, %s215
      %s217 = sphi 0, %s215
      %s218 = sphi 0, %s217
      %s232 = sphi 0, %s218
      %s236 = sphi 0, %s236
      %s238 = sphi 0, %s236
      %s239 = sphi 0, %s238
      %s253 = sphi 0, %s239
      %s257 = sphi 0, %s257
      %s259 = sphi 0, %s257
      %s260 = sphi 0, %s259
      %s274 = sphi 0, %s260
      %s278 = sphi 0, %s278
      %s280 = sphi 0, %s278
      %s281 = sphi 0, %s280
      %s295 = sphi 0, %s281
      %s299 = sphi 0, %s299
      %s301 = sphi 0, %s299
      %s302 = sphi 0, %s301
      %s316 = sphi 0, %s302
      %s320 = sphi 0, %s320
      %s322 = sphi 0, %s320
      %s323 = sphi 0, %s322
      %s337 = sphi 0, %s323
      %s341 = sphi 0, %s341
      %s343 = sphi 0, %s341
      %s344 = sphi 0, %s343
      %s358 = sphi 0, %s344
      %s362 = sphi 0, %s362
      %s364 = sphi 0, %s362
      %s365 = sphi 0, %s364
      %s379 = sphi 0, %s365
      %s385 = sphi 0, %s387
      %s388 = sphi 0, %s385
      %s389 = sphi 0, %s388
      %s405 = sphi 0, %s389
    $region4: #{tpu_custom_call.1} parent=1 // loop_header_branch
      %37 = sbr.rel (%p35) target = $region8
    $region5: #{tpu_custom_call.1} parent=1 // loop_body
      %s39 = ssub.s32 %s34, 1
      %s40 = ssub.s32 %s34, 2
      %s41 = sadd.s32 %s34, 1
      %s42 = ssub.s32 %s34, %s41
      %p43 = scmp.eq.s32.totalorder %s42, 0
      %s45 = sadd.s32 %s44, 1
      %s46 = scalar_select %p43, %s44, %s45
      %p49 = pneg %p43
      %p50 = scmp.eq.s32.totalorder %s34, 1
      %p51 = por %p49, %p50
      %p52 = scmp.ne.s32.totalorder %s44, %s47
      %p53 = scmp.eq.s32.totalorder %s34, 0
      %p54 = por %p52, %p53
      %p55 = scmp.ne.s32.totalorder %s44, %s47
      %p56 = scmp.eq.s32.totalorder %s39, 1
      %p57 = por %p55, %p56
      %p58 = scmp.ne.s32.totalorder %s47, %s48
      %p59 = scmp.eq.s32.totalorder %s39, 0
      %p60 = por %p58, %p59
      %p61 = scmp.ne.s32.totalorder %s47, %s48
      %p62 = scmp.eq.s32.totalorder %s40, 1
      %p63 = por %p61, %p62
      %p65 = scmp.ne.s32.totalorder %s48, %s64
      %p66 = scmp.eq.s32.totalorder %s40, 0
      %p67 = por %p65, %p66
      %s69 = sadd.s32 %s68, 1
      %p72 = scmp.eq.s32.totalorder %s34, 1
      %p73 = scmp.ne.s32.totalorder %s68, %s70
      %p74 = scmp.eq.s32.totalorder %s34, 0
      %p75 = por %p73, %p74
      %p76 = scmp.ne.s32.totalorder %s68, %s70
      %p77 = scmp.eq.s32.totalorder %s39, 1
      %p78 = por %p76, %p77
      %p79 = scmp.ne.s32.totalorder %s70, %s71
      %p80 = scmp.eq.s32.totalorder %s39, 0
      %p81 = por %p79, %p80
      %p82 = scmp.ne.s32.totalorder %s70, %s71
      %p83 = scmp.eq.s32.totalorder %s40, 1
      %p84 = por %p82, %p83
      %p86 = scmp.ne.s32.totalorder %s71, %s85
      %p87 = scmp.eq.s32.totalorder %s40, 0
      %p88 = por %p86, %p87
      %s90 = sadd.s32 %s89, 1
      %p93 = scmp.eq.s32.totalorder %s34, 1
      %p94 = scmp.ne.s32.totalorder %s89, %s91
      %p95 = scmp.eq.s32.totalorder %s34, 0
      %p96 = por %p94, %p95
      %p97 = scmp.ne.s32.totalorder %s89, %s91
      %p98 = scmp.eq.s32.totalorder %s39, 1
      %p99 = por %p97, %p98
      %p100 = scmp.ne.s32.totalorder %s91, %s92
      %p101 = scmp.eq.s32.totalorder %s39, 0
      %p102 = por %p100, %p101
      %p103 = scmp.ne.s32.totalorder %s91, %s92
      %p104 = scmp.eq.s32.totalorder %s40, 1
      %p105 = por %p103, %p104
      %p107 = scmp.ne.s32.totalorder %s92, %s106
      %p108 = scmp.eq.s32.totalorder %s40, 0
      %p109 = por %p107, %p108
      %s111 = sadd.s32 %s110, 1
      %p114 = scmp.eq.s32.totalorder %s34, 1
      %p115 = scmp.ne.s32.totalorder %s110, %s112
      %p116 = scmp.eq.s32.totalorder %s34, 0
      %p117 = por %p115, %p116
      %p118 = scmp.ne.s32.totalorder %s110, %s112
      %p119 = scmp.eq.s32.totalorder %s39, 1
      %p120 = por %p118, %p119
      %p121 = scmp.ne.s32.totalorder %s112, %s113
      %p122 = scmp.eq.s32.totalorder %s39, 0
      %p123 = por %p121, %p122
      %p124 = scmp.ne.s32.totalorder %s112, %s113
      %p125 = scmp.eq.s32.totalorder %s40, 1
      %p126 = por %p124, %p125
      %p128 = scmp.ne.s32.totalorder %s113, %s127
      %p129 = scmp.eq.s32.totalorder %s40, 0
      %p130 = por %p128, %p129
      %s132 = sadd.s32 %s131, 1
      %p135 = scmp.eq.s32.totalorder %s34, 1
      %p136 = scmp.ne.s32.totalorder %s131, %s133
      %p137 = scmp.eq.s32.totalorder %s34, 0
      %p138 = por %p136, %p137
      %p139 = scmp.ne.s32.totalorder %s131, %s133
      %p140 = scmp.eq.s32.totalorder %s39, 1
      %p141 = por %p139, %p140
      %p142 = scmp.ne.s32.totalorder %s133, %s134
      %p143 = scmp.eq.s32.totalorder %s39, 0
      %p144 = por %p142, %p143
      %p145 = scmp.ne.s32.totalorder %s133, %s134
      %p146 = scmp.eq.s32.totalorder %s40, 1
      %p147 = por %p145, %p146
      %p149 = scmp.ne.s32.totalorder %s134, %s148
      %p150 = scmp.eq.s32.totalorder %s40, 0
      %p151 = por %p149, %p150
      %s153 = sadd.s32 %s152, 1
      %p156 = scmp.eq.s32.totalorder %s34, 1
      %p157 = scmp.ne.s32.totalorder %s152, %s154
      %p158 = scmp.eq.s32.totalorder %s34, 0
      %p159 = por %p157, %p158
      %p160 = scmp.ne.s32.totalorder %s152, %s154
      %p161 = scmp.eq.s32.totalorder %s39, 1
      %p162 = por %p160, %p161
      %p163 = scmp.ne.s32.totalorder %s154, %s155
      %p164 = scmp.eq.s32.totalorder %s39, 0
      %p165 = por %p163, %p164
      %p166 = scmp.ne.s32.totalorder %s154, %s155
      %p167 = scmp.eq.s32.totalorder %s40, 1
      %p168 = por %p166, %p167
      %p170 = scmp.ne.s32.totalorder %s155, %s169
      %p171 = scmp.eq.s32.totalorder %s40, 0
      %p172 = por %p170, %p171
      %s174 = sadd.s32 %s173, 1
      %p177 = scmp.eq.s32.totalorder %s34, 1
      %p178 = scmp.ne.s32.totalorder %s173, %s175
      %p179 = scmp.eq.s32.totalorder %s34, 0
      %p180 = por %p178, %p179
      %p181 = scmp.ne.s32.totalorder %s173, %s175
      %p182 = scmp.eq.s32.totalorder %s39, 1
      %p183 = por %p181, %p182
      %p184 = scmp.ne.s32.totalorder %s175, %s176
      %p185 = scmp.eq.s32.totalorder %s39, 0
      %p186 = por %p184, %p185
      %p187 = scmp.ne.s32.totalorder %s175, %s176
      %p188 = scmp.eq.s32.totalorder %s40, 1
      %p189 = por %p187, %p188
      %p191 = scmp.ne.s32.totalorder %s176, %s190
      %p192 = scmp.eq.s32.totalorder %s40, 0
      %p193 = por %p191, %p192
      %s195 = sadd.s32 %s194, 1
      %p198 = scmp.eq.s32.totalorder %s34, 1
      %p199 = scmp.ne.s32.totalorder %s194, %s196
      %p200 = scmp.eq.s32.totalorder %s34, 0
      %p201 = por %p199, %p200
      %p202 = scmp.ne.s32.totalorder %s194, %s196
      %p203 = scmp.eq.s32.totalorder %s39, 1
      %p204 = por %p202, %p203
      %p205 = scmp.ne.s32.totalorder %s196, %s197
      %p206 = scmp.eq.s32.totalorder %s39, 0
      %p207 = por %p205, %p206
      %p208 = scmp.ne.s32.totalorder %s196, %s197
      %p209 = scmp.eq.s32.totalorder %s40, 1
      %p210 = por %p208, %p209
      %p212 = scmp.ne.s32.totalorder %s197, %s211
      %p213 = scmp.eq.s32.totalorder %s40, 0
      %p214 = por %p212, %p213
      %s216 = sadd.s32 %s215, 1
      %p219 = scmp.eq.s32.totalorder %s34, 1
      %p220 = scmp.ne.s32.totalorder %s215, %s217
      %p221 = scmp.eq.s32.totalorder %s34, 0
      %p222 = por %p220, %p221
      %p223 = scmp.ne.s32.totalorder %s215, %s217
      %p224 = scmp.eq.s32.totalorder %s39, 1
      %p225 = por %p223, %p224
      %p226 = scmp.ne.s32.totalorder %s217, %s218
      %p227 = scmp.eq.s32.totalorder %s39, 0
      %p228 = por %p226, %p227
      %p229 = scmp.ne.s32.totalorder %s217, %s218
      %p230 = scmp.eq.s32.totalorder %s40, 1
      %p231 = por %p229, %p230
      %p233 = scmp.ne.s32.totalorder %s218, %s232
      %p234 = scmp.eq.s32.totalorder %s40, 0
      %p235 = por %p233, %p234
      %s237 = sadd.s32 %s236, 1
      %p240 = scmp.eq.s32.totalorder %s34, 1
      %p241 = scmp.ne.s32.totalorder %s236, %s238
      %p242 = scmp.eq.s32.totalorder %s34, 0
      %p243 = por %p241, %p242
      %p244 = scmp.ne.s32.totalorder %s236, %s238
      %p245 = scmp.eq.s32.totalorder %s39, 1
      %p246 = por %p244, %p245
      %p247 = scmp.ne.s32.totalorder %s238, %s239
      %p248 = scmp.eq.s32.totalorder %s39, 0
      %p249 = por %p247, %p248
      %p250 = scmp.ne.s32.totalorder %s238, %s239
      %p251 = scmp.eq.s32.totalorder %s40, 1
      %p252 = por %p250, %p251
      %p254 = scmp.ne.s32.totalorder %s239, %s253
      %p255 = scmp.eq.s32.totalorder %s40, 0
      %p256 = por %p254, %p255
      %s258 = sadd.s32 %s257, 1
      %p261 = scmp.eq.s32.totalorder %s34, 1
      %p262 = scmp.ne.s32.totalorder %s257, %s259
      %p263 = scmp.eq.s32.totalorder %s34, 0
      %p264 = por %p262, %p263
      %p265 = scmp.ne.s32.totalorder %s257, %s259
      %p266 = scmp.eq.s32.totalorder %s39, 1
      %p267 = por %p265, %p266
      %p268 = scmp.ne.s32.totalorder %s259, %s260
      %p269 = scmp.eq.s32.totalorder %s39, 0
      %p270 = por %p268, %p269
      %p271 = scmp.ne.s32.totalorder %s259, %s260
      %p272 = scmp.eq.s32.totalorder %s40, 1
      %p273 = por %p271, %p272
      %p275 = scmp.ne.s32.totalorder %s260, %s274
      %p276 = scmp.eq.s32.totalorder %s40, 0
      %p277 = por %p275, %p276
      %s279 = sadd.s32 %s278, 1
      %p282 = scmp.eq.s32.totalorder %s34, 1
      %p283 = scmp.ne.s32.totalorder %s278, %s280
      %p284 = scmp.eq.s32.totalorder %s34, 0
      %p285 = por %p283, %p284
      %p286 = scmp.ne.s32.totalorder %s278, %s280
      %p287 = scmp.eq.s32.totalorder %s39, 1
      %p288 = por %p286, %p287
      %p289 = scmp.ne.s32.totalorder %s280, %s281
      %p290 = scmp.eq.s32.totalorder %s39, 0
      %p291 = por %p289, %p290
      %p292 = scmp.ne.s32.totalorder %s280, %s281
      %p293 = scmp.eq.s32.totalorder %s40, 1
      %p294 = por %p292, %p293
      %p296 = scmp.ne.s32.totalorder %s281, %s295
      %p297 = scmp.eq.s32.totalorder %s40, 0
      %p298 = por %p296, %p297
      %s300 = sadd.s32 %s299, 1
      %p303 = scmp.eq.s32.totalorder %s34, 1
      %p304 = scmp.ne.s32.totalorder %s299, %s301
      %p305 = scmp.eq.s32.totalorder %s34, 0
      %p306 = por %p304, %p305
      %p307 = scmp.ne.s32.totalorder %s299, %s301
      %p308 = scmp.eq.s32.totalorder %s39, 1
      %p309 = por %p307, %p308
      %p310 = scmp.ne.s32.totalorder %s301, %s302
      %p311 = scmp.eq.s32.totalorder %s39, 0
      %p312 = por %p310, %p311
      %p313 = scmp.ne.s32.totalorder %s301, %s302
      %p314 = scmp.eq.s32.totalorder %s40, 1
      %p315 = por %p313, %p314
      %p317 = scmp.ne.s32.totalorder %s302, %s316
      %p318 = scmp.eq.s32.totalorder %s40, 0
      %p319 = por %p317, %p318
      %s321 = sadd.s32 %s320, 1
      %p324 = scmp.eq.s32.totalorder %s34, 1
      %p325 = scmp.ne.s32.totalorder %s320, %s322
      %p326 = scmp.eq.s32.totalorder %s34, 0
      %p327 = por %p325, %p326
      %p328 = scmp.ne.s32.totalorder %s320, %s322
      %p329 = scmp.eq.s32.totalorder %s39, 1
      %p330 = por %p328, %p329
      %p331 = scmp.ne.s32.totalorder %s322, %s323
      %p332 = scmp.eq.s32.totalorder %s39, 0
      %p333 = por %p331, %p332
      %p334 = scmp.ne.s32.totalorder %s322, %s323
      %p335 = scmp.eq.s32.totalorder %s40, 1
      %p336 = por %p334, %p335
      %p338 = scmp.ne.s32.totalorder %s323, %s337
      %p339 = scmp.eq.s32.totalorder %s40, 0
      %p340 = por %p338, %p339
      %s342 = sadd.s32 %s341, 1
      %p345 = scmp.eq.s32.totalorder %s34, 1
      %p346 = scmp.ne.s32.totalorder %s341, %s343
      %p347 = scmp.eq.s32.totalorder %s34, 0
      %p348 = por %p346, %p347
      %p349 = scmp.ne.s32.totalorder %s341, %s343
      %p350 = scmp.eq.s32.totalorder %s39, 1
      %p351 = por %p349, %p350
      %p352 = scmp.ne.s32.totalorder %s343, %s344
      %p353 = scmp.eq.s32.totalorder %s39, 0
      %p354 = por %p352, %p353
      %p355 = scmp.ne.s32.totalorder %s343, %s344
      %p356 = scmp.eq.s32.totalorder %s40, 1
      %p357 = por %p355, %p356
      %p359 = scmp.ne.s32.totalorder %s344, %s358
      %p360 = scmp.eq.s32.totalorder %s40, 0
      %p361 = por %p359, %p360
      %s363 = sadd.s32 %s362, 1
      %p366 = scmp.eq.s32.totalorder %s34, 1
      %p367 = scmp.ne.s32.totalorder %s362, %s364
      %p368 = scmp.eq.s32.totalorder %s34, 0
      %p369 = por %p367, %p368
      %p370 = scmp.ne.s32.totalorder %s362, %s364
      %p371 = scmp.eq.s32.totalorder %s39, 1
      %p372 = por %p370, %p371
      %p373 = scmp.ne.s32.totalorder %s364, %s365
      %p374 = scmp.eq.s32.totalorder %s39, 0
      %p375 = por %p373, %p374
      %p376 = scmp.ne.s32.totalorder %s364, %s365
      %p377 = scmp.eq.s32.totalorder %s40, 1
      %p378 = por %p376, %p377
      %p380 = scmp.ne.s32.totalorder %s365, %s379
      %p381 = scmp.eq.s32.totalorder %s40, 0
      %p382 = por %p380, %p381
      %s383 = ssub.s32 %s34, %s41
      %p384 = scmp.eq.s32.totalorder %s383, 0
      %s386 = sadd.s32 %s385, 1
      %s387 = scalar_select %p384, %s385, %s386
      %p390 = pneg %p384
      %p391 = scmp.eq.s32.totalorder %s34, 1
      %p392 = por %p390, %p391
      %p393 = scmp.ne.s32.totalorder %s385, %s388
      %p394 = scmp.eq.s32.totalorder %s34, 0
      %p395 = por %p393, %p394
      %p396 = scmp.ne.s32.totalorder %s385, %s388
      %p397 = scmp.eq.s32.totalorder %s39, 1
      %p398 = por %p396, %p397
      %p399 = scmp.ne.s32.totalorder %s388, %s389
      %p400 = scmp.eq.s32.totalorder %s39, 0
      %p401 = por %p399, %p400
      %p402 = scmp.ne.s32.totalorder %s388, %s389
      %p403 = scmp.eq.s32.totalorder %s40, 1
      %p404 = por %p402, %p403
      %p406 = scmp.ne.s32.totalorder %s389, %s405
      %p407 = scmp.eq.s32.totalorder %s40, 0
      %p408 = por %p406, %p407
      %p409 = scmp.le.s32.totalorder 1, %s34
      %p410 = scmp.lt.s32.totalorder %s34, 3
      %p411 = pnand %p409, %p410
      %p412 = pneg %p411
      // Predicated region
      $region9: #{tpu_custom_call.1} parent=5 // pred_check
        _
      $region10: #{tpu_custom_call.1} parent=5 // pred_check_branch
        %414 = sbr.rel (%p411) target = $region12
      $region11: #{tpu_custom_call.1} parent=5 // pred_region
        %s415 = ssub.s32 %s34, 1
        // Predicated region
        $region13: #{tpu_custom_call.1} parent=11 // pred_check
          %p416 = pneg %p81
        $region14: #{tpu_custom_call.1} parent=11 // pred_check_branch
          %418 = sbr.rel (%p416) target = $region16
        $region15: #{tpu_custom_call.1} parent=11 // pred_region
          %420 = vsyncadd [#allocation6], 0
          %s421 = sshll.u32 %s1, 4
          %s422 = int_to_ptr.hbm [resolvable:$true] %s421
          %s423 = sshll.u32 [#allocation5], 4
          %s424 = int_to_ptr.vmem [resolvable:$true] %s423
          %429 = dma.hbm_to_vmem [thread:$0]  %s422, 256, %s424, [#allocation6], 128, 128, 8
        $region16: #{tpu_custom_call.1} parent=11 // pred_fallthru
          _
        // Predicated region
        $region17: #{tpu_custom_call.1} parent=11 // pred_check
          %p430 = pneg %p102
        $region18: #{tpu_custom_call.1} parent=11 // pred_check_branch
          %432 = sbr.rel (%p430) target = $region20
        $region19: #{tpu_custom_call.1} parent=11 // pred_region
          %434 = vsyncadd [#allocation6], 0
          %s436 = sshll.u32 %s2, 4
          %s437 = int_to_ptr.hbm [resolvable:$true] %s436
          %s438 = sshll.u32 [#allocation7], 4
          %s439 = int_to_ptr.vmem [resolvable:$true] %s438
          %441 = dma.hbm_to_vmem [thread:$0]  %s437, 16, %s439, [#allocation6]
        $region20: #{tpu_custom_call.1} parent=11 // pred_fallthru
          _
        // Predicated region
        $region21: #{tpu_custom_call.1} parent=11 // pred_check
          %p442 = pneg %p123
        $region22: #{tpu_custom_call.1} parent=11 // pred_check_branch
          %444 = sbr.rel (%p442) target = $region24
        $region23: #{tpu_custom_call.1} parent=11 // pred_region
          %446 = vsyncadd [#allocation9], 0
          %s448 = sshll.u32 %s3, 4
          %s449 = int_to_ptr.hbm [resolvable:$true] %s448
          %s450 = sshll.u32 [#allocation8], 4
          %s451 = int_to_ptr.vmem [resolvable:$true] %s450
          %453 = dma.hbm_to_vmem [thread:$0]  %s449, 128, %s451, [#allocation9]
        $region24: #{tpu_custom_call.1} parent=11 // pred_fallthru
          _
        // Predicated region
        $region25: #{tpu_custom_call.1} parent=11 // pred_check
          %p454 = pneg %p144
        $region26: #{tpu_custom_call.1} parent=11 // pred_check_branch
          %456 = sbr.rel (%p454) target = $region28
        $region27: #{tpu_custom_call.1} parent=11 // pred_region
          %458 = vsyncadd [#allocation9], 0
          %s459 = sshll.u32 %s4, 4
          %s460 = int_to_ptr.hbm [resolvable:$true] %s459
          %s461 = sshll.u32 [#allocation10], 4
          %s462 = int_to_ptr.vmem [resolvable:$true] %s461
          %467 = dma.hbm_to_vmem [thread:$0]  %s460, 1536, %s462, [#allocation9], 128, 128, 8
        $region28: #{tpu_custom_call.1} parent=11 // pred_fallthru
          _
        // Predicated region
        $region29: #{tpu_custom_call.1} parent=11 // pred_check
          %p468 = pneg %p165
        $region30: #{tpu_custom_call.1} parent=11 // pred_check_branch
          %470 = sbr.rel (%p468) target = $region32
        $region31: #{tpu_custom_call.1} parent=11 // pred_region
          _
        $region32: #{tpu_custom_call.1} parent=11 // pred_fallthru
          _
        // Predicated region
        $region33: #{tpu_custom_call.1} parent=11 // pred_check
          %p471 = pneg %p186
        $region34: #{tpu_custom_call.1} parent=11 // pred_check_branch
          %473 = sbr.rel (%p471) target = $region36
        $region35: #{tpu_custom_call.1} parent=11 // pred_region
          %475 = vsyncadd [#allocation12], 0
          %s476 = sshll.u32 %s6, 4
          %s477 = int_to_ptr.hbm [resolvable:$true] %s476
          %s478 = sshll.u32 [#allocation11], 4
          %s479 = int_to_ptr.vmem [resolvable:$true] %s478
          %484 = dma.hbm_to_vmem [thread:$0]  %s477, 1536, %s479, [#allocation12], 128, 128, 8
        $region36: #{tpu_custom_call.1} parent=11 // pred_fallthru
          _
        // Predicated region
        $region37: #{tpu_custom_call.1} parent=11 // pred_check
          %p485 = pneg %p207
        $region38: #{tpu_custom_call.1} parent=11 // pred_check_branch
          %487 = sbr.rel (%p485) target = $region40
        $region39: #{tpu_custom_call.1} parent=11 // pred_region
          _
        $region40: #{tpu_custom_call.1} parent=11 // pred_fallthru
          _
        // Predicated region
        $region41: #{tpu_custom_call.1} parent=11 // pred_check
          %p488 = pneg %p228
        $region42: #{tpu_custom_call.1} parent=11 // pred_check_branch
          %490 = sbr.rel (%p488) target = $region44
        $region43: #{tpu_custom_call.1} parent=11 // pred_region
          %492 = vsyncadd [#allocation12], 0
          %s493 = sshll.u32 %s8, 4
          %s494 = int_to_ptr.hbm [resolvable:$true] %s493
          %s495 = sshll.u32 [#allocation13], 4
          %s496 = int_to_ptr.vmem [resolvable:$true] %s495
          %501 = dma.hbm_to_vmem [thread:$0]  %s494, 48, %s496, [#allocation12], 16, 16, 1
        $region44: #{tpu_custom_call.1} parent=11 // pred_fallthru
          _
        // Predicated region
        $region45: #{tpu_custom_call.1} parent=11 // pred_check
          %p502 = pneg %p249
        $region46: #{tpu_custom_call.1} parent=11 // pred_check_branch
          %504 = sbr.rel (%p502) target = $region48
        $region47: #{tpu_custom_call.1} parent=11 // pred_region
          %506 = vsyncadd [#allocation15], 0
          %s507 = sshll.u32 %s9, 4
          %s508 = int_to_ptr.hbm [resolvable:$true] %s507
          %s509 = sshll.u32 [#allocation14], 4
          %s510 = int_to_ptr.vmem [resolvable:$true] %s509
          %515 = dma.hbm_to_vmem [thread:$0]  %s508, 48, %s510, [#allocation15], 16, 16, 1
        $region48: #{tpu_custom_call.1} parent=11 // pred_fallthru
          _
        // Predicated region
        $region49: #{tpu_custom_call.1} parent=11 // pred_check
          %p516 = pneg %p270
        $region50: #{tpu_custom_call.1} parent=11 // pred_check_branch
          %518 = sbr.rel (%p516) target = $region52
        $region51: #{tpu_custom_call.1} parent=11 // pred_region
          %520 = vsyncadd [#allocation15], 0
          %s521 = sshll.u32 %s10, 4
          %s522 = int_to_ptr.hbm [resolvable:$true] %s521
          %s523 = sshll.u32 [#allocation16], 4
          %s524 = int_to_ptr.vmem [resolvable:$true] %s523
          %529 = dma.hbm_to_vmem [thread:$0]  %s522, 24576, %s524, [#allocation15], 2048, 2048, 128
        $region52: #{tpu_custom_call.1} parent=11 // pred_fallthru
          _
        // Predicated region
        $region53: #{tpu_custom_call.1} parent=11 // pred_check
          %p530 = pneg %p291
        $region54: #{tpu_custom_call.1} parent=11 // pred_check_branch
          %532 = sbr.rel (%p530) target = $region56
        $region55: #{tpu_custom_call.1} parent=11 // pred_region
          %534 = vsyncadd [#allocation18], 0
          %s535 = sshll.u32 %s11, 4
          %s536 = int_to_ptr.hbm [resolvable:$true] %s535
          %s537 = sshll.u32 [#allocation17], 4
          %s538 = int_to_ptr.vmem [resolvable:$true] %s537
          %543 = dma.hbm_to_vmem [thread:$0]  %s536, 768, %s538, [#allocation18], 256, 256, 16
        $region56: #{tpu_custom_call.1} parent=11 // pred_fallthru
          _
        // Predicated region
        $region57: #{tpu_custom_call.1} parent=11 // pred_check
          %p544 = pneg %p312
        $region58: #{tpu_custom_call.1} parent=11 // pred_check_branch
          %546 = sbr.rel (%p544) target = $region60
        $region59: #{tpu_custom_call.1} parent=11 // pred_region
          %548 = vsyncadd [#allocation18], 0
          %s549 = sshll.u32 %s12, 4
          %s550 = int_to_ptr.hbm [resolvable:$true] %s549
          %s551 = sshll.u32 [#allocation19], 4
          %s552 = int_to_ptr.vmem [resolvable:$true] %s551
          %557 = dma.hbm_to_vmem [thread:$0]  %s550, 24576, %s552, [#allocation18], 2048, 2048, 128
        $region60: #{tpu_custom_call.1} parent=11 // pred_fallthru
          _
        // Predicated region
        $region61: #{tpu_custom_call.1} parent=11 // pred_check
          %p558 = pneg %p333
        $region62: #{tpu_custom_call.1} parent=11 // pred_check_branch
          %560 = sbr.rel (%p558) target = $region64
        $region63: #{tpu_custom_call.1} parent=11 // pred_region
          _
        $region64: #{tpu_custom_call.1} parent=11 // pred_fallthru
          _
        // Predicated region
        $region65: #{tpu_custom_call.1} parent=11 // pred_check
          %p561 = pneg %p354
        $region66: #{tpu_custom_call.1} parent=11 // pred_check_branch
          %563 = sbr.rel (%p561) target = $region68
        $region67: #{tpu_custom_call.1} parent=11 // pred_region
          _
        $region68: #{tpu_custom_call.1} parent=11 // pred_fallthru
          _
        // Predicated region
        $region69: #{tpu_custom_call.1} parent=11 // pred_check
          %p564 = pneg %p375
        $region70: #{tpu_custom_call.1} parent=11 // pred_check_branch
          %566 = sbr.rel (%p564) target = $region72
        $region71: #{tpu_custom_call.1} parent=11 // pred_region
          %568 = vsyncadd [#allocation21], 0
          %s569 = sshll.u32 %s15, 4
          %s570 = int_to_ptr.hbm [resolvable:$true] %s569
          %s571 = sshll.u32 [#allocation20], 4
          %s572 = int_to_ptr.vmem [resolvable:$true] %s571
          %577 = dma.hbm_to_vmem [thread:$0]  %s570, 48, %s572, [#allocation21], 16, 16, 1
        $region72: #{tpu_custom_call.1} parent=11 // pred_fallthru
          _
      $region12: #{tpu_custom_call.1} parent=5 // pred_fallthru
        _
      %p578 = scmp.lt.s32.totalorder %s34, 2
      // Predicated region
      $region73: #{tpu_custom_call.1} parent=5 // pred_check
        %p579 = pneg %p578
      $region74: #{tpu_custom_call.1} parent=5 // pred_check_branch
        %581 = sbr.rel (%p579) target = $region76
      $region75: #{tpu_custom_call.1} parent=5 // pred_region
        // Predicated region
        $region77: #{tpu_custom_call.1} parent=75 // pred_check
          %p582 = pneg %p54
        $region78: #{tpu_custom_call.1} parent=75 // pred_check_branch
          %584 = sbr.rel (%p582) target = $region80
        $region79: #{tpu_custom_call.1} parent=75 // pred_region
          %s585 = sand.u32 %s44, 1
          %s586 = scalar_lea.sflag [#allocation3], %s585
          %s587 = sand.u32 %s44, 1
          %s588 = smul.addr %s587, 8
          %s589 = scalar_lea.vmem [#allocation2], %s588
          %591 = vsyncadd %s586, 0
          %s592 = smul.addr %s34, 8
          %s593 = scalar_lea.hbm %s0, %s592
          %s595 = sshll.u32 %s593, 4
          %s596 = int_to_ptr.hbm [resolvable:$true] %s595
          %s597 = sshll.u32 %s589, 4
          %s598 = int_to_ptr.vmem [resolvable:$true] %s597
          %600 = dma.hbm_to_vmem [thread:$0]  %s596, 128, %s598, %s586
        $region80: #{tpu_custom_call.1} parent=75 // pred_fallthru
          _
      $region76: #{tpu_custom_call.1} parent=5 // pred_fallthru
        _
      %p601 = scmp.le.s32.totalorder 1, %s34
      %p602 = scmp.lt.s32.totalorder %s34, 3
      %p603 = pnand %p601, %p602
      %p604 = pneg %p603
      // Predicated region
      $region81: #{tpu_custom_call.1} parent=5 // pred_check
        _
      $region82: #{tpu_custom_call.1} parent=5 // pred_check_branch
        %606 = sbr.rel (%p603) target = $region84
      $region83: #{tpu_custom_call.1} parent=5 // pred_region
        %s607 = ssub.s32 %s34, 1
        %s608 = sand.u32 %s47, 1
        %s609 = scalar_lea.sflag [#allocation3], %s608
        %s610 = sand.u32 %s47, 1
        %s611 = smul.addr %s610, 8
        %s612 = scalar_lea.vmem [#allocation2], %s611
        // Predicated region
        $region85: #{tpu_custom_call.1} parent=83 // pred_check
          %p613 = pneg %p60
        $region86: #{tpu_custom_call.1} parent=83 // pred_check_branch
          %615 = sbr.rel (%p613) target = $region88
        $region87: #{tpu_custom_call.1} parent=83 // pred_region
          %617 = dma.done %s609, 128
        $region88: #{tpu_custom_call.1} parent=83 // pred_fallthru
          _
        // Predicated region
        $region89: #{tpu_custom_call.1} parent=83 // pred_check
          %p618 = pneg %p81
        $region90: #{tpu_custom_call.1} parent=83 // pred_check_branch
          %620 = sbr.rel (%p618) target = $region92
        $region91: #{tpu_custom_call.1} parent=83 // pred_region
          %622 = dma.done [#allocation6], 256
        $region92: #{tpu_custom_call.1} parent=83 // pred_fallthru
          _
        // Predicated region
        $region93: #{tpu_custom_call.1} parent=83 // pred_check
          %p623 = pneg %p102
        $region94: #{tpu_custom_call.1} parent=83 // pred_check_branch
          %625 = sbr.rel (%p623) target = $region96
        $region95: #{tpu_custom_call.1} parent=83 // pred_region
          %627 = dma.done [#allocation6], 16
        $region96: #{tpu_custom_call.1} parent=83 // pred_fallthru
          _
        // Predicated region
        $region97: #{tpu_custom_call.1} parent=83 // pred_check
          %p628 = pneg %p123
        $region98: #{tpu_custom_call.1} parent=83 // pred_check_branch
          %630 = sbr.rel (%p628) target = $region100
        $region99: #{tpu_custom_call.1} parent=83 // pred_region
          %632 = dma.done [#allocation9], 128
        $region100: #{tpu_custom_call.1} parent=83 // pred_fallthru
          _
        // Predicated region
        $region101: #{tpu_custom_call.1} parent=83 // pred_check
          %p633 = pneg %p144
        $region102: #{tpu_custom_call.1} parent=83 // pred_check_branch
          %635 = sbr.rel (%p633) target = $region104
        $region103: #{tpu_custom_call.1} parent=83 // pred_region
          %637 = dma.done [#allocation9], 1536
        $region104: #{tpu_custom_call.1} parent=83 // pred_fallthru
          _
        // Predicated region
        $region105: #{tpu_custom_call.1} parent=83 // pred_check
          %p638 = pneg %p186
        $region106: #{tpu_custom_call.1} parent=83 // pred_check_branch
          %640 = sbr.rel (%p638) target = $region108
        $region107: #{tpu_custom_call.1} parent=83 // pred_region
          %642 = dma.done [#allocation12], 1536
        $region108: #{tpu_custom_call.1} parent=83 // pred_fallthru
          _
        // Predicated region
        $region109: #{tpu_custom_call.1} parent=83 // pred_check
          %p643 = pneg %p228
        $region110: #{tpu_custom_call.1} parent=83 // pred_check_branch
          %645 = sbr.rel (%p643) target = $region112
        $region111: #{tpu_custom_call.1} parent=83 // pred_region
          %647 = dma.done [#allocation12], 48
        $region112: #{tpu_custom_call.1} parent=83 // pred_fallthru
          _
        // Predicated region
        $region113: #{tpu_custom_call.1} parent=83 // pred_check
          %p648 = pneg %p249
        $region114: #{tpu_custom_call.1} parent=83 // pred_check_branch
          %650 = sbr.rel (%p648) target = $region116
        $region115: #{tpu_custom_call.1} parent=83 // pred_region
          %652 = dma.done [#allocation15], 48
        $region116: #{tpu_custom_call.1} parent=83 // pred_fallthru
          _
        // Predicated region
        $region117: #{tpu_custom_call.1} parent=83 // pred_check
          %p653 = pneg %p270
        $region118: #{tpu_custom_call.1} parent=83 // pred_check_branch
          %655 = sbr.rel (%p653) target = $region120
        $region119: #{tpu_custom_call.1} parent=83 // pred_region
          %657 = dma.done [#allocation15], 24576
        $region120: #{tpu_custom_call.1} parent=83 // pred_fallthru
          _
        // Predicated region
        $region121: #{tpu_custom_call.1} parent=83 // pred_check
          %p658 = pneg %p291
        $region122: #{tpu_custom_call.1} parent=83 // pred_check_branch
          %660 = sbr.rel (%p658) target = $region124
        $region123: #{tpu_custom_call.1} parent=83 // pred_region
          %662 = dma.done [#allocation18], 768
        $region124: #{tpu_custom_call.1} parent=83 // pred_fallthru
          _
        // Predicated region
        $region125: #{tpu_custom_call.1} parent=83 // pred_check
          %p663 = pneg %p312
        $region126: #{tpu_custom_call.1} parent=83 // pred_check_branch
          %665 = sbr.rel (%p663) target = $region128
        $region127: #{tpu_custom_call.1} parent=83 // pred_region
          %667 = dma.done [#allocation18], 24576
        $region128: #{tpu_custom_call.1} parent=83 // pred_fallthru
          _
        // Predicated region
        $region129: #{tpu_custom_call.1} parent=83 // pred_check
          %p668 = pneg %p375
        $region130: #{tpu_custom_call.1} parent=83 // pred_check_branch
          %670 = sbr.rel (%p668) target = $region132
        $region131: #{tpu_custom_call.1} parent=83 // pred_region
          %672 = dma.done [#allocation21], 48
        $region132: #{tpu_custom_call.1} parent=83 // pred_fallthru
          _
        %s673 = sand.u32 %s47, 1
        %s674 = scalar_lea.sflag [#allocation3], %s673
        %s675 = sand.u32 %s47, 1
        %s676 = smul.addr %s675, 8
        %s677 = scalar_lea.vmem [#allocation2], %s676
        %p678 = pneg %p60
        %p679 = pneg %p57
        %p680 = pneg %p81
        %p681 = pneg %p78
        %p682 = pneg %p102
        %p683 = pneg %p99
        %p684 = pneg %p123
        %p685 = pneg %p120
        %p686 = pneg %p144
        %p687 = pneg %p141
        %p688 = pneg %p165
        %p689 = pneg %p162
        %p690 = pneg %p186
        %p691 = pneg %p183
        %p692 = pneg %p207
        %p693 = pneg %p204
        %p694 = pneg %p228
        %p695 = pneg %p225
        %p696 = pneg %p249
        %p697 = pneg %p246
        %p698 = pneg %p270
        %p699 = pneg %p267
        %p700 = pneg %p291
        %p701 = pneg %p288
        %p702 = pneg %p312
        %p703 = pneg %p309
        %p704 = pneg %p333
        %p705 = pneg %p330
        %p706 = pneg %p354
        %p707 = pneg %p351
        %p708 = pneg %p375
        %p709 = pneg %p372
        %p710 = pneg %p401
        %p711 = pneg %p398
        %s712 = sand.u32 %s388, 1
        %s713 = scalar_lea.sflag [#allocation4], %s712
        %s714 = sand.u32 %s388, 1
        %s715 = smul.addr %s714, 8
        %s716 = scalar_lea.vmem [#allocation22], %s715
        %v717 = vld [vmem:[%s612] sm:$0xff]
        %v718 = vld [vmem:[#allocation5] sm:$0xff]
        %v719 = vld [vmem:[#allocation5 + $0x8] sm:$0xff]
        %v720 = vld [vmem:[#allocation7] sm:$0x1]
        %v722 = vperm.slane %v720, 0
        %vm724 = vcmask 130048
        %v726 = vsel %vm724, %v717, 0
        %728 = vmatpush.msra.mxu0 0.0
        %729 = vmatpush.msra.mxu0 0.0
        %730 = vmatpush.msra.mxu0 0.0
        %731 = vmatpush.msra.mxu0 0.0
        %732 = vmatpush.msra.mxu0 0.0
        %733 = vmatpush.msra.mxu0 0.0
        %734 = vmatpush.msra.mxu0 0.0
        %735 = vmatpush.msra.mxu0 0.0
        %736 = vmatpush.msra.mxu0 0.0
        %737 = vmatpush.msra.mxu0 0.0
        %738 = vmatpush.msra.mxu0 0.0
        %739 = vmatpush.msra.mxu0 0.0
        %740 = vmatpush.msra.mxu0 0.0
        %741 = vmatpush.msra.mxu0 0.0
        %742 = vmatpush.msra.mxu0 %v719
        %743 = vmatpush.msra.mxu0 %v718
        %744 = vmatmul.f32.gmra.mxu0 %v726
        %v745 = vpop.f32.mrf.mxu0
        %v746 = vadd.f32 %v722, %v745
        %747 = vdwg.mxu0
        %v748 = vld [vmem:[#allocation8] sm:$0xff]
        %v749 = vadd.f32 %v746, %v748
        %v750 = vld [vmem:[#allocation10] sm:$0xff]
        %v751 = vld [vmem:[#allocation10 + $0x8] sm:$0xff]
        %v752 = vld [vmem:[#allocation10 + $0x10] sm:$0xff]
        %v753 = vld [vmem:[#allocation10 + $0x18] sm:$0xff]
        %v754 = vld [vmem:[%s5] sm:$0x1]
        %v756 = vperm.slane %v754, 0
        %vm758 = vcmask 261120
        %v760 = vsel %vm758, %v749, 0
        %762 = vmatpush.msra.mxu0 0.0
        %763 = vmatpush.msra.mxu0 0.0
        %764 = vmatpush.msra.mxu0 0.0
        %765 = vmatpush.msra.mxu0 0.0
        %766 = vmatpush.msra.mxu0 0.0
        %767 = vmatpush.msra.mxu0 0.0
        %768 = vmatpush.msra.mxu0 0.0
        %769 = vmatpush.msra.mxu0 0.0
        %770 = vmatpush.msra.mxu0 0.0
        %771 = vmatpush.msra.mxu0 0.0
        %772 = vmatpush.msra.mxu0 0.0
        %773 = vmatpush.msra.mxu0 0.0
        %774 = vmatpush.msra.mxu0 %v753
        %775 = vmatpush.msra.mxu0 %v752
        %776 = vmatpush.msra.mxu0 %v751
        %777 = vmatpush.msra.mxu0 %v750
        %778 = vmatmul.f32.gmra.mxu0 %v760
        %v779 = vpop.f32.mrf.mxu0
        %v780 = vadd.f32 %v756, %v779
        %781 = vdwg.mxu0
        %783 = vrot.lane.b32.xlu0 %v780, 120
        %v784 = vpop.permute.xlu0 %783
        %785 = vrot.lane.b32.xlu0 %v780, 112
        %v786 = vpop.permute.xlu0 %785
        %787 = vrot.lane.b32.xlu0 %v780, 104
        %v788 = vpop.permute.xlu0 %787
        %789 = vrot.lane.b32.xlu0 %v780, 96
        %v790 = vpop.permute.xlu0 %789
        %vm791 = vcmask 64512
        %v792 = vsel %vm791, %v780, 0
        %v794 = vsel %vm791, %v790, 0
        %796 = vmatpush.xpose.msra.mxu0 0.0
        %797 = vmatpush.xpose.msra.mxu0 0.0
        %798 = vmatpush.xpose.msra.mxu0 0.0
        %799 = vmatpush.xpose.msra.mxu0 0.0
        %800 = vmatpush.xpose.msra.mxu0 0.0
        %801 = vmatpush.xpose.msra.mxu0 0.0
        %802 = vmatpush.xpose.msra.mxu0 0.0
        %803 = vmatpush.xpose.msra.mxu0 0.0
        %804 = vmatpush.xpose.msra.mxu0 0.0
        %805 = vmatpush.xpose.msra.mxu0 0.0
        %806 = vmatpush.xpose.msra.mxu0 0.0
        %807 = vmatpush.xpose.msra.mxu0 0.0
        %808 = vmatpush.xpose.msra.mxu0 0.0
        %809 = vmatpush.xpose.msra.mxu0 0.0
        %810 = vmatpush.xpose.msra.mxu0 0.0
        %811 = vmatpush.xpose.msra.mxu0 %v794
        %812 = vmatmul.f32.gmra.mxu0 %v792
        %v813 = vpop.f32.mrf.mxu0
        %v814 = vadd.f32 0.0, %v813
        %815 = vdwg.mxu0
        %816 = vrot.lane.b32.xlu0 %v784, 96
        %v817 = vpop.permute.xlu0 %816
        %v818 = vsel %vm791, %v784, 0
        %v820 = vsel %vm791, %v817, 0
        %822 = vmatpush.xpose.msra.mxu0 0.0
        %823 = vmatpush.xpose.msra.mxu0 0.0
        %824 = vmatpush.xpose.msra.mxu0 0.0
        %825 = vmatpush.xpose.msra.mxu0 0.0
        %826 = vmatpush.xpose.msra.mxu0 0.0
        %827 = vmatpush.xpose.msra.mxu0 0.0
        %828 = vmatpush.xpose.msra.mxu0 0.0
        %829 = vmatpush.xpose.msra.mxu0 0.0
        %830 = vmatpush.xpose.msra.mxu0 0.0
        %831 = vmatpush.xpose.msra.mxu0 0.0
        %832 = vmatpush.xpose.msra.mxu0 0.0
        %833 = vmatpush.xpose.msra.mxu0 0.0
        %834 = vmatpush.xpose.msra.mxu0 0.0
        %835 = vmatpush.xpose.msra.mxu0 0.0
        %836 = vmatpush.xpose.msra.mxu0 0.0
        %837 = vmatpush.xpose.msra.mxu0 %v820
        %838 = vmatmul.f32.gmra.mxu0 %v818
        %v839 = vpop.f32.mrf.mxu0
        %v840 = vadd.f32 0.0, %v839
        %841 = vdwg.mxu0
        %842 = vrot.lane.b32.xlu0 %v786, 96
        %v843 = vpop.permute.xlu0 %842
        %v844 = vsel %vm791, %v786, 0
        %v846 = vsel %vm791, %v843, 0
        %848 = vmatpush.xpose.msra.mxu0 0.0
        %849 = vmatpush.xpose.msra.mxu0 0.0
        %850 = vmatpush.xpose.msra.mxu0 0.0
        %851 = vmatpush.xpose.msra.mxu0 0.0
        %852 = vmatpush.xpose.msra.mxu0 0.0
        %853 = vmatpush.xpose.msra.mxu0 0.0
        %854 = vmatpush.xpose.msra.mxu0 0.0
        %855 = vmatpush.xpose.msra.mxu0 0.0
        %856 = vmatpush.xpose.msra.mxu0 0.0
        %857 = vmatpush.xpose.msra.mxu0 0.0
        %858 = vmatpush.xpose.msra.mxu0 0.0
        %859 = vmatpush.xpose.msra.mxu0 0.0
        %860 = vmatpush.xpose.msra.mxu0 0.0
        %861 = vmatpush.xpose.msra.mxu0 0.0
        %862 = vmatpush.xpose.msra.mxu0 0.0
        %863 = vmatpush.xpose.msra.mxu0 %v846
        %864 = vmatmul.f32.gmra.mxu0 %v844
        %v865 = vpop.f32.mrf.mxu0
        %v866 = vadd.f32 0.0, %v865
        %867 = vdwg.mxu0
        %868 = vrot.lane.b32.xlu0 %v788, 96
        %v869 = vpop.permute.xlu0 %868
        %v870 = vsel %vm791, %v788, 0
        %v872 = vsel %vm791, %v869, 0
        %874 = vmatpush.xpose.msra.mxu0 0.0
        %875 = vmatpush.xpose.msra.mxu0 0.0
        %876 = vmatpush.xpose.msra.mxu0 0.0
        %877 = vmatpush.xpose.msra.mxu0 0.0
        %878 = vmatpush.xpose.msra.mxu0 0.0
        %879 = vmatpush.xpose.msra.mxu0 0.0
        %880 = vmatpush.xpose.msra.mxu0 0.0
        %881 = vmatpush.xpose.msra.mxu0 0.0
        %882 = vmatpush.xpose.msra.mxu0 0.0
        %883 = vmatpush.xpose.msra.mxu0 0.0
        %884 = vmatpush.xpose.msra.mxu0 0.0
        %885 = vmatpush.xpose.msra.mxu0 0.0
        %886 = vmatpush.xpose.msra.mxu0 0.0
        %887 = vmatpush.xpose.msra.mxu0 0.0
        %888 = vmatpush.xpose.msra.mxu0 0.0
        %889 = vmatpush.xpose.msra.mxu0 %v872
        %890 = vmatmul.f32.gmra.mxu0 %v870
        %v891 = vpop.f32.mrf.mxu0
        %v892 = vadd.f32 0.0, %v891
        %893 = vdwg.mxu0
        %v894 = vmul.f32 %v814, 0.35355338
        %v895 = vmul.f32 %v840, 0.35355338
        %v896 = vmul.f32 %v866, 0.35355338
        %v897 = vmul.f32 %v892, 0.35355338
        %v898 = vsel %vm791, %v894, -inf
        %899 = vmax.xlane.f32.xlu0 %v898
        %v900 = vpop.xlane.xlu0 %899
        %v901 = vsel %vm791, %v895, -inf
        %902 = vmax.xlane.f32.xlu0 %v901
        %v903 = vpop.xlane.xlu0 %902
        %v904 = vsel %vm791, %v896, -inf
        %905 = vmax.xlane.f32.xlu0 %v904
        %v906 = vpop.xlane.xlu0 %905
        %v907 = vsel %vm791, %v897, -inf
        %908 = vmax.xlane.f32.xlu0 %v907
        %v909 = vpop.xlane.xlu0 %908
        %v910 = vsub.f32 %v894, %v900
        %v911 = vsub.f32 %v895, %v903
        %v912 = vsub.f32 %v896, %v906
        %v913 = vsub.f32 %v897, %v909
        %v914 = vmul.f32 %v910, 1.442695
        %v915 = vpow.pop %v914
        %v916 = vmul.f32 %v911, 1.442695
        %v917 = vpow.pop %v916
        %v918 = vmul.f32 %v912, 1.442695
        %v919 = vpow.pop %v918
        %v920 = vmul.f32 %v913, 1.442695
        %v921 = vpow.pop %v920
        %v922 = vsel %vm791, %v915, 0.0
        %923 = vadd.xlane.f32.xlu0 %v922
        %v924 = vpop.xlane.xlu0 %923
        %v925 = vsel %vm791, %v917, 0.0
        %926 = vadd.xlane.f32.xlu0 %v925
        %v927 = vpop.xlane.xlu0 %926
        %v928 = vsel %vm791, %v919, 0.0
        %929 = vadd.xlane.f32.xlu0 %v928
        %v930 = vpop.xlane.xlu0 %929
        %v931 = vsel %vm791, %v921, 0.0
        %932 = vadd.xlane.f32.xlu0 %v931
        %v933 = vpop.xlane.xlu0 %932
        %v934 = vrcp.pop %v924
        %v935 = vmul.f32 %v924, %v934
        %v936 = vsub.f32 1.0, %v935
        %v937 = vmul.f32 %v934, %v936
        %v938 = vadd.f32 %v934, %v937
        %vm939 = vweird.f32 %v924
        %vm940 = vweird.f32 %v934
        %vm941 = vmor %vm939, %vm940
        %v942 = vsel %vm941, %v934, %v938
        %v943 = vand.u32 2147483647, %v924
        %vm944 = vcmp.eq.f32.partialorder %v943, 8.507059e+37
        %v945 = vand.u32 %v924, 2147483648
        %v946 = vor.u32 1.1754944e-38, %v945
        %v947 = vsel %vm944, %v946, %v942
        %v948 = vmul.f32 %v915, %v947
        %v949 = vrcp.pop %v927
        %v950 = vmul.f32 %v927, %v949
        %v951 = vsub.f32 1.0, %v950
        %v952 = vmul.f32 %v949, %v951
        %v953 = vadd.f32 %v949, %v952
        %vm954 = vweird.f32 %v927
        %vm955 = vweird.f32 %v949
        %vm956 = vmor %vm954, %vm955
        %v957 = vsel %vm956, %v949, %v953
        %v958 = vand.u32 2147483647, %v927
        %vm959 = vcmp.eq.f32.partialorder %v958, 8.507059e+37
        %v960 = vand.u32 %v927, 2147483648
        %v961 = vor.u32 1.1754944e-38, %v960
        %v962 = vsel %vm959, %v961, %v957
        %v963 = vmul.f32 %v917, %v962
        %v964 = vrcp.pop %v930
        %v965 = vmul.f32 %v930, %v964
        %v966 = vsub.f32 1.0, %v965
        %v967 = vmul.f32 %v964, %v966
        %v968 = vadd.f32 %v964, %v967
        %vm969 = vweird.f32 %v930
        %vm970 = vweird.f32 %v964
        %vm971 = vmor %vm969, %vm970
        %v972 = vsel %vm971, %v964, %v968
        %v973 = vand.u32 2147483647, %v930
        %vm974 = vcmp.eq.f32.partialorder %v973, 8.507059e+37
        %v975 = vand.u32 %v930, 2147483648
        %v976 = vor.u32 1.1754944e-38, %v975
        %v977 = vsel %vm974, %v976, %v972
        %v978 = vmul.f32 %v919, %v977
        %v979 = vrcp.pop %v933
        %v980 = vmul.f32 %v933, %v979
        %v981 = vsub.f32 1.0, %v980
        %v982 = vmul.f32 %v979, %v981
        %v983 = vadd.f32 %v979, %v982
        %vm984 = vweird.f32 %v933
        %vm985 = vweird.f32 %v979
        %vm986 = vmor %vm984, %vm985
        %v987 = vsel %vm986, %v979, %v983
        %v988 = vand.u32 2147483647, %v933
        %vm989 = vcmp.eq.f32.partialorder %v988, 8.507059e+37
        %v990 = vand.u32 %v933, 2147483648
        %v991 = vor.u32 1.1754944e-38, %v990
        %v992 = vsel %vm989, %v991, %v987
        %v993 = vmul.f32 %v921, %v992
        %994 = vrot.lane.b32.xlu0 %v780, 64
        %v995 = vpop.permute.xlu0 %994
        %v998 = vsel %vm791, %v948, 0
        %1000 = vmatpush.msra.mxu0 0.0
        %1001 = vmatpush.msra.mxu0 0.0
        %1002 = vmatpush.msra.mxu0 0.0
        %1003 = vmatpush.msra.mxu0 0.0
        %1004 = vmatpush.msra.mxu0 0.0
        %1005 = vmatpush.msra.mxu0 0.0
        %1006 = vmatpush.msra.mxu0 0.0
        %1007 = vmatpush.msra.mxu0 0.0
        %1008 = vmatpush.msra.mxu0 0.0
        %1009 = vmatpush.msra.mxu0 0.0
        %1010 = vmatpush.msra.mxu0 0.0
        %1011 = vmatpush.msra.mxu0 0.0
        %1012 = vmatpush.msra.mxu0 0.0
        %1013 = vmatpush.msra.mxu0 0.0
        %1014 = vmatpush.msra.mxu0 0.0
        %1015 = vmatpush.msra.mxu0 %v995
        %1016 = vmatmul.f32.gmra.mxu0 %v998
        %v1017 = vpop.f32.mrf.mxu0
        %v1018 = vadd.f32 0.0, %v1017
        %1019 = vdwg.mxu0
        %1020 = vrot.lane.b32.xlu0 %v784, 64
        %v1021 = vpop.permute.xlu0 %1020
        %v1024 = vsel %vm791, %v963, 0
        %1026 = vmatpush.msra.mxu0 0.0
        %1027 = vmatpush.msra.mxu0 0.0
        %1028 = vmatpush.msra.mxu0 0.0
        %1029 = vmatpush.msra.mxu0 0.0
        %1030 = vmatpush.msra.mxu0 0.0
        %1031 = vmatpush.msra.mxu0 0.0
        %1032 = vmatpush.msra.mxu0 0.0
        %1033 = vmatpush.msra.mxu0 0.0
        %1034 = vmatpush.msra.mxu0 0.0
        %1035 = vmatpush.msra.mxu0 0.0
        %1036 = vmatpush.msra.mxu0 0.0
        %1037 = vmatpush.msra.mxu0 0.0
        %1038 = vmatpush.msra.mxu0 0.0
        %1039 = vmatpush.msra.mxu0 0.0
        %1040 = vmatpush.msra.mxu0 0.0
        %1041 = vmatpush.msra.mxu0 %v1021
        %1042 = vmatmul.f32.gmra.mxu0 %v1024
        %v1043 = vpop.f32.mrf.mxu0
        %v1044 = vadd.f32 0.0, %v1043
        %1045 = vdwg.mxu0
        %1046 = vrot.lane.b32.xlu0 %v786, 64
        %v1047 = vpop.permute.xlu0 %1046
        %v1050 = vsel %vm791, %v978, 0
        %1052 = vmatpush.msra.mxu0 0.0
        %1053 = vmatpush.msra.mxu0 0.0
        %1054 = vmatpush.msra.mxu0 0.0
        %1055 = vmatpush.msra.mxu0 0.0
        %1056 = vmatpush.msra.mxu0 0.0
        %1057 = vmatpush.msra.mxu0 0.0
        %1058 = vmatpush.msra.mxu0 0.0
        %1059 = vmatpush.msra.mxu0 0.0
        %1060 = vmatpush.msra.mxu0 0.0
        %1061 = vmatpush.msra.mxu0 0.0
        %1062 = vmatpush.msra.mxu0 0.0
        %1063 = vmatpush.msra.mxu0 0.0
        %1064 = vmatpush.msra.mxu0 0.0
        %1065 = vmatpush.msra.mxu0 0.0
        %1066 = vmatpush.msra.mxu0 0.0
        %1067 = vmatpush.msra.mxu0 %v1047
        %1068 = vmatmul.f32.gmra.mxu0 %v1050
        %v1069 = vpop.f32.mrf.mxu0
        %v1070 = vadd.f32 0.0, %v1069
        %1071 = vdwg.mxu0
        %1072 = vrot.lane.b32.xlu0 %v788, 64
        %v1073 = vpop.permute.xlu0 %1072
        %v1076 = vsel %vm791, %v993, 0
        %1078 = vmatpush.msra.mxu0 0.0
        %1079 = vmatpush.msra.mxu0 0.0
        %1080 = vmatpush.msra.mxu0 0.0
        %1081 = vmatpush.msra.mxu0 0.0
        %1082 = vmatpush.msra.mxu0 0.0
        %1083 = vmatpush.msra.mxu0 0.0
        %1084 = vmatpush.msra.mxu0 0.0
        %1085 = vmatpush.msra.mxu0 0.0
        %1086 = vmatpush.msra.mxu0 0.0
        %1087 = vmatpush.msra.mxu0 0.0
        %1088 = vmatpush.msra.mxu0 0.0
        %1089 = vmatpush.msra.mxu0 0.0
        %1090 = vmatpush.msra.mxu0 0.0
        %1091 = vmatpush.msra.mxu0 0.0
        %1092 = vmatpush.msra.mxu0 0.0
        %1093 = vmatpush.msra.mxu0 %v1073
        %1094 = vmatmul.f32.gmra.mxu0 %v1076
        %v1095 = vpop.f32.mrf.mxu0
        %v1096 = vadd.f32 0.0, %v1095
        %1097 = vdwg.mxu0
        %v1098 = vld [vmem:[#allocation11] sm:$0xff]
        %v1099 = vld [vmem:[#allocation11 + $0x8] sm:$0xff]
        %v1100 = vld [vmem:[#allocation11 + $0x10] sm:$0xff]
        %v1101 = vld [vmem:[#allocation11 + $0x18] sm:$0xff]
        %v1103 = vsel %vm791, %v1044, 0
        %1105 = vmatpush.msra.mxu0 0.0
        %1106 = vmatpush.msra.mxu0 0.0
        %1107 = vmatpush.msra.mxu0 0.0
        %1108 = vmatpush.msra.mxu0 0.0
        %1109 = vmatpush.msra.mxu0 0.0
        %1110 = vmatpush.msra.mxu0 0.0
        %1111 = vmatpush.msra.mxu0 0.0
        %1112 = vmatpush.msra.mxu0 0.0
        %1113 = vmatpush.msra.mxu0 0.0
        %1114 = vmatpush.msra.mxu0 0.0
        %1115 = vmatpush.msra.mxu0 0.0
        %1116 = vmatpush.msra.mxu0 0.0
        %1117 = vmatpush.msra.mxu0 0.0
        %1118 = vmatpush.msra.mxu0 0.0
        %1119 = vmatpush.msra.mxu0 0.0
        %1120 = vmatpush.msra.mxu0 %v1099
        %1121 = vmatmul.f32.gmra.mxu0 %v1103
        %v1122 = vpop.f32.mrf.mxu0
        %v1123 = vadd.f32 0.0, %v1122
        %1124 = vdwg.mxu0
        %v1126 = vsel %vm791, %v1018, 0
        %1128 = vmatpush.msra.mxu0 0.0
        %1129 = vmatpush.msra.mxu0 0.0
        %1130 = vmatpush.msra.mxu0 0.0
        %1131 = vmatpush.msra.mxu0 0.0
        %1132 = vmatpush.msra.mxu0 0.0
        %1133 = vmatpush.msra.mxu0 0.0
        %1134 = vmatpush.msra.mxu0 0.0
        %1135 = vmatpush.msra.mxu0 0.0
        %1136 = vmatpush.msra.mxu0 0.0
        %1137 = vmatpush.msra.mxu0 0.0
        %1138 = vmatpush.msra.mxu0 0.0
        %1139 = vmatpush.msra.mxu0 0.0
        %1140 = vmatpush.msra.mxu0 0.0
        %1141 = vmatpush.msra.mxu0 0.0
        %1142 = vmatpush.msra.mxu0 0.0
        %1143 = vmatpush.msra.mxu0 %v1098
        %1144 = vmatmul.f32.gmra.mxu0 %v1126
        %v1145 = vpop.f32.mrf.mxu0
        %v1146 = vadd.f32 %v1123, %v1145
        %1147 = vdwg.mxu0
        %v1149 = vsel %vm791, %v1070, 0
        %1151 = vmatpush.msra.mxu0 0.0
        %1152 = vmatpush.msra.mxu0 0.0
        %1153 = vmatpush.msra.mxu0 0.0
        %1154 = vmatpush.msra.mxu0 0.0
        %1155 = vmatpush.msra.mxu0 0.0
        %1156 = vmatpush.msra.mxu0 0.0
        %1157 = vmatpush.msra.mxu0 0.0
        %1158 = vmatpush.msra.mxu0 0.0
        %1159 = vmatpush.msra.mxu0 0.0
        %1160 = vmatpush.msra.mxu0 0.0
        %1161 = vmatpush.msra.mxu0 0.0
        %1162 = vmatpush.msra.mxu0 0.0
        %1163 = vmatpush.msra.mxu0 0.0
        %1164 = vmatpush.msra.mxu0 0.0
        %1165 = vmatpush.msra.mxu0 0.0
        %1166 = vmatpush.msra.mxu0 %v1100
        %1167 = vmatmul.f32.gmra.mxu0 %v1149
        %v1168 = vpop.f32.mrf.mxu0
        %v1169 = vadd.f32 0.0, %v1168
        %1170 = vdwg.mxu0
        %v1171 = vadd.f32 %v1146, %v1169
        %v1173 = vsel %vm791, %v1096, 0
        %1175 = vmatpush.msra.mxu0 0.0
        %1176 = vmatpush.msra.mxu0 0.0
        %1177 = vmatpush.msra.mxu0 0.0
        %1178 = vmatpush.msra.mxu0 0.0
        %1179 = vmatpush.msra.mxu0 0.0
        %1180 = vmatpush.msra.mxu0 0.0
        %1181 = vmatpush.msra.mxu0 0.0
        %1182 = vmatpush.msra.mxu0 0.0
        %1183 = vmatpush.msra.mxu0 0.0
        %1184 = vmatpush.msra.mxu0 0.0
        %1185 = vmatpush.msra.mxu0 0.0
        %1186 = vmatpush.msra.mxu0 0.0
        %1187 = vmatpush.msra.mxu0 0.0
        %1188 = vmatpush.msra.mxu0 0.0
        %1189 = vmatpush.msra.mxu0 0.0
        %1190 = vmatpush.msra.mxu0 %v1101
        %1191 = vmatmul.f32.gmra.mxu0 %v1173
        %v1192 = vpop.f32.mrf.mxu0
        %v1193 = vadd.f32 0.0, %v1192
        %1194 = vdwg.mxu0
        %v1195 = vadd.f32 %v1171, %v1193
        %v1196 = vld [vmem:[%s7] sm:$0x1]
        %v1198 = vperm.slane %v1196, 0
        %v1200 = vadd.f32 %v1195, %v1198
        %v1201 = vadd.f32 %v749, %v1200
        %v1202 = vld [vmem:[#allocation13] sm:$0x1]
        %v1203 = vld [vmem:[#allocation14] sm:$0x1]
        %v1204 = vsel %vm758, %v1201, 0.0
        %1205 = vadd.xlane.f32.xlu0 %v1204
        %v1206 = vpop.xlane.xlu0 %1205
        %v1207 = vrcp.pop 32.0
        %v1208 = vmul.f32 32.0, %v1207
        %v1209 = vsub.f32 1.0, %v1208
        %v1210 = vmul.f32 %v1207, %v1209
        %v1211 = vadd.f32 %v1207, %v1210
        %vm1212 = vweird.f32 %v1207
        %v1213 = vsel %vm1212, %v1207, %v1211
        %v1214 = vmul.f32 %v1206, %v1213
        %v1215 = vsub.f32 %v1201, %v1214
        %v1216 = vmul.f32 %v1215, %v1215
        %v1217 = vsel %vm758, %v1216, 0.0
        %1218 = vadd.xlane.f32.xlu0 %v1217
        %v1219 = vpop.xlane.xlu0 %1218
        %v1220 = vmul.f32 %v1219, %v1213
        %v1221 = vadd.f32 %v1220, 1e-05
        %v1222 = vrsqrt.pop %v1221
        %v1223 = vmul.f32 %v1222, %v1221
        %v1224 = vmul.f32 %v1223, %v1222
        %v1225 = vmul.f32 0.5, %v1224
        %v1226 = vsub.f32 1.5, %v1225
        %v1227 = vmul.f32 %v1222, %v1226
        %vm1228 = vweird.f32 %v1221
        %vm1229 = vweird.f32 %v1222
        %vm1230 = vmor %vm1228, %vm1229
        %v1231 = vsel %vm1230, %v1222, %v1227
        %v1232 = vmul.f32 %v1215, %v1231
        %v1234 = vperm.slane %v1202, 0
        %v1236 = vmul.f32 %v1232, %v1234
        %v1238 = vperm.slane %v1203, 0
        %v1240 = vadd.f32 %v1236, %v1238
        %v1241 = vld [vmem:[#allocation16] sm:$0xff]
        %v1242 = vld [vmem:[#allocation16 + $0x8] sm:$0xff]
        %v1243 = vld [vmem:[#allocation16 + $0x10] sm:$0xff]
        %v1244 = vld [vmem:[#allocation16 + $0x18] sm:$0xff]
        %v1245 = vld [vmem:[#allocation16 + $0x20] sm:$0xff]
        %v1246 = vld [vmem:[#allocation16 + $0x28] sm:$0xff]
        %v1247 = vld [vmem:[#allocation16 + $0x30] sm:$0xff]
        %v1248 = vld [vmem:[#allocation16 + $0x38] sm:$0xff]
        %v1249 = vld [vmem:[#allocation16 + $0x40] sm:$0xff]
        %v1250 = vld [vmem:[#allocation16 + $0x48] sm:$0xff]
        %v1251 = vld [vmem:[#allocation16 + $0x50] sm:$0xff]
        %v1252 = vld [vmem:[#allocation16 + $0x58] sm:$0xff]
        %v1253 = vld [vmem:[#allocation16 + $0x60] sm:$0xff]
        %v1254 = vld [vmem:[#allocation16 + $0x68] sm:$0xff]
        %v1255 = vld [vmem:[#allocation16 + $0x70] sm:$0xff]
        %v1256 = vld [vmem:[#allocation16 + $0x78] sm:$0xff]
        %v1257 = vld [vmem:[#allocation16 + $0x80] sm:$0xff]
        %v1258 = vld [vmem:[#allocation16 + $0x88] sm:$0xff]
        %v1259 = vld [vmem:[#allocation16 + $0x90] sm:$0xff]
        %v1260 = vld [vmem:[#allocation16 + $0x98] sm:$0xff]
        %v1261 = vld [vmem:[#allocation16 + $0xa0] sm:$0xff]
        %v1262 = vld [vmem:[#allocation16 + $0xa8] sm:$0xff]
        %v1263 = vld [vmem:[#allocation16 + $0xb0] sm:$0xff]
        %v1264 = vld [vmem:[#allocation16 + $0xb8] sm:$0xff]
        %v1265 = vld [vmem:[#allocation16 + $0xc0] sm:$0xff]
        %v1266 = vld [vmem:[#allocation16 + $0xc8] sm:$0xff]
        %v1267 = vld [vmem:[#allocation16 + $0xd0] sm:$0xff]
        %v1268 = vld [vmem:[#allocation16 + $0xd8] sm:$0xff]
        %v1269 = vld [vmem:[#allocation16 + $0xe0] sm:$0xff]
        %v1270 = vld [vmem:[#allocation16 + $0xe8] sm:$0xff]
        %v1271 = vld [vmem:[#allocation16 + $0xf0] sm:$0xff]
        %v1272 = vld [vmem:[#allocation16 + $0xf8] sm:$0xff]
        %v1273 = vld [vmem:[#allocation16 + $0x100] sm:$0xff]
        %v1274 = vld [vmem:[#allocation16 + $0x108] sm:$0xff]
        %v1275 = vld [vmem:[#allocation16 + $0x110] sm:$0xff]
        %v1276 = vld [vmem:[#allocation16 + $0x118] sm:$0xff]
        %v1277 = vld [vmem:[#allocation16 + $0x120] sm:$0xff]
        %v1278 = vld [vmem:[#allocation16 + $0x128] sm:$0xff]
        %v1279 = vld [vmem:[#allocation16 + $0x130] sm:$0xff]
        %v1280 = vld [vmem:[#allocation16 + $0x138] sm:$0xff]
        %v1281 = vld [vmem:[#allocation16 + $0x140] sm:$0xff]
        %v1282 = vld [vmem:[#allocation16 + $0x148] sm:$0xff]
        %v1283 = vld [vmem:[#allocation16 + $0x150] sm:$0xff]
        %v1284 = vld [vmem:[#allocation16 + $0x158] sm:$0xff]
        %v1285 = vld [vmem:[#allocation16 + $0x160] sm:$0xff]
        %v1286 = vld [vmem:[#allocation16 + $0x168] sm:$0xff]
        %v1287 = vld [vmem:[#allocation16 + $0x170] sm:$0xff]
        %v1288 = vld [vmem:[#allocation16 + $0x178] sm:$0xff]
        %v1289 = vld [vmem:[#allocation16 + $0x180] sm:$0xff]
        %v1290 = vld [vmem:[#allocation16 + $0x188] sm:$0xff]
        %v1291 = vld [vmem:[#allocation16 + $0x190] sm:$0xff]
        %v1292 = vld [vmem:[#allocation16 + $0x198] sm:$0xff]
        %v1293 = vld [vmem:[#allocation16 + $0x1a0] sm:$0xff]
        %v1294 = vld [vmem:[#allocation16 + $0x1a8] sm:$0xff]
        %v1295 = vld [vmem:[#allocation16 + $0x1b0] sm:$0xff]
        %v1296 = vld [vmem:[#allocation16 + $0x1b8] sm:$0xff]
        %v1297 = vld [vmem:[#allocation16 + $0x1c0] sm:$0xff]
        %v1298 = vld [vmem:[#allocation16 + $0x1c8] sm:$0xff]
        %v1299 = vld [vmem:[#allocation16 + $0x1d0] sm:$0xff]
        %v1300 = vld [vmem:[#allocation16 + $0x1d8] sm:$0xff]
        %v1301 = vld [vmem:[#allocation16 + $0x1e0] sm:$0xff]
        %v1302 = vld [vmem:[#allocation16 + $0x1e8] sm:$0xff]
        %v1303 = vld [vmem:[#allocation16 + $0x1f0] sm:$0xff]
        %v1304 = vld [vmem:[#allocation16 + $0x1f8] sm:$0xff]
        %v1305 = vld [vmem:[#allocation17] sm:$0xff]
        %v1306 = vld [vmem:[#allocation17 + $0x8] sm:$0xff]
        %v1309 = vperm.slane %v1305, 0
        %v1310 = vperm.slane %v1305, 1
        %v1311 = vperm.slane %v1305, 2
        %v1312 = vperm.slane %v1305, 3
        %v1313 = vperm.slane %v1305, 4
        %v1314 = vperm.slane %v1305, 5
        %v1315 = vperm.slane %v1305, 6
        %v1316 = vperm.slane %v1305, 7
        %v1317 = vperm.slane %v1306, 0
        %v1318 = vperm.slane %v1306, 1
        %v1319 = vperm.slane %v1306, 2
        %v1320 = vperm.slane %v1306, 3
        %v1321 = vperm.slane %v1306, 4
        %v1322 = vperm.slane %v1306, 5
        %v1323 = vperm.slane %v1306, 6
        %v1324 = vperm.slane %v1306, 7
        %v1342 = vsel %vm758, %v1240, 0
        %1344 = vmatpush.msra.mxu0 0.0
        %1345 = vmatpush.msra.mxu0 0.0
        %1346 = vmatpush.msra.mxu0 0.0
        %1347 = vmatpush.msra.mxu0 0.0
        %1348 = vmatpush.msra.mxu0 0.0
        %1349 = vmatpush.msra.mxu0 0.0
        %1350 = vmatpush.msra.mxu0 0.0
        %1351 = vmatpush.msra.mxu0 0.0
        %1352 = vmatpush.msra.mxu0 0.0
        %1353 = vmatpush.msra.mxu0 0.0
        %1354 = vmatpush.msra.mxu0 0.0
        %1355 = vmatpush.msra.mxu0 0.0
        %1356 = vmatpush.msra.mxu0 %v1289
        %1357 = vmatpush.msra.mxu0 %v1273
        %1358 = vmatpush.msra.mxu0 %v1257
        %1359 = vmatpush.msra.mxu0 %v1241
        %1360 = vmatmul.f32.gmra.mxu0 %v1342
        %v1361 = vpop.f32.mrf.mxu0
        %v1362 = vadd.f32 %v1309, %v1361
        %1363 = vdwg.mxu0
        %1364 = vmatpush.msra.mxu0 0.0
        %1365 = vmatpush.msra.mxu0 0.0
        %1366 = vmatpush.msra.mxu0 0.0
        %1367 = vmatpush.msra.mxu0 0.0
        %1368 = vmatpush.msra.mxu0 0.0
        %1369 = vmatpush.msra.mxu0 0.0
        %1370 = vmatpush.msra.mxu0 0.0
        %1371 = vmatpush.msra.mxu0 0.0
        %1372 = vmatpush.msra.mxu0 0.0
        %1373 = vmatpush.msra.mxu0 0.0
        %1374 = vmatpush.msra.mxu0 0.0
        %1375 = vmatpush.msra.mxu0 0.0
        %1376 = vmatpush.msra.mxu0 %v1290
        %1377 = vmatpush.msra.mxu0 %v1274
        %1378 = vmatpush.msra.mxu0 %v1258
        %1379 = vmatpush.msra.mxu0 %v1242
        %1380 = vmatmul.f32.gmra.mxu0 %v1342
        %v1381 = vpop.f32.mrf.mxu0
        %v1382 = vadd.f32 %v1310, %v1381
        %1383 = vdwg.mxu0
        %1384 = vmatpush.msra.mxu0 0.0
        %1385 = vmatpush.msra.mxu0 0.0
        %1386 = vmatpush.msra.mxu0 0.0
        %1387 = vmatpush.msra.mxu0 0.0
        %1388 = vmatpush.msra.mxu0 0.0
        %1389 = vmatpush.msra.mxu0 0.0
        %1390 = vmatpush.msra.mxu0 0.0
        %1391 = vmatpush.msra.mxu0 0.0
        %1392 = vmatpush.msra.mxu0 0.0
        %1393 = vmatpush.msra.mxu0 0.0
        %1394 = vmatpush.msra.mxu0 0.0
        %1395 = vmatpush.msra.mxu0 0.0
        %1396 = vmatpush.msra.mxu0 %v1291
        %1397 = vmatpush.msra.mxu0 %v1275
        %1398 = vmatpush.msra.mxu0 %v1259
        %1399 = vmatpush.msra.mxu0 %v1243
        %1400 = vmatmul.f32.gmra.mxu0 %v1342
        %v1401 = vpop.f32.mrf.mxu0
        %v1402 = vadd.f32 %v1311, %v1401
        %1403 = vdwg.mxu0
        %1404 = vmatpush.msra.mxu0 0.0
        %1405 = vmatpush.msra.mxu0 0.0
        %1406 = vmatpush.msra.mxu0 0.0
        %1407 = vmatpush.msra.mxu0 0.0
        %1408 = vmatpush.msra.mxu0 0.0
        %1409 = vmatpush.msra.mxu0 0.0
        %1410 = vmatpush.msra.mxu0 0.0
        %1411 = vmatpush.msra.mxu0 0.0
        %1412 = vmatpush.msra.mxu0 0.0
        %1413 = vmatpush.msra.mxu0 0.0
        %1414 = vmatpush.msra.mxu0 0.0
        %1415 = vmatpush.msra.mxu0 0.0
        %1416 = vmatpush.msra.mxu0 %v1292
        %1417 = vmatpush.msra.mxu0 %v1276
        %1418 = vmatpush.msra.mxu0 %v1260
        %1419 = vmatpush.msra.mxu0 %v1244
        %1420 = vmatmul.f32.gmra.mxu0 %v1342
        %v1421 = vpop.f32.mrf.mxu0
        %v1422 = vadd.f32 %v1312, %v1421
        %1423 = vdwg.mxu0
        %1424 = vmatpush.msra.mxu0 0.0
        %1425 = vmatpush.msra.mxu0 0.0
        %1426 = vmatpush.msra.mxu0 0.0
        %1427 = vmatpush.msra.mxu0 0.0
        %1428 = vmatpush.msra.mxu0 0.0
        %1429 = vmatpush.msra.mxu0 0.0
        %1430 = vmatpush.msra.mxu0 0.0
        %1431 = vmatpush.msra.mxu0 0.0
        %1432 = vmatpush.msra.mxu0 0.0
        %1433 = vmatpush.msra.mxu0 0.0
        %1434 = vmatpush.msra.mxu0 0.0
        %1435 = vmatpush.msra.mxu0 0.0
        %1436 = vmatpush.msra.mxu0 %v1293
        %1437 = vmatpush.msra.mxu0 %v1277
        %1438 = vmatpush.msra.mxu0 %v1261
        %1439 = vmatpush.msra.mxu0 %v1245
        %1440 = vmatmul.f32.gmra.mxu0 %v1342
        %v1441 = vpop.f32.mrf.mxu0
        %v1442 = vadd.f32 %v1313, %v1441
        %1443 = vdwg.mxu0
        %1444 = vmatpush.msra.mxu0 0.0
        %1445 = vmatpush.msra.mxu0 0.0
        %1446 = vmatpush.msra.mxu0 0.0
        %1447 = vmatpush.msra.mxu0 0.0
        %1448 = vmatpush.msra.mxu0 0.0
        %1449 = vmatpush.msra.mxu0 0.0
        %1450 = vmatpush.msra.mxu0 0.0
        %1451 = vmatpush.msra.mxu0 0.0
        %1452 = vmatpush.msra.mxu0 0.0
        %1453 = vmatpush.msra.mxu0 0.0
        %1454 = vmatpush.msra.mxu0 0.0
        %1455 = vmatpush.msra.mxu0 0.0
        %1456 = vmatpush.msra.mxu0 %v1294
        %1457 = vmatpush.msra.mxu0 %v1278
        %1458 = vmatpush.msra.mxu0 %v1262
        %1459 = vmatpush.msra.mxu0 %v1246
        %1460 = vmatmul.f32.gmra.mxu0 %v1342
        %v1461 = vpop.f32.mrf.mxu0
        %v1462 = vadd.f32 %v1314, %v1461
        %1463 = vdwg.mxu0
        %1464 = vmatpush.msra.mxu0 0.0
        %1465 = vmatpush.msra.mxu0 0.0
        %1466 = vmatpush.msra.mxu0 0.0
        %1467 = vmatpush.msra.mxu0 0.0
        %1468 = vmatpush.msra.mxu0 0.0
        %1469 = vmatpush.msra.mxu0 0.0
        %1470 = vmatpush.msra.mxu0 0.0
        %1471 = vmatpush.msra.mxu0 0.0
        %1472 = vmatpush.msra.mxu0 0.0
        %1473 = vmatpush.msra.mxu0 0.0
        %1474 = vmatpush.msra.mxu0 0.0
        %1475 = vmatpush.msra.mxu0 0.0
        %1476 = vmatpush.msra.mxu0 %v1295
        %1477 = vmatpush.msra.mxu0 %v1279
        %1478 = vmatpush.msra.mxu0 %v1263
        %1479 = vmatpush.msra.mxu0 %v1247
        %1480 = vmatmul.f32.gmra.mxu0 %v1342
        %v1481 = vpop.f32.mrf.mxu0
        %v1482 = vadd.f32 %v1315, %v1481
        %1483 = vdwg.mxu0
        %1484 = vmatpush.msra.mxu0 0.0
        %1485 = vmatpush.msra.mxu0 0.0
        %1486 = vmatpush.msra.mxu0 0.0
        %1487 = vmatpush.msra.mxu0 0.0
        %1488 = vmatpush.msra.mxu0 0.0
        %1489 = vmatpush.msra.mxu0 0.0
        %1490 = vmatpush.msra.mxu0 0.0
        %1491 = vmatpush.msra.mxu0 0.0
        %1492 = vmatpush.msra.mxu0 0.0
        %1493 = vmatpush.msra.mxu0 0.0
        %1494 = vmatpush.msra.mxu0 0.0
        %1495 = vmatpush.msra.mxu0 0.0
        %1496 = vmatpush.msra.mxu0 %v1296
        %1497 = vmatpush.msra.mxu0 %v1280
        %1498 = vmatpush.msra.mxu0 %v1264
        %1499 = vmatpush.msra.mxu0 %v1248
        %1500 = vmatmul.f32.gmra.mxu0 %v1342
        %v1501 = vpop.f32.mrf.mxu0
        %v1502 = vadd.f32 %v1316, %v1501
        %1503 = vdwg.mxu0
        %1504 = vmatpush.msra.mxu0 0.0
        %1505 = vmatpush.msra.mxu0 0.0
        %1506 = vmatpush.msra.mxu0 0.0
        %1507 = vmatpush.msra.mxu0 0.0
        %1508 = vmatpush.msra.mxu0 0.0
        %1509 = vmatpush.msra.mxu0 0.0
        %1510 = vmatpush.msra.mxu0 0.0
        %1511 = vmatpush.msra.mxu0 0.0
        %1512 = vmatpush.msra.mxu0 0.0
        %1513 = vmatpush.msra.mxu0 0.0
        %1514 = vmatpush.msra.mxu0 0.0
        %1515 = vmatpush.msra.mxu0 0.0
        %1516 = vmatpush.msra.mxu0 %v1297
        %1517 = vmatpush.msra.mxu0 %v1281
        %1518 = vmatpush.msra.mxu0 %v1265
        %1519 = vmatpush.msra.mxu0 %v1249
        %1520 = vmatmul.f32.gmra.mxu0 %v1342
        %v1521 = vpop.f32.mrf.mxu0
        %v1522 = vadd.f32 %v1317, %v1521
        %1523 = vdwg.mxu0
        %1524 = vmatpush.msra.mxu0 0.0
        %1525 = vmatpush.msra.mxu0 0.0
        %1526 = vmatpush.msra.mxu0 0.0
        %1527 = vmatpush.msra.mxu0 0.0
        %1528 = vmatpush.msra.mxu0 0.0
        %1529 = vmatpush.msra.mxu0 0.0
        %1530 = vmatpush.msra.mxu0 0.0
        %1531 = vmatpush.msra.mxu0 0.0
        %1532 = vmatpush.msra.mxu0 0.0
        %1533 = vmatpush.msra.mxu0 0.0
        %1534 = vmatpush.msra.mxu0 0.0
        %1535 = vmatpush.msra.mxu0 0.0
        %1536 = vmatpush.msra.mxu0 %v1298
        %1537 = vmatpush.msra.mxu0 %v1282
        %1538 = vmatpush.msra.mxu0 %v1266
        %1539 = vmatpush.msra.mxu0 %v1250
        %1540 = vmatmul.f32.gmra.mxu0 %v1342
        %v1541 = vpop.f32.mrf.mxu0
        %v1542 = vadd.f32 %v1318, %v1541
        %1543 = vdwg.mxu0
        %1544 = vmatpush.msra.mxu0 0.0
        %1545 = vmatpush.msra.mxu0 0.0
        %1546 = vmatpush.msra.mxu0 0.0
        %1547 = vmatpush.msra.mxu0 0.0
        %1548 = vmatpush.msra.mxu0 0.0
        %1549 = vmatpush.msra.mxu0 0.0
        %1550 = vmatpush.msra.mxu0 0.0
        %1551 = vmatpush.msra.mxu0 0.0
        %1552 = vmatpush.msra.mxu0 0.0
        %1553 = vmatpush.msra.mxu0 0.0
        %1554 = vmatpush.msra.mxu0 0.0
        %1555 = vmatpush.msra.mxu0 0.0
        %1556 = vmatpush.msra.mxu0 %v1299
        %1557 = vmatpush.msra.mxu0 %v1283
        %1558 = vmatpush.msra.mxu0 %v1267
        %1559 = vmatpush.msra.mxu0 %v1251
        %1560 = vmatmul.f32.gmra.mxu0 %v1342
        %v1561 = vpop.f32.mrf.mxu0
        %v1562 = vadd.f32 %v1319, %v1561
        %1563 = vdwg.mxu0
        %1564 = vmatpush.msra.mxu0 0.0
        %1565 = vmatpush.msra.mxu0 0.0
        %1566 = vmatpush.msra.mxu0 0.0
        %1567 = vmatpush.msra.mxu0 0.0
        %1568 = vmatpush.msra.mxu0 0.0
        %1569 = vmatpush.msra.mxu0 0.0
        %1570 = vmatpush.msra.mxu0 0.0
        %1571 = vmatpush.msra.mxu0 0.0
        %1572 = vmatpush.msra.mxu0 0.0
        %1573 = vmatpush.msra.mxu0 0.0
        %1574 = vmatpush.msra.mxu0 0.0
        %1575 = vmatpush.msra.mxu0 0.0
        %1576 = vmatpush.msra.mxu0 %v1300
        %1577 = vmatpush.msra.mxu0 %v1284
        %1578 = vmatpush.msra.mxu0 %v1268
        %1579 = vmatpush.msra.mxu0 %v1252
        %1580 = vmatmul.f32.gmra.mxu0 %v1342
        %v1581 = vpop.f32.mrf.mxu0
        %v1582 = vadd.f32 %v1320, %v1581
        %1583 = vdwg.mxu0
        %1584 = vmatpush.msra.mxu0 0.0
        %1585 = vmatpush.msra.mxu0 0.0
        %1586 = vmatpush.msra.mxu0 0.0
        %1587 = vmatpush.msra.mxu0 0.0
        %1588 = vmatpush.msra.mxu0 0.0
        %1589 = vmatpush.msra.mxu0 0.0
        %1590 = vmatpush.msra.mxu0 0.0
        %1591 = vmatpush.msra.mxu0 0.0
        %1592 = vmatpush.msra.mxu0 0.0
        %1593 = vmatpush.msra.mxu0 0.0
        %1594 = vmatpush.msra.mxu0 0.0
        %1595 = vmatpush.msra.mxu0 0.0
        %1596 = vmatpush.msra.mxu0 %v1301
        %1597 = vmatpush.msra.mxu0 %v1285
        %1598 = vmatpush.msra.mxu0 %v1269
        %1599 = vmatpush.msra.mxu0 %v1253
        %1600 = vmatmul.f32.gmra.mxu0 %v1342
        %v1601 = vpop.f32.mrf.mxu0
        %v1602 = vadd.f32 %v1321, %v1601
        %1603 = vdwg.mxu0
        %1604 = vmatpush.msra.mxu0 0.0
        %1605 = vmatpush.msra.mxu0 0.0
        %1606 = vmatpush.msra.mxu0 0.0
        %1607 = vmatpush.msra.mxu0 0.0
        %1608 = vmatpush.msra.mxu0 0.0
        %1609 = vmatpush.msra.mxu0 0.0
        %1610 = vmatpush.msra.mxu0 0.0
        %1611 = vmatpush.msra.mxu0 0.0
        %1612 = vmatpush.msra.mxu0 0.0
        %1613 = vmatpush.msra.mxu0 0.0
        %1614 = vmatpush.msra.mxu0 0.0
        %1615 = vmatpush.msra.mxu0 0.0
        %1616 = vmatpush.msra.mxu0 %v1302
        %1617 = vmatpush.msra.mxu0 %v1286
        %1618 = vmatpush.msra.mxu0 %v1270
        %1619 = vmatpush.msra.mxu0 %v1254
        %1620 = vmatmul.f32.gmra.mxu0 %v1342
        %v1621 = vpop.f32.mrf.mxu0
        %v1622 = vadd.f32 %v1322, %v1621
        %1623 = vdwg.mxu0
        %1624 = vmatpush.msra.mxu0 0.0
        %1625 = vmatpush.msra.mxu0 0.0
        %1626 = vmatpush.msra.mxu0 0.0
        %1627 = vmatpush.msra.mxu0 0.0
        %1628 = vmatpush.msra.mxu0 0.0
        %1629 = vmatpush.msra.mxu0 0.0
        %1630 = vmatpush.msra.mxu0 0.0
        %1631 = vmatpush.msra.mxu0 0.0
        %1632 = vmatpush.msra.mxu0 0.0
        %1633 = vmatpush.msra.mxu0 0.0
        %1634 = vmatpush.msra.mxu0 0.0
        %1635 = vmatpush.msra.mxu0 0.0
        %1636 = vmatpush.msra.mxu0 %v1303
        %1637 = vmatpush.msra.mxu0 %v1287
        %1638 = vmatpush.msra.mxu0 %v1271
        %1639 = vmatpush.msra.mxu0 %v1255
        %1640 = vmatmul.f32.gmra.mxu0 %v1342
        %v1641 = vpop.f32.mrf.mxu0
        %v1642 = vadd.f32 %v1323, %v1641
        %1643 = vdwg.mxu0
        %1644 = vmatpush.msra.mxu0 0.0
        %1645 = vmatpush.msra.mxu0 0.0
        %1646 = vmatpush.msra.mxu0 0.0
        %1647 = vmatpush.msra.mxu0 0.0
        %1648 = vmatpush.msra.mxu0 0.0
        %1649 = vmatpush.msra.mxu0 0.0
        %1650 = vmatpush.msra.mxu0 0.0
        %1651 = vmatpush.msra.mxu0 0.0
        %1652 = vmatpush.msra.mxu0 0.0
        %1653 = vmatpush.msra.mxu0 0.0
        %1654 = vmatpush.msra.mxu0 0.0
        %1655 = vmatpush.msra.mxu0 0.0
        %1656 = vmatpush.msra.mxu0 %v1304
        %1657 = vmatpush.msra.mxu0 %v1288
        %1658 = vmatpush.msra.mxu0 %v1272
        %1659 = vmatpush.msra.mxu0 %v1256
        %1660 = vmatmul.f32.gmra.mxu0 %v1342
        %v1661 = vpop.f32.mrf.mxu0
        %v1662 = vadd.f32 %v1324, %v1661
        %1663 = vdwg.mxu0
        %v1664 = vmax.f32 %v1362, 0.0
        %v1665 = vmax.f32 %v1382, 0.0
        %v1666 = vmax.f32 %v1402, 0.0
        %v1667 = vmax.f32 %v1422, 0.0
        %v1668 = vmax.f32 %v1442, 0.0
        %v1669 = vmax.f32 %v1462, 0.0
        %v1670 = vmax.f32 %v1482, 0.0
        %v1671 = vmax.f32 %v1502, 0.0
        %v1672 = vmax.f32 %v1522, 0.0
        %v1673 = vmax.f32 %v1542, 0.0
        %v1674 = vmax.f32 %v1562, 0.0
        %v1675 = vmax.f32 %v1582, 0.0
        %v1676 = vmax.f32 %v1602, 0.0
        %v1677 = vmax.f32 %v1622, 0.0
        %v1678 = vmax.f32 %v1642, 0.0
        %v1679 = vmax.f32 %v1662, 0.0
        %v1680 = vld [vmem:[#allocation19] sm:$0xff]
        %v1681 = vld [vmem:[#allocation19 + $0x8] sm:$0xff]
        %v1682 = vld [vmem:[#allocation19 + $0x10] sm:$0xff]
        %v1683 = vld [vmem:[#allocation19 + $0x18] sm:$0xff]
        %v1684 = vld [vmem:[#allocation19 + $0x20] sm:$0xff]
        %v1685 = vld [vmem:[#allocation19 + $0x28] sm:$0xff]
        %v1686 = vld [vmem:[#allocation19 + $0x30] sm:$0xff]
        %v1687 = vld [vmem:[#allocation19 + $0x38] sm:$0xff]
        %v1688 = vld [vmem:[#allocation19 + $0x40] sm:$0xff]
        %v1689 = vld [vmem:[#allocation19 + $0x48] sm:$0xff]
        %v1690 = vld [vmem:[#allocation19 + $0x50] sm:$0xff]
        %v1691 = vld [vmem:[#allocation19 + $0x58] sm:$0xff]
        %v1692 = vld [vmem:[#allocation19 + $0x60] sm:$0xff]
        %v1693 = vld [vmem:[#allocation19 + $0x68] sm:$0xff]
        %v1694 = vld [vmem:[#allocation19 + $0x70] sm:$0xff]
        %v1695 = vld [vmem:[#allocation19 + $0x78] sm:$0xff]
        %v1696 = vld [vmem:[#allocation19 + $0x80] sm:$0xff]
        %v1697 = vld [vmem:[#allocation19 + $0x88] sm:$0xff]
        %v1698 = vld [vmem:[#allocation19 + $0x90] sm:$0xff]
        %v1699 = vld [vmem:[#allocation19 + $0x98] sm:$0xff]
        %v1700 = vld [vmem:[#allocation19 + $0xa0] sm:$0xff]
        %v1701 = vld [vmem:[#allocation19 + $0xa8] sm:$0xff]
        %v1702 = vld [vmem:[#allocation19 + $0xb0] sm:$0xff]
        %v1703 = vld [vmem:[#allocation19 + $0xb8] sm:$0xff]
        %v1704 = vld [vmem:[#allocation19 + $0xc0] sm:$0xff]
        %v1705 = vld [vmem:[#allocation19 + $0xc8] sm:$0xff]
        %v1706 = vld [vmem:[#allocation19 + $0xd0] sm:$0xff]
        %v1707 = vld [vmem:[#allocation19 + $0xd8] sm:$0xff]
        %v1708 = vld [vmem:[#allocation19 + $0xe0] sm:$0xff]
        %v1709 = vld [vmem:[#allocation19 + $0xe8] sm:$0xff]
        %v1710 = vld [vmem:[#allocation19 + $0xf0] sm:$0xff]
        %v1711 = vld [vmem:[#allocation19 + $0xf8] sm:$0xff]
        %v1712 = vld [vmem:[#allocation19 + $0x100] sm:$0xff]
        %v1713 = vld [vmem:[#allocation19 + $0x108] sm:$0xff]
        %v1714 = vld [vmem:[#allocation19 + $0x110] sm:$0xff]
        %v1715 = vld [vmem:[#allocation19 + $0x118] sm:$0xff]
        %v1716 = vld [vmem:[#allocation19 + $0x120] sm:$0xff]
        %v1717 = vld [vmem:[#allocation19 + $0x128] sm:$0xff]
        %v1718 = vld [vmem:[#allocation19 + $0x130] sm:$0xff]
        %v1719 = vld [vmem:[#allocation19 + $0x138] sm:$0xff]
        %v1720 = vld [vmem:[#allocation19 + $0x140] sm:$0xff]
        %v1721 = vld [vmem:[#allocation19 + $0x148] sm:$0xff]
        %v1722 = vld [vmem:[#allocation19 + $0x150] sm:$0xff]
        %v1723 = vld [vmem:[#allocation19 + $0x158] sm:$0xff]
        %v1724 = vld [vmem:[#allocation19 + $0x160] sm:$0xff]
        %v1725 = vld [vmem:[#allocation19 + $0x168] sm:$0xff]
        %v1726 = vld [vmem:[#allocation19 + $0x170] sm:$0xff]
        %v1727 = vld [vmem:[#allocation19 + $0x178] sm:$0xff]
        %v1728 = vld [vmem:[#allocation19 + $0x180] sm:$0xff]
        %v1729 = vld [vmem:[#allocation19 + $0x188] sm:$0xff]
        %v1730 = vld [vmem:[#allocation19 + $0x190] sm:$0xff]
        %v1731 = vld [vmem:[#allocation19 + $0x198] sm:$0xff]
        %v1732 = vld [vmem:[#allocation19 + $0x1a0] sm:$0xff]
        %v1733 = vld [vmem:[#allocation19 + $0x1a8] sm:$0xff]
        %v1734 = vld [vmem:[#allocation19 + $0x1b0] sm:$0xff]
        %v1735 = vld [vmem:[#allocation19 + $0x1b8] sm:$0xff]
        %v1736 = vld [vmem:[#allocation19 + $0x1c0] sm:$0xff]
        %v1737 = vld [vmem:[#allocation19 + $0x1c8] sm:$0xff]
        %v1738 = vld [vmem:[#allocation19 + $0x1d0] sm:$0xff]
        %v1739 = vld [vmem:[#allocation19 + $0x1d8] sm:$0xff]
        %v1740 = vld [vmem:[#allocation19 + $0x1e0] sm:$0xff]
        %v1741 = vld [vmem:[#allocation19 + $0x1e8] sm:$0xff]
        %v1742 = vld [vmem:[#allocation19 + $0x1f0] sm:$0xff]
        %v1743 = vld [vmem:[#allocation19 + $0x1f8] sm:$0xff]
        %v1744 = vld [vmem:[%s13] sm:$0x1]
        %v1746 = vperm.slane %v1744, 0
        %1748 = vmatpush.xpose.msra.mxu0 0.0
        %1749 = vmatpush.xpose.msra.mxu0 0.0
        %1750 = vmatpush.xpose.msra.mxu0 0.0
        %1751 = vmatpush.xpose.msra.mxu0 0.0
        %1752 = vmatpush.xpose.msra.mxu0 0.0
        %1753 = vmatpush.xpose.msra.mxu0 0.0
        %1754 = vmatpush.xpose.msra.mxu0 0.0
        %1755 = vmatpush.xpose.msra.mxu0 0.0
        %1756 = vmatpush.xpose.msra.mxu0 0.0
        %1757 = vmatpush.xpose.msra.mxu0 0.0
        %1758 = vmatpush.xpose.msra.mxu0 0.0
        %1759 = vmatpush.xpose.msra.mxu0 0.0
        %1760 = vmatpush.xpose.msra.mxu0 %v1728
        %1761 = vmatpush.xpose.msra.mxu0 %v1712
        %1762 = vmatpush.xpose.msra.mxu0 %v1696
        %1763 = vmatpush.xpose.msra.mxu0 %v1680
        %1764 = vmatmul.f32.gmra.mxu0 %v1664
        %v1765 = vpop.f32.mrf.mxu0
        %v1766 = vadd.f32 %v1746, %v1765
        %1767 = vdwg.mxu0
        %1768 = vmatpush.xpose.msra.mxu0 0.0
        %1769 = vmatpush.xpose.msra.mxu0 0.0
        %1770 = vmatpush.xpose.msra.mxu0 0.0
        %1771 = vmatpush.xpose.msra.mxu0 0.0
        %1772 = vmatpush.xpose.msra.mxu0 0.0
        %1773 = vmatpush.xpose.msra.mxu0 0.0
        %1774 = vmatpush.xpose.msra.mxu0 0.0
        %1775 = vmatpush.xpose.msra.mxu0 0.0
        %1776 = vmatpush.xpose.msra.mxu0 0.0
        %1777 = vmatpush.xpose.msra.mxu0 0.0
        %1778 = vmatpush.xpose.msra.mxu0 0.0
        %1779 = vmatpush.xpose.msra.mxu0 0.0
        %1780 = vmatpush.xpose.msra.mxu0 %v1729
        %1781 = vmatpush.xpose.msra.mxu0 %v1713
        %1782 = vmatpush.xpose.msra.mxu0 %v1697
        %1783 = vmatpush.xpose.msra.mxu0 %v1681
        %1784 = vmatmul.f32.gmra.mxu0 %v1665
        %v1785 = vpop.f32.mrf.mxu0
        %v1786 = vadd.f32 %v1766, %v1785
        %1787 = vdwg.mxu0
        %1788 = vmatpush.xpose.msra.mxu0 0.0
        %1789 = vmatpush.xpose.msra.mxu0 0.0
        %1790 = vmatpush.xpose.msra.mxu0 0.0
        %1791 = vmatpush.xpose.msra.mxu0 0.0
        %1792 = vmatpush.xpose.msra.mxu0 0.0
        %1793 = vmatpush.xpose.msra.mxu0 0.0
        %1794 = vmatpush.xpose.msra.mxu0 0.0
        %1795 = vmatpush.xpose.msra.mxu0 0.0
        %1796 = vmatpush.xpose.msra.mxu0 0.0
        %1797 = vmatpush.xpose.msra.mxu0 0.0
        %1798 = vmatpush.xpose.msra.mxu0 0.0
        %1799 = vmatpush.xpose.msra.mxu0 0.0
        %1800 = vmatpush.xpose.msra.mxu0 %v1730
        %1801 = vmatpush.xpose.msra.mxu0 %v1714
        %1802 = vmatpush.xpose.msra.mxu0 %v1698
        %1803 = vmatpush.xpose.msra.mxu0 %v1682
        %1804 = vmatmul.f32.gmra.mxu0 %v1666
        %v1805 = vpop.f32.mrf.mxu0
        %v1806 = vadd.f32 %v1786, %v1805
        %1807 = vdwg.mxu0
        %1808 = vmatpush.xpose.msra.mxu0 0.0
        %1809 = vmatpush.xpose.msra.mxu0 0.0
        %1810 = vmatpush.xpose.msra.mxu0 0.0
        %1811 = vmatpush.xpose.msra.mxu0 0.0
        %1812 = vmatpush.xpose.msra.mxu0 0.0
        %1813 = vmatpush.xpose.msra.mxu0 0.0
        %1814 = vmatpush.xpose.msra.mxu0 0.0
        %1815 = vmatpush.xpose.msra.mxu0 0.0
        %1816 = vmatpush.xpose.msra.mxu0 0.0
        %1817 = vmatpush.xpose.msra.mxu0 0.0
        %1818 = vmatpush.xpose.msra.mxu0 0.0
        %1819 = vmatpush.xpose.msra.mxu0 0.0
        %1820 = vmatpush.xpose.msra.mxu0 %v1731
        %1821 = vmatpush.xpose.msra.mxu0 %v1715
        %1822 = vmatpush.xpose.msra.mxu0 %v1699
        %1823 = vmatpush.xpose.msra.mxu0 %v1683
        %1824 = vmatmul.f32.gmra.mxu0 %v1667
        %v1825 = vpop.f32.mrf.mxu0
        %v1826 = vadd.f32 %v1806, %v1825
        %1827 = vdwg.mxu0
        %1828 = vmatpush.xpose.msra.mxu0 0.0
        %1829 = vmatpush.xpose.msra.mxu0 0.0
        %1830 = vmatpush.xpose.msra.mxu0 0.0
        %1831 = vmatpush.xpose.msra.mxu0 0.0
        %1832 = vmatpush.xpose.msra.mxu0 0.0
        %1833 = vmatpush.xpose.msra.mxu0 0.0
        %1834 = vmatpush.xpose.msra.mxu0 0.0
        %1835 = vmatpush.xpose.msra.mxu0 0.0
        %1836 = vmatpush.xpose.msra.mxu0 0.0
        %1837 = vmatpush.xpose.msra.mxu0 0.0
        %1838 = vmatpush.xpose.msra.mxu0 0.0
        %1839 = vmatpush.xpose.msra.mxu0 0.0
        %1840 = vmatpush.xpose.msra.mxu0 %v1732
        %1841 = vmatpush.xpose.msra.mxu0 %v1716
        %1842 = vmatpush.xpose.msra.mxu0 %v1700
        %1843 = vmatpush.xpose.msra.mxu0 %v1684
        %1844 = vmatmul.f32.gmra.mxu0 %v1668
        %v1845 = vpop.f32.mrf.mxu0
        %v1846 = vadd.f32 %v1826, %v1845
        %1847 = vdwg.mxu0
        %1848 = vmatpush.xpose.msra.mxu0 0.0
        %1849 = vmatpush.xpose.msra.mxu0 0.0
        %1850 = vmatpush.xpose.msra.mxu0 0.0
        %1851 = vmatpush.xpose.msra.mxu0 0.0
        %1852 = vmatpush.xpose.msra.mxu0 0.0
        %1853 = vmatpush.xpose.msra.mxu0 0.0
        %1854 = vmatpush.xpose.msra.mxu0 0.0
        %1855 = vmatpush.xpose.msra.mxu0 0.0
        %1856 = vmatpush.xpose.msra.mxu0 0.0
        %1857 = vmatpush.xpose.msra.mxu0 0.0
        %1858 = vmatpush.xpose.msra.mxu0 0.0
        %1859 = vmatpush.xpose.msra.mxu0 0.0
        %1860 = vmatpush.xpose.msra.mxu0 %v1733
        %1861 = vmatpush.xpose.msra.mxu0 %v1717
        %1862 = vmatpush.xpose.msra.mxu0 %v1701
        %1863 = vmatpush.xpose.msra.mxu0 %v1685
        %1864 = vmatmul.f32.gmra.mxu0 %v1669
        %v1865 = vpop.f32.mrf.mxu0
        %v1866 = vadd.f32 %v1846, %v1865
        %1867 = vdwg.mxu0
        %1868 = vmatpush.xpose.msra.mxu0 0.0
        %1869 = vmatpush.xpose.msra.mxu0 0.0
        %1870 = vmatpush.xpose.msra.mxu0 0.0
        %1871 = vmatpush.xpose.msra.mxu0 0.0
        %1872 = vmatpush.xpose.msra.mxu0 0.0
        %1873 = vmatpush.xpose.msra.mxu0 0.0
        %1874 = vmatpush.xpose.msra.mxu0 0.0
        %1875 = vmatpush.xpose.msra.mxu0 0.0
        %1876 = vmatpush.xpose.msra.mxu0 0.0
        %1877 = vmatpush.xpose.msra.mxu0 0.0
        %1878 = vmatpush.xpose.msra.mxu0 0.0
        %1879 = vmatpush.xpose.msra.mxu0 0.0
        %1880 = vmatpush.xpose.msra.mxu0 %v1734
        %1881 = vmatpush.xpose.msra.mxu0 %v1718
        %1882 = vmatpush.xpose.msra.mxu0 %v1702
        %1883 = vmatpush.xpose.msra.mxu0 %v1686
        %1884 = vmatmul.f32.gmra.mxu0 %v1670
        %v1885 = vpop.f32.mrf.mxu0
        %v1886 = vadd.f32 %v1866, %v1885
        %1887 = vdwg.mxu0
        %1888 = vmatpush.xpose.msra.mxu0 0.0
        %1889 = vmatpush.xpose.msra.mxu0 0.0
        %1890 = vmatpush.xpose.msra.mxu0 0.0
        %1891 = vmatpush.xpose.msra.mxu0 0.0
        %1892 = vmatpush.xpose.msra.mxu0 0.0
        %1893 = vmatpush.xpose.msra.mxu0 0.0
        %1894 = vmatpush.xpose.msra.mxu0 0.0
        %1895 = vmatpush.xpose.msra.mxu0 0.0
        %1896 = vmatpush.xpose.msra.mxu0 0.0
        %1897 = vmatpush.xpose.msra.mxu0 0.0
        %1898 = vmatpush.xpose.msra.mxu0 0.0
        %1899 = vmatpush.xpose.msra.mxu0 0.0
        %1900 = vmatpush.xpose.msra.mxu0 %v1735
        %1901 = vmatpush.xpose.msra.mxu0 %v1719
        %1902 = vmatpush.xpose.msra.mxu0 %v1703
        %1903 = vmatpush.xpose.msra.mxu0 %v1687
        %1904 = vmatmul.f32.gmra.mxu0 %v1671
        %v1905 = vpop.f32.mrf.mxu0
        %v1906 = vadd.f32 %v1886, %v1905
        %1907 = vdwg.mxu0
        %1908 = vmatpush.xpose.msra.mxu0 0.0
        %1909 = vmatpush.xpose.msra.mxu0 0.0
        %1910 = vmatpush.xpose.msra.mxu0 0.0
        %1911 = vmatpush.xpose.msra.mxu0 0.0
        %1912 = vmatpush.xpose.msra.mxu0 0.0
        %1913 = vmatpush.xpose.msra.mxu0 0.0
        %1914 = vmatpush.xpose.msra.mxu0 0.0
        %1915 = vmatpush.xpose.msra.mxu0 0.0
        %1916 = vmatpush.xpose.msra.mxu0 0.0
        %1917 = vmatpush.xpose.msra.mxu0 0.0
        %1918 = vmatpush.xpose.msra.mxu0 0.0
        %1919 = vmatpush.xpose.msra.mxu0 0.0
        %1920 = vmatpush.xpose.msra.mxu0 %v1736
        %1921 = vmatpush.xpose.msra.mxu0 %v1720
        %1922 = vmatpush.xpose.msra.mxu0 %v1704
        %1923 = vmatpush.xpose.msra.mxu0 %v1688
        %1924 = vmatmul.f32.gmra.mxu0 %v1672
        %v1925 = vpop.f32.mrf.mxu0
        %v1926 = vadd.f32 %v1906, %v1925
        %1927 = vdwg.mxu0
        %1928 = vmatpush.xpose.msra.mxu0 0.0
        %1929 = vmatpush.xpose.msra.mxu0 0.0
        %1930 = vmatpush.xpose.msra.mxu0 0.0
        %1931 = vmatpush.xpose.msra.mxu0 0.0
        %1932 = vmatpush.xpose.msra.mxu0 0.0
        %1933 = vmatpush.xpose.msra.mxu0 0.0
        %1934 = vmatpush.xpose.msra.mxu0 0.0
        %1935 = vmatpush.xpose.msra.mxu0 0.0
        %1936 = vmatpush.xpose.msra.mxu0 0.0
        %1937 = vmatpush.xpose.msra.mxu0 0.0
        %1938 = vmatpush.xpose.msra.mxu0 0.0
        %1939 = vmatpush.xpose.msra.mxu0 0.0
        %1940 = vmatpush.xpose.msra.mxu0 %v1737
        %1941 = vmatpush.xpose.msra.mxu0 %v1721
        %1942 = vmatpush.xpose.msra.mxu0 %v1705
        %1943 = vmatpush.xpose.msra.mxu0 %v1689
        %1944 = vmatmul.f32.gmra.mxu0 %v1673
        %v1945 = vpop.f32.mrf.mxu0
        %v1946 = vadd.f32 %v1926, %v1945
        %1947 = vdwg.mxu0
        %1948 = vmatpush.xpose.msra.mxu0 0.0
        %1949 = vmatpush.xpose.msra.mxu0 0.0
        %1950 = vmatpush.xpose.msra.mxu0 0.0
        %1951 = vmatpush.xpose.msra.mxu0 0.0
        %1952 = vmatpush.xpose.msra.mxu0 0.0
        %1953 = vmatpush.xpose.msra.mxu0 0.0
        %1954 = vmatpush.xpose.msra.mxu0 0.0
        %1955 = vmatpush.xpose.msra.mxu0 0.0
        %1956 = vmatpush.xpose.msra.mxu0 0.0
        %1957 = vmatpush.xpose.msra.mxu0 0.0
        %1958 = vmatpush.xpose.msra.mxu0 0.0
        %1959 = vmatpush.xpose.msra.mxu0 0.0
        %1960 = vmatpush.xpose.msra.mxu0 %v1738
        %1961 = vmatpush.xpose.msra.mxu0 %v1722
        %1962 = vmatpush.xpose.msra.mxu0 %v1706
        %1963 = vmatpush.xpose.msra.mxu0 %v1690
        %1964 = vmatmul.f32.gmra.mxu0 %v1674
        %v1965 = vpop.f32.mrf.mxu0
        %v1966 = vadd.f32 %v1946, %v1965
        %1967 = vdwg.mxu0
        %1968 = vmatpush.xpose.msra.mxu0 0.0
        %1969 = vmatpush.xpose.msra.mxu0 0.0
        %1970 = vmatpush.xpose.msra.mxu0 0.0
        %1971 = vmatpush.xpose.msra.mxu0 0.0
        %1972 = vmatpush.xpose.msra.mxu0 0.0
        %1973 = vmatpush.xpose.msra.mxu0 0.0
        %1974 = vmatpush.xpose.msra.mxu0 0.0
        %1975 = vmatpush.xpose.msra.mxu0 0.0
        %1976 = vmatpush.xpose.msra.mxu0 0.0
        %1977 = vmatpush.xpose.msra.mxu0 0.0
        %1978 = vmatpush.xpose.msra.mxu0 0.0
        %1979 = vmatpush.xpose.msra.mxu0 0.0
        %1980 = vmatpush.xpose.msra.mxu0 %v1739
        %1981 = vmatpush.xpose.msra.mxu0 %v1723
        %1982 = vmatpush.xpose.msra.mxu0 %v1707
        %1983 = vmatpush.xpose.msra.mxu0 %v1691
        %1984 = vmatmul.f32.gmra.mxu0 %v1675
        %v1985 = vpop.f32.mrf.mxu0
        %v1986 = vadd.f32 %v1966, %v1985
        %1987 = vdwg.mxu0
        %1988 = vmatpush.xpose.msra.mxu0 0.0
        %1989 = vmatpush.xpose.msra.mxu0 0.0
        %1990 = vmatpush.xpose.msra.mxu0 0.0
        %1991 = vmatpush.xpose.msra.mxu0 0.0
        %1992 = vmatpush.xpose.msra.mxu0 0.0
        %1993 = vmatpush.xpose.msra.mxu0 0.0
        %1994 = vmatpush.xpose.msra.mxu0 0.0
        %1995 = vmatpush.xpose.msra.mxu0 0.0
        %1996 = vmatpush.xpose.msra.mxu0 0.0
        %1997 = vmatpush.xpose.msra.mxu0 0.0
        %1998 = vmatpush.xpose.msra.mxu0 0.0
        %1999 = vmatpush.xpose.msra.mxu0 0.0
        %2000 = vmatpush.xpose.msra.mxu0 %v1740
        %2001 = vmatpush.xpose.msra.mxu0 %v1724
        %2002 = vmatpush.xpose.msra.mxu0 %v1708
        %2003 = vmatpush.xpose.msra.mxu0 %v1692
        %2004 = vmatmul.f32.gmra.mxu0 %v1676
        %v2005 = vpop.f32.mrf.mxu0
        %v2006 = vadd.f32 %v1986, %v2005
        %2007 = vdwg.mxu0
        %2008 = vmatpush.xpose.msra.mxu0 0.0
        %2009 = vmatpush.xpose.msra.mxu0 0.0
        %2010 = vmatpush.xpose.msra.mxu0 0.0
        %2011 = vmatpush.xpose.msra.mxu0 0.0
        %2012 = vmatpush.xpose.msra.mxu0 0.0
        %2013 = vmatpush.xpose.msra.mxu0 0.0
        %2014 = vmatpush.xpose.msra.mxu0 0.0
        %2015 = vmatpush.xpose.msra.mxu0 0.0
        %2016 = vmatpush.xpose.msra.mxu0 0.0
        %2017 = vmatpush.xpose.msra.mxu0 0.0
        %2018 = vmatpush.xpose.msra.mxu0 0.0
        %2019 = vmatpush.xpose.msra.mxu0 0.0
        %2020 = vmatpush.xpose.msra.mxu0 %v1741
        %2021 = vmatpush.xpose.msra.mxu0 %v1725
        %2022 = vmatpush.xpose.msra.mxu0 %v1709
        %2023 = vmatpush.xpose.msra.mxu0 %v1693
        %2024 = vmatmul.f32.gmra.mxu0 %v1677
        %v2025 = vpop.f32.mrf.mxu0
        %v2026 = vadd.f32 %v2006, %v2025
        %2027 = vdwg.mxu0
        %2028 = vmatpush.xpose.msra.mxu0 0.0
        %2029 = vmatpush.xpose.msra.mxu0 0.0
        %2030 = vmatpush.xpose.msra.mxu0 0.0
        %2031 = vmatpush.xpose.msra.mxu0 0.0
        %2032 = vmatpush.xpose.msra.mxu0 0.0
        %2033 = vmatpush.xpose.msra.mxu0 0.0
        %2034 = vmatpush.xpose.msra.mxu0 0.0
        %2035 = vmatpush.xpose.msra.mxu0 0.0
        %2036 = vmatpush.xpose.msra.mxu0 0.0
        %2037 = vmatpush.xpose.msra.mxu0 0.0
        %2038 = vmatpush.xpose.msra.mxu0 0.0
        %2039 = vmatpush.xpose.msra.mxu0 0.0
        %2040 = vmatpush.xpose.msra.mxu0 %v1742
        %2041 = vmatpush.xpose.msra.mxu0 %v1726
        %2042 = vmatpush.xpose.msra.mxu0 %v1710
        %2043 = vmatpush.xpose.msra.mxu0 %v1694
        %2044 = vmatmul.f32.gmra.mxu0 %v1678
        %v2045 = vpop.f32.mrf.mxu0
        %v2046 = vadd.f32 %v2026, %v2045
        %2047 = vdwg.mxu0
        %2048 = vmatpush.xpose.msra.mxu0 0.0
        %2049 = vmatpush.xpose.msra.mxu0 0.0
        %2050 = vmatpush.xpose.msra.mxu0 0.0
        %2051 = vmatpush.xpose.msra.mxu0 0.0
        %2052 = vmatpush.xpose.msra.mxu0 0.0
        %2053 = vmatpush.xpose.msra.mxu0 0.0
        %2054 = vmatpush.xpose.msra.mxu0 0.0
        %2055 = vmatpush.xpose.msra.mxu0 0.0
        %2056 = vmatpush.xpose.msra.mxu0 0.0
        %2057 = vmatpush.xpose.msra.mxu0 0.0
        %2058 = vmatpush.xpose.msra.mxu0 0.0
        %2059 = vmatpush.xpose.msra.mxu0 0.0
        %2060 = vmatpush.xpose.msra.mxu0 %v1743
        %2061 = vmatpush.xpose.msra.mxu0 %v1727
        %2062 = vmatpush.xpose.msra.mxu0 %v1711
        %2063 = vmatpush.xpose.msra.mxu0 %v1695
        %2064 = vmatmul.f32.gmra.mxu0 %v1679
        %v2065 = vpop.f32.mrf.mxu0
        %v2066 = vadd.f32 %v2046, %v2065
        %2067 = vdwg.mxu0
        %v2068 = vadd.f32 %v1240, %v2066
        %v2069 = vld [vmem:[%s14] sm:$0x1]
        %v2070 = vld [vmem:[#allocation20] sm:$0x1]
        %v2071 = vsel %vm758, %v2068, 0.0
        %2072 = vadd.xlane.f32.xlu0 %v2071
        %v2073 = vpop.xlane.xlu0 %2072
        %v2074 = vmul.f32 %v2073, %v1213
        %v2075 = vsub.f32 %v2068, %v2074
        %v2076 = vmul.f32 %v2075, %v2075
        %v2077 = vsel %vm758, %v2076, 0.0
        %2078 = vadd.xlane.f32.xlu0 %v2077
        %v2079 = vpop.xlane.xlu0 %2078
        %v2080 = vmul.f32 %v2079, %v1213
        %v2081 = vadd.f32 %v2080, 1e-05
        %v2082 = vrsqrt.pop %v2081
        %v2083 = vmul.f32 %v2082, %v2081
        %v2084 = vmul.f32 %v2083, %v2082
        %v2085 = vmul.f32 0.5, %v2084
        %v2086 = vsub.f32 1.5, %v2085
        %v2087 = vmul.f32 %v2082, %v2086
        %vm2088 = vweird.f32 %v2081
        %vm2089 = vweird.f32 %v2082
        %vm2090 = vmor %vm2088, %vm2089
        %v2091 = vsel %vm2090, %v2082, %v2087
        %v2092 = vmul.f32 %v2075, %v2091
        %v2094 = vperm.slane %v2069, 0
        %v2096 = vmul.f32 %v2092, %v2094
        %v2098 = vperm.slane %v2070, 0
        %v2100 = vadd.f32 %v2096, %v2098
        %s2101 = scalar_lea.vmem [#allocation10], 32
        %v2102 = vld [vmem:[%s2101] sm:$0xff]
        %v2103 = vld [vmem:[%s2101 + $0x8] sm:$0xff]
        %v2104 = vld [vmem:[%s2101 + $0x10] sm:$0xff]
        %v2105 = vld [vmem:[%s2101 + $0x18] sm:$0xff]
        %s2106 = scalar_lea.vmem %s5, 1
        %v2107 = vld [vmem:[%s2106] sm:$0x1]
        %v2109 = vperm.slane %v2107, 0
        %v2112 = vsel %vm758, %v2100, 0
        %2114 = vmatpush.msra.mxu0 0.0
        %2115 = vmatpush.msra.mxu0 0.0
        %2116 = vmatpush.msra.mxu0 0.0
        %2117 = vmatpush.msra.mxu0 0.0
        %2118 = vmatpush.msra.mxu0 0.0
        %2119 = vmatpush.msra.mxu0 0.0
        %2120 = vmatpush.msra.mxu0 0.0
        %2121 = vmatpush.msra.mxu0 0.0
        %2122 = vmatpush.msra.mxu0 0.0
        %2123 = vmatpush.msra.mxu0 0.0
        %2124 = vmatpush.msra.mxu0 0.0
        %2125 = vmatpush.msra.mxu0 0.0
        %2126 = vmatpush.msra.mxu0 %v2105
        %2127 = vmatpush.msra.mxu0 %v2104
        %2128 = vmatpush.msra.mxu0 %v2103
        %2129 = vmatpush.msra.mxu0 %v2102
        %2130 = vmatmul.f32.gmra.mxu0 %v2112
        %v2131 = vpop.f32.mrf.mxu0
        %v2132 = vadd.f32 %v2109, %v2131
        %2133 = vdwg.mxu0
        %2135 = vrot.lane.b32.xlu0 %v2132, 120
        %v2136 = vpop.permute.xlu0 %2135
        %2137 = vrot.lane.b32.xlu0 %v2132, 112
        %v2138 = vpop.permute.xlu0 %2137
        %2139 = vrot.lane.b32.xlu0 %v2132, 104
        %v2140 = vpop.permute.xlu0 %2139
        %2141 = vrot.lane.b32.xlu0 %v2132, 96
        %v2142 = vpop.permute.xlu0 %2141
        %v2143 = vsel %vm791, %v2132, 0
        %v2145 = vsel %vm791, %v2142, 0
        %2147 = vmatpush.xpose.msra.mxu0 0.0
        %2148 = vmatpush.xpose.msra.mxu0 0.0
        %2149 = vmatpush.xpose.msra.mxu0 0.0
        %2150 = vmatpush.xpose.msra.mxu0 0.0
        %2151 = vmatpush.xpose.msra.mxu0 0.0
        %2152 = vmatpush.xpose.msra.mxu0 0.0
        %2153 = vmatpush.xpose.msra.mxu0 0.0
        %2154 = vmatpush.xpose.msra.mxu0 0.0
        %2155 = vmatpush.xpose.msra.mxu0 0.0
        %2156 = vmatpush.xpose.msra.mxu0 0.0
        %2157 = vmatpush.xpose.msra.mxu0 0.0
        %2158 = vmatpush.xpose.msra.mxu0 0.0
        %2159 = vmatpush.xpose.msra.mxu0 0.0
        %2160 = vmatpush.xpose.msra.mxu0 0.0
        %2161 = vmatpush.xpose.msra.mxu0 0.0
        %2162 = vmatpush.xpose.msra.mxu0 %v2145
        %2163 = vmatmul.f32.gmra.mxu0 %v2143
        %v2164 = vpop.f32.mrf.mxu0
        %v2165 = vadd.f32 0.0, %v2164
        %2166 = vdwg.mxu0
        %2167 = vrot.lane.b32.xlu0 %v2136, 96
        %v2168 = vpop.permute.xlu0 %2167
        %v2169 = vsel %vm791, %v2136, 0
        %v2171 = vsel %vm791, %v2168, 0
        %2173 = vmatpush.xpose.msra.mxu0 0.0
        %2174 = vmatpush.xpose.msra.mxu0 0.0
        %2175 = vmatpush.xpose.msra.mxu0 0.0
        %2176 = vmatpush.xpose.msra.mxu0 0.0
        %2177 = vmatpush.xpose.msra.mxu0 0.0
        %2178 = vmatpush.xpose.msra.mxu0 0.0
        %2179 = vmatpush.xpose.msra.mxu0 0.0
        %2180 = vmatpush.xpose.msra.mxu0 0.0
        %2181 = vmatpush.xpose.msra.mxu0 0.0
        %2182 = vmatpush.xpose.msra.mxu0 0.0
        %2183 = vmatpush.xpose.msra.mxu0 0.0
        %2184 = vmatpush.xpose.msra.mxu0 0.0
        %2185 = vmatpush.xpose.msra.mxu0 0.0
        %2186 = vmatpush.xpose.msra.mxu0 0.0
        %2187 = vmatpush.xpose.msra.mxu0 0.0
        %2188 = vmatpush.xpose.msra.mxu0 %v2171
        %2189 = vmatmul.f32.gmra.mxu0 %v2169
        %v2190 = vpop.f32.mrf.mxu0
        %v2191 = vadd.f32 0.0, %v2190
        %2192 = vdwg.mxu0
        %2193 = vrot.lane.b32.xlu0 %v2138, 96
        %v2194 = vpop.permute.xlu0 %2193
        %v2195 = vsel %vm791, %v2138, 0
        %v2197 = vsel %vm791, %v2194, 0
        %2199 = vmatpush.xpose.msra.mxu0 0.0
        %2200 = vmatpush.xpose.msra.mxu0 0.0
        %2201 = vmatpush.xpose.msra.mxu0 0.0
        %2202 = vmatpush.xpose.msra.mxu0 0.0
        %2203 = vmatpush.xpose.msra.mxu0 0.0
        %2204 = vmatpush.xpose.msra.mxu0 0.0
        %2205 = vmatpush.xpose.msra.mxu0 0.0
        %2206 = vmatpush.xpose.msra.mxu0 0.0
        %2207 = vmatpush.xpose.msra.mxu0 0.0
        %2208 = vmatpush.xpose.msra.mxu0 0.0
        %2209 = vmatpush.xpose.msra.mxu0 0.0
        %2210 = vmatpush.xpose.msra.mxu0 0.0
        %2211 = vmatpush.xpose.msra.mxu0 0.0
        %2212 = vmatpush.xpose.msra.mxu0 0.0
        %2213 = vmatpush.xpose.msra.mxu0 0.0
        %2214 = vmatpush.xpose.msra.mxu0 %v2197
        %2215 = vmatmul.f32.gmra.mxu0 %v2195
        %v2216 = vpop.f32.mrf.mxu0
        %v2217 = vadd.f32 0.0, %v2216
        %2218 = vdwg.mxu0
        %2219 = vrot.lane.b32.xlu0 %v2140, 96
        %v2220 = vpop.permute.xlu0 %2219
        %v2221 = vsel %vm791, %v2140, 0
        %v2223 = vsel %vm791, %v2220, 0
        %2225 = vmatpush.xpose.msra.mxu0 0.0
        %2226 = vmatpush.xpose.msra.mxu0 0.0
        %2227 = vmatpush.xpose.msra.mxu0 0.0
        %2228 = vmatpush.xpose.msra.mxu0 0.0
        %2229 = vmatpush.xpose.msra.mxu0 0.0
        %2230 = vmatpush.xpose.msra.mxu0 0.0
        %2231 = vmatpush.xpose.msra.mxu0 0.0
        %2232 = vmatpush.xpose.msra.mxu0 0.0
        %2233 = vmatpush.xpose.msra.mxu0 0.0
        %2234 = vmatpush.xpose.msra.mxu0 0.0
        %2235 = vmatpush.xpose.msra.mxu0 0.0
        %2236 = vmatpush.xpose.msra.mxu0 0.0
        %2237 = vmatpush.xpose.msra.mxu0 0.0
        %2238 = vmatpush.xpose.msra.mxu0 0.0
        %2239 = vmatpush.xpose.msra.mxu0 0.0
        %2240 = vmatpush.xpose.msra.mxu0 %v2223
        %2241 = vmatmul.f32.gmra.mxu0 %v2221
        %v2242 = vpop.f32.mrf.mxu0
        %v2243 = vadd.f32 0.0, %v2242
        %2244 = vdwg.mxu0
        %v2245 = vmul.f32 %v2165, 0.35355338
        %v2246 = vmul.f32 %v2191, 0.35355338
        %v2247 = vmul.f32 %v2217, 0.35355338
        %v2248 = vmul.f32 %v2243, 0.35355338
        %v2249 = vsel %vm791, %v2245, -inf
        %2250 = vmax.xlane.f32.xlu0 %v2249
        %v2251 = vpop.xlane.xlu0 %2250
        %v2252 = vsel %vm791, %v2246, -inf
        %2253 = vmax.xlane.f32.xlu0 %v2252
        %v2254 = vpop.xlane.xlu0 %2253
        %v2255 = vsel %vm791, %v2247, -inf
        %2256 = vmax.xlane.f32.xlu0 %v2255
        %v2257 = vpop.xlane.xlu0 %2256
        %v2258 = vsel %vm791, %v2248, -inf
        %2259 = vmax.xlane.f32.xlu0 %v2258
        %v2260 = vpop.xlane.xlu0 %2259
        %v2261 = vsub.f32 %v2245, %v2251
        %v2262 = vsub.f32 %v2246, %v2254
        %v2263 = vsub.f32 %v2247, %v2257
        %v2264 = vsub.f32 %v2248, %v2260
        %v2265 = vmul.f32 %v2261, 1.442695
        %v2266 = vpow.pop %v2265
        %v2267 = vmul.f32 %v2262, 1.442695
        %v2268 = vpow.pop %v2267
        %v2269 = vmul.f32 %v2263, 1.442695
        %v2270 = vpow.pop %v2269
        %v2271 = vmul.f32 %v2264, 1.442695
        %v2272 = vpow.pop %v2271
        %v2273 = vsel %vm791, %v2266, 0.0
        %2274 = vadd.xlane.f32.xlu0 %v2273
        %v2275 = vpop.xlane.xlu0 %2274
        %v2276 = vsel %vm791, %v2268, 0.0
        %2277 = vadd.xlane.f32.xlu0 %v2276
        %v2278 = vpop.xlane.xlu0 %2277
        %v2279 = vsel %vm791, %v2270, 0.0
        %2280 = vadd.xlane.f32.xlu0 %v2279
        %v2281 = vpop.xlane.xlu0 %2280
        %v2282 = vsel %vm791, %v2272, 0.0
        %2283 = vadd.xlane.f32.xlu0 %v2282
        %v2284 = vpop.xlane.xlu0 %2283
        %v2285 = vrcp.pop %v2275
        %v2286 = vmul.f32 %v2275, %v2285
        %v2287 = vsub.f32 1.0, %v2286
        %v2288 = vmul.f32 %v2285, %v2287
        %v2289 = vadd.f32 %v2285, %v2288
        %vm2290 = vweird.f32 %v2275
        %vm2291 = vweird.f32 %v2285
        %vm2292 = vmor %vm2290, %vm2291
        %v2293 = vsel %vm2292, %v2285, %v2289
        %v2294 = vand.u32 2147483647, %v2275
        %vm2295 = vcmp.eq.f32.partialorder %v2294, 8.507059e+37
        %v2296 = vand.u32 %v2275, 2147483648
        %v2297 = vor.u32 1.1754944e-38, %v2296
        %v2298 = vsel %vm2295, %v2297, %v2293
        %v2299 = vmul.f32 %v2266, %v2298
        %v2300 = vrcp.pop %v2278
        %v2301 = vmul.f32 %v2278, %v2300
        %v2302 = vsub.f32 1.0, %v2301
        %v2303 = vmul.f32 %v2300, %v2302
        %v2304 = vadd.f32 %v2300, %v2303
        %vm2305 = vweird.f32 %v2278
        %vm2306 = vweird.f32 %v2300
        %vm2307 = vmor %vm2305, %vm2306
        %v2308 = vsel %vm2307, %v2300, %v2304
        %v2309 = vand.u32 2147483647, %v2278
        %vm2310 = vcmp.eq.f32.partialorder %v2309, 8.507059e+37
        %v2311 = vand.u32 %v2278, 2147483648
        %v2312 = vor.u32 1.1754944e-38, %v2311
        %v2313 = vsel %vm2310, %v2312, %v2308
        %v2314 = vmul.f32 %v2268, %v2313
        %v2315 = vrcp.pop %v2281
        %v2316 = vmul.f32 %v2281, %v2315
        %v2317 = vsub.f32 1.0, %v2316
        %v2318 = vmul.f32 %v2315, %v2317
        %v2319 = vadd.f32 %v2315, %v2318
        %vm2320 = vweird.f32 %v2281
        %vm2321 = vweird.f32 %v2315
        %vm2322 = vmor %vm2320, %vm2321
        %v2323 = vsel %vm2322, %v2315, %v2319
        %v2324 = vand.u32 2147483647, %v2281
        %vm2325 = vcmp.eq.f32.partialorder %v2324, 8.507059e+37
        %v2326 = vand.u32 %v2281, 2147483648
        %v2327 = vor.u32 1.1754944e-38, %v2326
        %v2328 = vsel %vm2325, %v2327, %v2323
        %v2329 = vmul.f32 %v2270, %v2328
        %v2330 = vrcp.pop %v2284
        %v2331 = vmul.f32 %v2284, %v2330
        %v2332 = vsub.f32 1.0, %v2331
        %v2333 = vmul.f32 %v2330, %v2332
        %v2334 = vadd.f32 %v2330, %v2333
        %vm2335 = vweird.f32 %v2284
        %vm2336 = vweird.f32 %v2330
        %vm2337 = vmor %vm2335, %vm2336
        %v2338 = vsel %vm2337, %v2330, %v2334
        %v2339 = vand.u32 2147483647, %v2284
        %vm2340 = vcmp.eq.f32.partialorder %v2339, 8.507059e+37
        %v2341 = vand.u32 %v2284, 2147483648
        %v2342 = vor.u32 1.1754944e-38, %v2341
        %v2343 = vsel %vm2340, %v2342, %v2338
        %v2344 = vmul.f32 %v2272, %v2343
        %2345 = vrot.lane.b32.xlu0 %v2132, 64
        %v2346 = vpop.permute.xlu0 %2345
        %v2349 = vsel %vm791, %v2299, 0
        %2351 = vmatpush.msra.mxu0 0.0
        %2352 = vmatpush.msra.mxu0 0.0
        %2353 = vmatpush.msra.mxu0 0.0
        %2354 = vmatpush.msra.mxu0 0.0
        %2355 = vmatpush.msra.mxu0 0.0
        %2356 = vmatpush.msra.mxu0 0.0
        %2357 = vmatpush.msra.mxu0 0.0
        %2358 = vmatpush.msra.mxu0 0.0
        %2359 = vmatpush.msra.mxu0 0.0
        %2360 = vmatpush.msra.mxu0 0.0
        %2361 = vmatpush.msra.mxu0 0.0
        %2362 = vmatpush.msra.mxu0 0.0
        %2363 = vmatpush.msra.mxu0 0.0
        %2364 = vmatpush.msra.mxu0 0.0
        %2365 = vmatpush.msra.mxu0 0.0
        %2366 = vmatpush.msra.mxu0 %v2346
        %2367 = vmatmul.f32.gmra.mxu0 %v2349
        %v2368 = vpop.f32.mrf.mxu0
        %v2369 = vadd.f32 0.0, %v2368
        %2370 = vdwg.mxu0
        %2371 = vrot.lane.b32.xlu0 %v2136, 64
        %v2372 = vpop.permute.xlu0 %2371
        %v2375 = vsel %vm791, %v2314, 0
        %2377 = vmatpush.msra.mxu0 0.0
        %2378 = vmatpush.msra.mxu0 0.0
        %2379 = vmatpush.msra.mxu0 0.0
        %2380 = vmatpush.msra.mxu0 0.0
        %2381 = vmatpush.msra.mxu0 0.0
        %2382 = vmatpush.msra.mxu0 0.0
        %2383 = vmatpush.msra.mxu0 0.0
        %2384 = vmatpush.msra.mxu0 0.0
        %2385 = vmatpush.msra.mxu0 0.0
        %2386 = vmatpush.msra.mxu0 0.0
        %2387 = vmatpush.msra.mxu0 0.0
        %2388 = vmatpush.msra.mxu0 0.0
        %2389 = vmatpush.msra.mxu0 0.0
        %2390 = vmatpush.msra.mxu0 0.0
        %2391 = vmatpush.msra.mxu0 0.0
        %2392 = vmatpush.msra.mxu0 %v2372
        %2393 = vmatmul.f32.gmra.mxu0 %v2375
        %v2394 = vpop.f32.mrf.mxu0
        %v2395 = vadd.f32 0.0, %v2394
        %2396 = vdwg.mxu0
        %2397 = vrot.lane.b32.xlu0 %v2138, 64
        %v2398 = vpop.permute.xlu0 %2397
        %v2401 = vsel %vm791, %v2329, 0
        %2403 = vmatpush.msra.mxu0 0.0
        %2404 = vmatpush.msra.mxu0 0.0
        %2405 = vmatpush.msra.mxu0 0.0
        %2406 = vmatpush.msra.mxu0 0.0
        %2407 = vmatpush.msra.mxu0 0.0
        %2408 = vmatpush.msra.mxu0 0.0
        %2409 = vmatpush.msra.mxu0 0.0
        %2410 = vmatpush.msra.mxu0 0.0
        %2411 = vmatpush.msra.mxu0 0.0
        %2412 = vmatpush.msra.mxu0 0.0
        %2413 = vmatpush.msra.mxu0 0.0
        %2414 = vmatpush.msra.mxu0 0.0
        %2415 = vmatpush.msra.mxu0 0.0
        %2416 = vmatpush.msra.mxu0 0.0
        %2417 = vmatpush.msra.mxu0 0.0
        %2418 = vmatpush.msra.mxu0 %v2398
        %2419 = vmatmul.f32.gmra.mxu0 %v2401
        %v2420 = vpop.f32.mrf.mxu0
        %v2421 = vadd.f32 0.0, %v2420
        %2422 = vdwg.mxu0
        %2423 = vrot.lane.b32.xlu0 %v2140, 64
        %v2424 = vpop.permute.xlu0 %2423
        %v2427 = vsel %vm791, %v2344, 0
        %2429 = vmatpush.msra.mxu0 0.0
        %2430 = vmatpush.msra.mxu0 0.0
        %2431 = vmatpush.msra.mxu0 0.0
        %2432 = vmatpush.msra.mxu0 0.0
        %2433 = vmatpush.msra.mxu0 0.0
        %2434 = vmatpush.msra.mxu0 0.0
        %2435 = vmatpush.msra.mxu0 0.0
        %2436 = vmatpush.msra.mxu0 0.0
        %2437 = vmatpush.msra.mxu0 0.0
        %2438 = vmatpush.msra.mxu0 0.0
        %2439 = vmatpush.msra.mxu0 0.0
        %2440 = vmatpush.msra.mxu0 0.0
        %2441 = vmatpush.msra.mxu0 0.0
        %2442 = vmatpush.msra.mxu0 0.0
        %2443 = vmatpush.msra.mxu0 0.0
        %2444 = vmatpush.msra.mxu0 %v2424
        %2445 = vmatmul.f32.gmra.mxu0 %v2427
        %v2446 = vpop.f32.mrf.mxu0
        %v2447 = vadd.f32 0.0, %v2446
        %2448 = vdwg.mxu0
        %s2449 = scalar_lea.vmem [#allocation11], 32
        %v2450 = vld [vmem:[%s2449] sm:$0xff]
        %v2451 = vld [vmem:[%s2449 + $0x8] sm:$0xff]
        %v2452 = vld [vmem:[%s2449 + $0x10] sm:$0xff]
        %v2453 = vld [vmem:[%s2449 + $0x18] sm:$0xff]
        %v2455 = vsel %vm791, %v2395, 0
        %2457 = vmatpush.msra.mxu0 0.0
        %2458 = vmatpush.msra.mxu0 0.0
        %2459 = vmatpush.msra.mxu0 0.0
        %2460 = vmatpush.msra.mxu0 0.0
        %2461 = vmatpush.msra.mxu0 0.0
        %2462 = vmatpush.msra.mxu0 0.0
        %2463 = vmatpush.msra.mxu0 0.0
        %2464 = vmatpush.msra.mxu0 0.0
        %2465 = vmatpush.msra.mxu0 0.0
        %2466 = vmatpush.msra.mxu0 0.0
        %2467 = vmatpush.msra.mxu0 0.0
        %2468 = vmatpush.msra.mxu0 0.0
        %2469 = vmatpush.msra.mxu0 0.0
        %2470 = vmatpush.msra.mxu0 0.0
        %2471 = vmatpush.msra.mxu0 0.0
        %2472 = vmatpush.msra.mxu0 %v2451
        %2473 = vmatmul.f32.gmra.mxu0 %v2455
        %v2474 = vpop.f32.mrf.mxu0
        %v2475 = vadd.f32 0.0, %v2474
        %2476 = vdwg.mxu0
        %v2478 = vsel %vm791, %v2369, 0
        %2480 = vmatpush.msra.mxu0 0.0
        %2481 = vmatpush.msra.mxu0 0.0
        %2482 = vmatpush.msra.mxu0 0.0
        %2483 = vmatpush.msra.mxu0 0.0
        %2484 = vmatpush.msra.mxu0 0.0
        %2485 = vmatpush.msra.mxu0 0.0
        %2486 = vmatpush.msra.mxu0 0.0
        %2487 = vmatpush.msra.mxu0 0.0
        %2488 = vmatpush.msra.mxu0 0.0
        %2489 = vmatpush.msra.mxu0 0.0
        %2490 = vmatpush.msra.mxu0 0.0
        %2491 = vmatpush.msra.mxu0 0.0
        %2492 = vmatpush.msra.mxu0 0.0
        %2493 = vmatpush.msra.mxu0 0.0
        %2494 = vmatpush.msra.mxu0 0.0
        %2495 = vmatpush.msra.mxu0 %v2450
        %2496 = vmatmul.f32.gmra.mxu0 %v2478
        %v2497 = vpop.f32.mrf.mxu0
        %v2498 = vadd.f32 %v2475, %v2497
        %2499 = vdwg.mxu0
        %v2501 = vsel %vm791, %v2421, 0
        %2503 = vmatpush.msra.mxu0 0.0
        %2504 = vmatpush.msra.mxu0 0.0
        %2505 = vmatpush.msra.mxu0 0.0
        %2506 = vmatpush.msra.mxu0 0.0
        %2507 = vmatpush.msra.mxu0 0.0
        %2508 = vmatpush.msra.mxu0 0.0
        %2509 = vmatpush.msra.mxu0 0.0
        %2510 = vmatpush.msra.mxu0 0.0
        %2511 = vmatpush.msra.mxu0 0.0
        %2512 = vmatpush.msra.mxu0 0.0
        %2513 = vmatpush.msra.mxu0 0.0
        %2514 = vmatpush.msra.mxu0 0.0
        %2515 = vmatpush.msra.mxu0 0.0
        %2516 = vmatpush.msra.mxu0 0.0
        %2517 = vmatpush.msra.mxu0 0.0
        %2518 = vmatpush.msra.mxu0 %v2452
        %2519 = vmatmul.f32.gmra.mxu0 %v2501
        %v2520 = vpop.f32.mrf.mxu0
        %v2521 = vadd.f32 0.0, %v2520
        %2522 = vdwg.mxu0
        %v2523 = vadd.f32 %v2498, %v2521
        %v2525 = vsel %vm791, %v2447, 0
        %2527 = vmatpush.msra.mxu0 0.0
        %2528 = vmatpush.msra.mxu0 0.0
        %2529 = vmatpush.msra.mxu0 0.0
        %2530 = vmatpush.msra.mxu0 0.0
        %2531 = vmatpush.msra.mxu0 0.0
        %2532 = vmatpush.msra.mxu0 0.0
        %2533 = vmatpush.msra.mxu0 0.0
        %2534 = vmatpush.msra.mxu0 0.0
        %2535 = vmatpush.msra.mxu0 0.0
        %2536 = vmatpush.msra.mxu0 0.0
        %2537 = vmatpush.msra.mxu0 0.0
        %2538 = vmatpush.msra.mxu0 0.0
        %2539 = vmatpush.msra.mxu0 0.0
        %2540 = vmatpush.msra.mxu0 0.0
        %2541 = vmatpush.msra.mxu0 0.0
        %2542 = vmatpush.msra.mxu0 %v2453
        %2543 = vmatmul.f32.gmra.mxu0 %v2525
        %v2544 = vpop.f32.mrf.mxu0
        %v2545 = vadd.f32 0.0, %v2544
        %2546 = vdwg.mxu0
        %v2547 = vadd.f32 %v2523, %v2545
        %s2548 = scalar_lea.vmem %s7, 1
        %v2549 = vld [vmem:[%s2548] sm:$0x1]
        %v2551 = vperm.slane %v2549, 0
        %v2553 = vadd.f32 %v2547, %v2551
        %v2554 = vadd.f32 %v2100, %v2553
        %s2555 = scalar_lea.vmem [#allocation13], 1
        %v2556 = vld [vmem:[%s2555] sm:$0x1]
        %s2557 = scalar_lea.vmem [#allocation14], 1
        %v2558 = vld [vmem:[%s2557] sm:$0x1]
        %v2559 = vsel %vm758, %v2554, 0.0
        %2560 = vadd.xlane.f32.xlu0 %v2559
        %v2561 = vpop.xlane.xlu0 %2560
        %v2562 = vmul.f32 %v2561, %v1213
        %v2563 = vsub.f32 %v2554, %v2562
        %v2564 = vmul.f32 %v2563, %v2563
        %v2565 = vsel %vm758, %v2564, 0.0
        %2566 = vadd.xlane.f32.xlu0 %v2565
        %v2567 = vpop.xlane.xlu0 %2566
        %v2568 = vmul.f32 %v2567, %v1213
        %v2569 = vadd.f32 %v2568, 1e-05
        %v2570 = vrsqrt.pop %v2569
        %v2571 = vmul.f32 %v2570, %v2569
        %v2572 = vmul.f32 %v2571, %v2570
        %v2573 = vmul.f32 0.5, %v2572
        %v2574 = vsub.f32 1.5, %v2573
        %v2575 = vmul.f32 %v2570, %v2574
        %vm2576 = vweird.f32 %v2569
        %vm2577 = vweird.f32 %v2570
        %vm2578 = vmor %vm2576, %vm2577
        %v2579 = vsel %vm2578, %v2570, %v2575
        %v2580 = vmul.f32 %v2563, %v2579
        %v2582 = vperm.slane %v2556, 0
        %v2584 = vmul.f32 %v2580, %v2582
        %v2586 = vperm.slane %v2558, 0
        %v2588 = vadd.f32 %v2584, %v2586
        %s2589 = scalar_lea.vmem [#allocation16], 512
        %v2590 = vld [vmem:[%s2589] sm:$0xff]
        %v2591 = vld [vmem:[%s2589 + $0x8] sm:$0xff]
        %v2592 = vld [vmem:[%s2589 + $0x10] sm:$0xff]
        %v2593 = vld [vmem:[%s2589 + $0x18] sm:$0xff]
        %v2594 = vld [vmem:[%s2589 + $0x20] sm:$0xff]
        %v2595 = vld [vmem:[%s2589 + $0x28] sm:$0xff]
        %v2596 = vld [vmem:[%s2589 + $0x30] sm:$0xff]
        %v2597 = vld [vmem:[%s2589 + $0x38] sm:$0xff]
        %v2598 = vld [vmem:[%s2589 + $0x40] sm:$0xff]
        %v2599 = vld [vmem:[%s2589 + $0x48] sm:$0xff]
        %v2600 = vld [vmem:[%s2589 + $0x50] sm:$0xff]
        %v2601 = vld [vmem:[%s2589 + $0x58] sm:$0xff]
        %v2602 = vld [vmem:[%s2589 + $0x60] sm:$0xff]
        %v2603 = vld [vmem:[%s2589 + $0x68] sm:$0xff]
        %v2604 = vld [vmem:[%s2589 + $0x70] sm:$0xff]
        %v2605 = vld [vmem:[%s2589 + $0x78] sm:$0xff]
        %v2606 = vld [vmem:[%s2589 + $0x80] sm:$0xff]
        %v2607 = vld [vmem:[%s2589 + $0x88] sm:$0xff]
        %v2608 = vld [vmem:[%s2589 + $0x90] sm:$0xff]
        %v2609 = vld [vmem:[%s2589 + $0x98] sm:$0xff]
        %v2610 = vld [vmem:[%s2589 + $0xa0] sm:$0xff]
        %v2611 = vld [vmem:[%s2589 + $0xa8] sm:$0xff]
        %v2612 = vld [vmem:[%s2589 + $0xb0] sm:$0xff]
        %v2613 = vld [vmem:[%s2589 + $0xb8] sm:$0xff]
        %v2614 = vld [vmem:[%s2589 + $0xc0] sm:$0xff]
        %v2615 = vld [vmem:[%s2589 + $0xc8] sm:$0xff]
        %v2616 = vld [vmem:[%s2589 + $0xd0] sm:$0xff]
        %v2617 = vld [vmem:[%s2589 + $0xd8] sm:$0xff]
        %v2618 = vld [vmem:[%s2589 + $0xe0] sm:$0xff]
        %v2619 = vld [vmem:[%s2589 + $0xe8] sm:$0xff]
        %v2620 = vld [vmem:[%s2589 + $0xf0] sm:$0xff]
        %v2621 = vld [vmem:[%s2589 + $0xf8] sm:$0xff]
        %v2622 = vld [vmem:[%s2589 + $0x100] sm:$0xff]
        %v2623 = vld [vmem:[%s2589 + $0x108] sm:$0xff]
        %v2624 = vld [vmem:[%s2589 + $0x110] sm:$0xff]
        %v2625 = vld [vmem:[%s2589 + $0x118] sm:$0xff]
        %v2626 = vld [vmem:[%s2589 + $0x120] sm:$0xff]
        %v2627 = vld [vmem:[%s2589 + $0x128] sm:$0xff]
        %v2628 = vld [vmem:[%s2589 + $0x130] sm:$0xff]
        %v2629 = vld [vmem:[%s2589 + $0x138] sm:$0xff]
        %v2630 = vld [vmem:[%s2589 + $0x140] sm:$0xff]
        %v2631 = vld [vmem:[%s2589 + $0x148] sm:$0xff]
        %v2632 = vld [vmem:[%s2589 + $0x150] sm:$0xff]
        %v2633 = vld [vmem:[%s2589 + $0x158] sm:$0xff]
        %v2634 = vld [vmem:[%s2589 + $0x160] sm:$0xff]
        %v2635 = vld [vmem:[%s2589 + $0x168] sm:$0xff]
        %v2636 = vld [vmem:[%s2589 + $0x170] sm:$0xff]
        %v2637 = vld [vmem:[%s2589 + $0x178] sm:$0xff]
        %v2638 = vld [vmem:[%s2589 + $0x180] sm:$0xff]
        %v2639 = vld [vmem:[%s2589 + $0x188] sm:$0xff]
        %v2640 = vld [vmem:[%s2589 + $0x190] sm:$0xff]
        %v2641 = vld [vmem:[%s2589 + $0x198] sm:$0xff]
        %v2642 = vld [vmem:[%s2589 + $0x1a0] sm:$0xff]
        %v2643 = vld [vmem:[%s2589 + $0x1a8] sm:$0xff]
        %v2644 = vld [vmem:[%s2589 + $0x1b0] sm:$0xff]
        %v2645 = vld [vmem:[%s2589 + $0x1b8] sm:$0xff]
        %v2646 = vld [vmem:[%s2589 + $0x1c0] sm:$0xff]
        %v2647 = vld [vmem:[%s2589 + $0x1c8] sm:$0xff]
        %v2648 = vld [vmem:[%s2589 + $0x1d0] sm:$0xff]
        %v2649 = vld [vmem:[%s2589 + $0x1d8] sm:$0xff]
        %v2650 = vld [vmem:[%s2589 + $0x1e0] sm:$0xff]
        %v2651 = vld [vmem:[%s2589 + $0x1e8] sm:$0xff]
        %v2652 = vld [vmem:[%s2589 + $0x1f0] sm:$0xff]
        %v2653 = vld [vmem:[%s2589 + $0x1f8] sm:$0xff]
        %s2654 = scalar_lea.vmem [#allocation17], 16
        %v2655 = vld [vmem:[%s2654] sm:$0xff]
        %v2656 = vld [vmem:[%s2654 + $0x8] sm:$0xff]
        %v2659 = vperm.slane %v2655, 0
        %v2660 = vperm.slane %v2655, 1
        %v2661 = vperm.slane %v2655, 2
        %v2662 = vperm.slane %v2655, 3
        %v2663 = vperm.slane %v2655, 4
        %v2664 = vperm.slane %v2655, 5
        %v2665 = vperm.slane %v2655, 6
        %v2666 = vperm.slane %v2655, 7
        %v2667 = vperm.slane %v2656, 0
        %v2668 = vperm.slane %v2656, 1
        %v2669 = vperm.slane %v2656, 2
        %v2670 = vperm.slane %v2656, 3
        %v2671 = vperm.slane %v2656, 4
        %v2672 = vperm.slane %v2656, 5
        %v2673 = vperm.slane %v2656, 6
        %v2674 = vperm.slane %v2656, 7
        %v2692 = vsel %vm758, %v2588, 0
        %2694 = vmatpush.msra.mxu0 0.0
        %2695 = vmatpush.msra.mxu0 0.0
        %2696 = vmatpush.msra.mxu0 0.0
        %2697 = vmatpush.msra.mxu0 0.0
        %2698 = vmatpush.msra.mxu0 0.0
        %2699 = vmatpush.msra.mxu0 0.0
        %2700 = vmatpush.msra.mxu0 0.0
        %2701 = vmatpush.msra.mxu0 0.0
        %2702 = vmatpush.msra.mxu0 0.0
        %2703 = vmatpush.msra.mxu0 0.0
        %2704 = vmatpush.msra.mxu0 0.0
        %2705 = vmatpush.msra.mxu0 0.0
        %2706 = vmatpush.msra.mxu0 %v2638
        %2707 = vmatpush.msra.mxu0 %v2622
        %2708 = vmatpush.msra.mxu0 %v2606
        %2709 = vmatpush.msra.mxu0 %v2590
        %2710 = vmatmul.f32.gmra.mxu0 %v2692
        %v2711 = vpop.f32.mrf.mxu0
        %v2712 = vadd.f32 %v2659, %v2711
        %2713 = vdwg.mxu0
        %2714 = vmatpush.msra.mxu0 0.0
        %2715 = vmatpush.msra.mxu0 0.0
        %2716 = vmatpush.msra.mxu0 0.0
        %2717 = vmatpush.msra.mxu0 0.0
        %2718 = vmatpush.msra.mxu0 0.0
        %2719 = vmatpush.msra.mxu0 0.0
        %2720 = vmatpush.msra.mxu0 0.0
        %2721 = vmatpush.msra.mxu0 0.0
        %2722 = vmatpush.msra.mxu0 0.0
        %2723 = vmatpush.msra.mxu0 0.0
        %2724 = vmatpush.msra.mxu0 0.0
        %2725 = vmatpush.msra.mxu0 0.0
        %2726 = vmatpush.msra.mxu0 %v2639
        %2727 = vmatpush.msra.mxu0 %v2623
        %2728 = vmatpush.msra.mxu0 %v2607
        %2729 = vmatpush.msra.mxu0 %v2591
        %2730 = vmatmul.f32.gmra.mxu0 %v2692
        %v2731 = vpop.f32.mrf.mxu0
        %v2732 = vadd.f32 %v2660, %v2731
        %2733 = vdwg.mxu0
        %2734 = vmatpush.msra.mxu0 0.0
        %2735 = vmatpush.msra.mxu0 0.0
        %2736 = vmatpush.msra.mxu0 0.0
        %2737 = vmatpush.msra.mxu0 0.0
        %2738 = vmatpush.msra.mxu0 0.0
        %2739 = vmatpush.msra.mxu0 0.0
        %2740 = vmatpush.msra.mxu0 0.0
        %2741 = vmatpush.msra.mxu0 0.0
        %2742 = vmatpush.msra.mxu0 0.0
        %2743 = vmatpush.msra.mxu0 0.0
        %2744 = vmatpush.msra.mxu0 0.0
        %2745 = vmatpush.msra.mxu0 0.0
        %2746 = vmatpush.msra.mxu0 %v2640
        %2747 = vmatpush.msra.mxu0 %v2624
        %2748 = vmatpush.msra.mxu0 %v2608
        %2749 = vmatpush.msra.mxu0 %v2592
        %2750 = vmatmul.f32.gmra.mxu0 %v2692
        %v2751 = vpop.f32.mrf.mxu0
        %v2752 = vadd.f32 %v2661, %v2751
        %2753 = vdwg.mxu0
        %2754 = vmatpush.msra.mxu0 0.0
        %2755 = vmatpush.msra.mxu0 0.0
        %2756 = vmatpush.msra.mxu0 0.0
        %2757 = vmatpush.msra.mxu0 0.0
        %2758 = vmatpush.msra.mxu0 0.0
        %2759 = vmatpush.msra.mxu0 0.0
        %2760 = vmatpush.msra.mxu0 0.0
        %2761 = vmatpush.msra.mxu0 0.0
        %2762 = vmatpush.msra.mxu0 0.0
        %2763 = vmatpush.msra.mxu0 0.0
        %2764 = vmatpush.msra.mxu0 0.0
        %2765 = vmatpush.msra.mxu0 0.0
        %2766 = vmatpush.msra.mxu0 %v2641
        %2767 = vmatpush.msra.mxu0 %v2625
        %2768 = vmatpush.msra.mxu0 %v2609
        %2769 = vmatpush.msra.mxu0 %v2593
        %2770 = vmatmul.f32.gmra.mxu0 %v2692
        %v2771 = vpop.f32.mrf.mxu0
        %v2772 = vadd.f32 %v2662, %v2771
        %2773 = vdwg.mxu0
        %2774 = vmatpush.msra.mxu0 0.0
        %2775 = vmatpush.msra.mxu0 0.0
        %2776 = vmatpush.msra.mxu0 0.0
        %2777 = vmatpush.msra.mxu0 0.0
        %2778 = vmatpush.msra.mxu0 0.0
        %2779 = vmatpush.msra.mxu0 0.0
        %2780 = vmatpush.msra.mxu0 0.0
        %2781 = vmatpush.msra.mxu0 0.0
        %2782 = vmatpush.msra.mxu0 0.0
        %2783 = vmatpush.msra.mxu0 0.0
        %2784 = vmatpush.msra.mxu0 0.0
        %2785 = vmatpush.msra.mxu0 0.0
        %2786 = vmatpush.msra.mxu0 %v2642
        %2787 = vmatpush.msra.mxu0 %v2626
        %2788 = vmatpush.msra.mxu0 %v2610
        %2789 = vmatpush.msra.mxu0 %v2594
        %2790 = vmatmul.f32.gmra.mxu0 %v2692
        %v2791 = vpop.f32.mrf.mxu0
        %v2792 = vadd.f32 %v2663, %v2791
        %2793 = vdwg.mxu0
        %2794 = vmatpush.msra.mxu0 0.0
        %2795 = vmatpush.msra.mxu0 0.0
        %2796 = vmatpush.msra.mxu0 0.0
        %2797 = vmatpush.msra.mxu0 0.0
        %2798 = vmatpush.msra.mxu0 0.0
        %2799 = vmatpush.msra.mxu0 0.0
        %2800 = vmatpush.msra.mxu0 0.0
        %2801 = vmatpush.msra.mxu0 0.0
        %2802 = vmatpush.msra.mxu0 0.0
        %2803 = vmatpush.msra.mxu0 0.0
        %2804 = vmatpush.msra.mxu0 0.0
        %2805 = vmatpush.msra.mxu0 0.0
        %2806 = vmatpush.msra.mxu0 %v2643
        %2807 = vmatpush.msra.mxu0 %v2627
        %2808 = vmatpush.msra.mxu0 %v2611
        %2809 = vmatpush.msra.mxu0 %v2595
        %2810 = vmatmul.f32.gmra.mxu0 %v2692
        %v2811 = vpop.f32.mrf.mxu0
        %v2812 = vadd.f32 %v2664, %v2811
        %2813 = vdwg.mxu0
        %2814 = vmatpush.msra.mxu0 0.0
        %2815 = vmatpush.msra.mxu0 0.0
        %2816 = vmatpush.msra.mxu0 0.0
        %2817 = vmatpush.msra.mxu0 0.0
        %2818 = vmatpush.msra.mxu0 0.0
        %2819 = vmatpush.msra.mxu0 0.0
        %2820 = vmatpush.msra.mxu0 0.0
        %2821 = vmatpush.msra.mxu0 0.0
        %2822 = vmatpush.msra.mxu0 0.0
        %2823 = vmatpush.msra.mxu0 0.0
        %2824 = vmatpush.msra.mxu0 0.0
        %2825 = vmatpush.msra.mxu0 0.0
        %2826 = vmatpush.msra.mxu0 %v2644
        %2827 = vmatpush.msra.mxu0 %v2628
        %2828 = vmatpush.msra.mxu0 %v2612
        %2829 = vmatpush.msra.mxu0 %v2596
        %2830 = vmatmul.f32.gmra.mxu0 %v2692
        %v2831 = vpop.f32.mrf.mxu0
        %v2832 = vadd.f32 %v2665, %v2831
        %2833 = vdwg.mxu0
        %2834 = vmatpush.msra.mxu0 0.0
        %2835 = vmatpush.msra.mxu0 0.0
        %2836 = vmatpush.msra.mxu0 0.0
        %2837 = vmatpush.msra.mxu0 0.0
        %2838 = vmatpush.msra.mxu0 0.0
        %2839 = vmatpush.msra.mxu0 0.0
        %2840 = vmatpush.msra.mxu0 0.0
        %2841 = vmatpush.msra.mxu0 0.0
        %2842 = vmatpush.msra.mxu0 0.0
        %2843 = vmatpush.msra.mxu0 0.0
        %2844 = vmatpush.msra.mxu0 0.0
        %2845 = vmatpush.msra.mxu0 0.0
        %2846 = vmatpush.msra.mxu0 %v2645
        %2847 = vmatpush.msra.mxu0 %v2629
        %2848 = vmatpush.msra.mxu0 %v2613
        %2849 = vmatpush.msra.mxu0 %v2597
        %2850 = vmatmul.f32.gmra.mxu0 %v2692
        %v2851 = vpop.f32.mrf.mxu0
        %v2852 = vadd.f32 %v2666, %v2851
        %2853 = vdwg.mxu0
        %2854 = vmatpush.msra.mxu0 0.0
        %2855 = vmatpush.msra.mxu0 0.0
        %2856 = vmatpush.msra.mxu0 0.0
        %2857 = vmatpush.msra.mxu0 0.0
        %2858 = vmatpush.msra.mxu0 0.0
        %2859 = vmatpush.msra.mxu0 0.0
        %2860 = vmatpush.msra.mxu0 0.0
        %2861 = vmatpush.msra.mxu0 0.0
        %2862 = vmatpush.msra.mxu0 0.0
        %2863 = vmatpush.msra.mxu0 0.0
        %2864 = vmatpush.msra.mxu0 0.0
        %2865 = vmatpush.msra.mxu0 0.0
        %2866 = vmatpush.msra.mxu0 %v2646
        %2867 = vmatpush.msra.mxu0 %v2630
        %2868 = vmatpush.msra.mxu0 %v2614
        %2869 = vmatpush.msra.mxu0 %v2598
        %2870 = vmatmul.f32.gmra.mxu0 %v2692
        %v2871 = vpop.f32.mrf.mxu0
        %v2872 = vadd.f32 %v2667, %v2871
        %2873 = vdwg.mxu0
        %2874 = vmatpush.msra.mxu0 0.0
        %2875 = vmatpush.msra.mxu0 0.0
        %2876 = vmatpush.msra.mxu0 0.0
        %2877 = vmatpush.msra.mxu0 0.0
        %2878 = vmatpush.msra.mxu0 0.0
        %2879 = vmatpush.msra.mxu0 0.0
        %2880 = vmatpush.msra.mxu0 0.0
        %2881 = vmatpush.msra.mxu0 0.0
        %2882 = vmatpush.msra.mxu0 0.0
        %2883 = vmatpush.msra.mxu0 0.0
        %2884 = vmatpush.msra.mxu0 0.0
        %2885 = vmatpush.msra.mxu0 0.0
        %2886 = vmatpush.msra.mxu0 %v2647
        %2887 = vmatpush.msra.mxu0 %v2631
        %2888 = vmatpush.msra.mxu0 %v2615
        %2889 = vmatpush.msra.mxu0 %v2599
        %2890 = vmatmul.f32.gmra.mxu0 %v2692
        %v2891 = vpop.f32.mrf.mxu0
        %v2892 = vadd.f32 %v2668, %v2891
        %2893 = vdwg.mxu0
        %2894 = vmatpush.msra.mxu0 0.0
        %2895 = vmatpush.msra.mxu0 0.0
        %2896 = vmatpush.msra.mxu0 0.0
        %2897 = vmatpush.msra.mxu0 0.0
        %2898 = vmatpush.msra.mxu0 0.0
        %2899 = vmatpush.msra.mxu0 0.0
        %2900 = vmatpush.msra.mxu0 0.0
        %2901 = vmatpush.msra.mxu0 0.0
        %2902 = vmatpush.msra.mxu0 0.0
        %2903 = vmatpush.msra.mxu0 0.0
        %2904 = vmatpush.msra.mxu0 0.0
        %2905 = vmatpush.msra.mxu0 0.0
        %2906 = vmatpush.msra.mxu0 %v2648
        %2907 = vmatpush.msra.mxu0 %v2632
        %2908 = vmatpush.msra.mxu0 %v2616
        %2909 = vmatpush.msra.mxu0 %v2600
        %2910 = vmatmul.f32.gmra.mxu0 %v2692
        %v2911 = vpop.f32.mrf.mxu0
        %v2912 = vadd.f32 %v2669, %v2911
        %2913 = vdwg.mxu0
        %2914 = vmatpush.msra.mxu0 0.0
        %2915 = vmatpush.msra.mxu0 0.0
        %2916 = vmatpush.msra.mxu0 0.0
        %2917 = vmatpush.msra.mxu0 0.0
        %2918 = vmatpush.msra.mxu0 0.0
        %2919 = vmatpush.msra.mxu0 0.0
        %2920 = vmatpush.msra.mxu0 0.0
        %2921 = vmatpush.msra.mxu0 0.0
        %2922 = vmatpush.msra.mxu0 0.0
        %2923 = vmatpush.msra.mxu0 0.0
        %2924 = vmatpush.msra.mxu0 0.0
        %2925 = vmatpush.msra.mxu0 0.0
        %2926 = vmatpush.msra.mxu0 %v2649
        %2927 = vmatpush.msra.mxu0 %v2633
        %2928 = vmatpush.msra.mxu0 %v2617
        %2929 = vmatpush.msra.mxu0 %v2601
        %2930 = vmatmul.f32.gmra.mxu0 %v2692
        %v2931 = vpop.f32.mrf.mxu0
        %v2932 = vadd.f32 %v2670, %v2931
        %2933 = vdwg.mxu0
        %2934 = vmatpush.msra.mxu0 0.0
        %2935 = vmatpush.msra.mxu0 0.0
        %2936 = vmatpush.msra.mxu0 0.0
        %2937 = vmatpush.msra.mxu0 0.0
        %2938 = vmatpush.msra.mxu0 0.0
        %2939 = vmatpush.msra.mxu0 0.0
        %2940 = vmatpush.msra.mxu0 0.0
        %2941 = vmatpush.msra.mxu0 0.0
        %2942 = vmatpush.msra.mxu0 0.0
        %2943 = vmatpush.msra.mxu0 0.0
        %2944 = vmatpush.msra.mxu0 0.0
        %2945 = vmatpush.msra.mxu0 0.0
        %2946 = vmatpush.msra.mxu0 %v2650
        %2947 = vmatpush.msra.mxu0 %v2634
        %2948 = vmatpush.msra.mxu0 %v2618
        %2949 = vmatpush.msra.mxu0 %v2602
        %2950 = vmatmul.f32.gmra.mxu0 %v2692
        %v2951 = vpop.f32.mrf.mxu0
        %v2952 = vadd.f32 %v2671, %v2951
        %2953 = vdwg.mxu0
        %2954 = vmatpush.msra.mxu0 0.0
        %2955 = vmatpush.msra.mxu0 0.0
        %2956 = vmatpush.msra.mxu0 0.0
        %2957 = vmatpush.msra.mxu0 0.0
        %2958 = vmatpush.msra.mxu0 0.0
        %2959 = vmatpush.msra.mxu0 0.0
        %2960 = vmatpush.msra.mxu0 0.0
        %2961 = vmatpush.msra.mxu0 0.0
        %2962 = vmatpush.msra.mxu0 0.0
        %2963 = vmatpush.msra.mxu0 0.0
        %2964 = vmatpush.msra.mxu0 0.0
        %2965 = vmatpush.msra.mxu0 0.0
        %2966 = vmatpush.msra.mxu0 %v2651
        %2967 = vmatpush.msra.mxu0 %v2635
        %2968 = vmatpush.msra.mxu0 %v2619
        %2969 = vmatpush.msra.mxu0 %v2603
        %2970 = vmatmul.f32.gmra.mxu0 %v2692
        %v2971 = vpop.f32.mrf.mxu0
        %v2972 = vadd.f32 %v2672, %v2971
        %2973 = vdwg.mxu0
        %2974 = vmatpush.msra.mxu0 0.0
        %2975 = vmatpush.msra.mxu0 0.0
        %2976 = vmatpush.msra.mxu0 0.0
        %2977 = vmatpush.msra.mxu0 0.0
        %2978 = vmatpush.msra.mxu0 0.0
        %2979 = vmatpush.msra.mxu0 0.0
        %2980 = vmatpush.msra.mxu0 0.0
        %2981 = vmatpush.msra.mxu0 0.0
        %2982 = vmatpush.msra.mxu0 0.0
        %2983 = vmatpush.msra.mxu0 0.0
        %2984 = vmatpush.msra.mxu0 0.0
        %2985 = vmatpush.msra.mxu0 0.0
        %2986 = vmatpush.msra.mxu0 %v2652
        %2987 = vmatpush.msra.mxu0 %v2636
        %2988 = vmatpush.msra.mxu0 %v2620
        %2989 = vmatpush.msra.mxu0 %v2604
        %2990 = vmatmul.f32.gmra.mxu0 %v2692
        %v2991 = vpop.f32.mrf.mxu0
        %v2992 = vadd.f32 %v2673, %v2991
        %2993 = vdwg.mxu0
        %2994 = vmatpush.msra.mxu0 0.0
        %2995 = vmatpush.msra.mxu0 0.0
        %2996 = vmatpush.msra.mxu0 0.0
        %2997 = vmatpush.msra.mxu0 0.0
        %2998 = vmatpush.msra.mxu0 0.0
        %2999 = vmatpush.msra.mxu0 0.0
        %3000 = vmatpush.msra.mxu0 0.0
        %3001 = vmatpush.msra.mxu0 0.0
        %3002 = vmatpush.msra.mxu0 0.0
        %3003 = vmatpush.msra.mxu0 0.0
        %3004 = vmatpush.msra.mxu0 0.0
        %3005 = vmatpush.msra.mxu0 0.0
        %3006 = vmatpush.msra.mxu0 %v2653
        %3007 = vmatpush.msra.mxu0 %v2637
        %3008 = vmatpush.msra.mxu0 %v2621
        %3009 = vmatpush.msra.mxu0 %v2605
        %3010 = vmatmul.f32.gmra.mxu0 %v2692
        %v3011 = vpop.f32.mrf.mxu0
        %v3012 = vadd.f32 %v2674, %v3011
        %3013 = vdwg.mxu0
        %v3014 = vmax.f32 %v2712, 0.0
        %v3015 = vmax.f32 %v2732, 0.0
        %v3016 = vmax.f32 %v2752, 0.0
        %v3017 = vmax.f32 %v2772, 0.0
        %v3018 = vmax.f32 %v2792, 0.0
        %v3019 = vmax.f32 %v2812, 0.0
        %v3020 = vmax.f32 %v2832, 0.0
        %v3021 = vmax.f32 %v2852, 0.0
        %v3022 = vmax.f32 %v2872, 0.0
        %v3023 = vmax.f32 %v2892, 0.0
        %v3024 = vmax.f32 %v2912, 0.0
        %v3025 = vmax.f32 %v2932, 0.0
        %v3026 = vmax.f32 %v2952, 0.0
        %v3027 = vmax.f32 %v2972, 0.0
        %v3028 = vmax.f32 %v2992, 0.0
        %v3029 = vmax.f32 %v3012, 0.0
        %s3030 = scalar_lea.vmem [#allocation19], 512
        %v3031 = vld [vmem:[%s3030] sm:$0xff]
        %v3032 = vld [vmem:[%s3030 + $0x8] sm:$0xff]
        %v3033 = vld [vmem:[%s3030 + $0x10] sm:$0xff]
        %v3034 = vld [vmem:[%s3030 + $0x18] sm:$0xff]
        %v3035 = vld [vmem:[%s3030 + $0x20] sm:$0xff]
        %v3036 = vld [vmem:[%s3030 + $0x28] sm:$0xff]
        %v3037 = vld [vmem:[%s3030 + $0x30] sm:$0xff]
        %v3038 = vld [vmem:[%s3030 + $0x38] sm:$0xff]
        %v3039 = vld [vmem:[%s3030 + $0x40] sm:$0xff]
        %v3040 = vld [vmem:[%s3030 + $0x48] sm:$0xff]
        %v3041 = vld [vmem:[%s3030 + $0x50] sm:$0xff]
        %v3042 = vld [vmem:[%s3030 + $0x58] sm:$0xff]
        %v3043 = vld [vmem:[%s3030 + $0x60] sm:$0xff]
        %v3044 = vld [vmem:[%s3030 + $0x68] sm:$0xff]
        %v3045 = vld [vmem:[%s3030 + $0x70] sm:$0xff]
        %v3046 = vld [vmem:[%s3030 + $0x78] sm:$0xff]
        %v3047 = vld [vmem:[%s3030 + $0x80] sm:$0xff]
        %v3048 = vld [vmem:[%s3030 + $0x88] sm:$0xff]
        %v3049 = vld [vmem:[%s3030 + $0x90] sm:$0xff]
        %v3050 = vld [vmem:[%s3030 + $0x98] sm:$0xff]
        %v3051 = vld [vmem:[%s3030 + $0xa0] sm:$0xff]
        %v3052 = vld [vmem:[%s3030 + $0xa8] sm:$0xff]
        %v3053 = vld [vmem:[%s3030 + $0xb0] sm:$0xff]
        %v3054 = vld [vmem:[%s3030 + $0xb8] sm:$0xff]
        %v3055 = vld [vmem:[%s3030 + $0xc0] sm:$0xff]
        %v3056 = vld [vmem:[%s3030 + $0xc8] sm:$0xff]
        %v3057 = vld [vmem:[%s3030 + $0xd0] sm:$0xff]
        %v3058 = vld [vmem:[%s3030 + $0xd8] sm:$0xff]
        %v3059 = vld [vmem:[%s3030 + $0xe0] sm:$0xff]
        %v3060 = vld [vmem:[%s3030 + $0xe8] sm:$0xff]
        %v3061 = vld [vmem:[%s3030 + $0xf0] sm:$0xff]
        %v3062 = vld [vmem:[%s3030 + $0xf8] sm:$0xff]
        %v3063 = vld [vmem:[%s3030 + $0x100] sm:$0xff]
        %v3064 = vld [vmem:[%s3030 + $0x108] sm:$0xff]
        %v3065 = vld [vmem:[%s3030 + $0x110] sm:$0xff]
        %v3066 = vld [vmem:[%s3030 + $0x118] sm:$0xff]
        %v3067 = vld [vmem:[%s3030 + $0x120] sm:$0xff]
        %v3068 = vld [vmem:[%s3030 + $0x128] sm:$0xff]
        %v3069 = vld [vmem:[%s3030 + $0x130] sm:$0xff]
        %v3070 = vld [vmem:[%s3030 + $0x138] sm:$0xff]
        %v3071 = vld [vmem:[%s3030 + $0x140] sm:$0xff]
        %v3072 = vld [vmem:[%s3030 + $0x148] sm:$0xff]
        %v3073 = vld [vmem:[%s3030 + $0x150] sm:$0xff]
        %v3074 = vld [vmem:[%s3030 + $0x158] sm:$0xff]
        %v3075 = vld [vmem:[%s3030 + $0x160] sm:$0xff]
        %v3076 = vld [vmem:[%s3030 + $0x168] sm:$0xff]
        %v3077 = vld [vmem:[%s3030 + $0x170] sm:$0xff]
        %v3078 = vld [vmem:[%s3030 + $0x178] sm:$0xff]
        %v3079 = vld [vmem:[%s3030 + $0x180] sm:$0xff]
        %v3080 = vld [vmem:[%s3030 + $0x188] sm:$0xff]
        %v3081 = vld [vmem:[%s3030 + $0x190] sm:$0xff]
        %v3082 = vld [vmem:[%s3030 + $0x198] sm:$0xff]
        %v3083 = vld [vmem:[%s3030 + $0x1a0] sm:$0xff]
        %v3084 = vld [vmem:[%s3030 + $0x1a8] sm:$0xff]
        %v3085 = vld [vmem:[%s3030 + $0x1b0] sm:$0xff]
        %v3086 = vld [vmem:[%s3030 + $0x1b8] sm:$0xff]
        %v3087 = vld [vmem:[%s3030 + $0x1c0] sm:$0xff]
        %v3088 = vld [vmem:[%s3030 + $0x1c8] sm:$0xff]
        %v3089 = vld [vmem:[%s3030 + $0x1d0] sm:$0xff]
        %v3090 = vld [vmem:[%s3030 + $0x1d8] sm:$0xff]
        %v3091 = vld [vmem:[%s3030 + $0x1e0] sm:$0xff]
        %v3092 = vld [vmem:[%s3030 + $0x1e8] sm:$0xff]
        %v3093 = vld [vmem:[%s3030 + $0x1f0] sm:$0xff]
        %v3094 = vld [vmem:[%s3030 + $0x1f8] sm:$0xff]
        %s3095 = scalar_lea.vmem %s13, 1
        %v3096 = vld [vmem:[%s3095] sm:$0x1]
        %v3098 = vperm.slane %v3096, 0
        %3100 = vmatpush.xpose.msra.mxu0 0.0
        %3101 = vmatpush.xpose.msra.mxu0 0.0
        %3102 = vmatpush.xpose.msra.mxu0 0.0
        %3103 = vmatpush.xpose.msra.mxu0 0.0
        %3104 = vmatpush.xpose.msra.mxu0 0.0
        %3105 = vmatpush.xpose.msra.mxu0 0.0
        %3106 = vmatpush.xpose.msra.mxu0 0.0
        %3107 = vmatpush.xpose.msra.mxu0 0.0
        %3108 = vmatpush.xpose.msra.mxu0 0.0
        %3109 = vmatpush.xpose.msra.mxu0 0.0
        %3110 = vmatpush.xpose.msra.mxu0 0.0
        %3111 = vmatpush.xpose.msra.mxu0 0.0
        %3112 = vmatpush.xpose.msra.mxu0 %v3079
        %3113 = vmatpush.xpose.msra.mxu0 %v3063
        %3114 = vmatpush.xpose.msra.mxu0 %v3047
        %3115 = vmatpush.xpose.msra.mxu0 %v3031
        %3116 = vmatmul.f32.gmra.mxu0 %v3014
        %v3117 = vpop.f32.mrf.mxu0
        %v3118 = vadd.f32 %v3098, %v3117
        %3119 = vdwg.mxu0
        %3120 = vmatpush.xpose.msra.mxu0 0.0
        %3121 = vmatpush.xpose.msra.mxu0 0.0
        %3122 = vmatpush.xpose.msra.mxu0 0.0
        %3123 = vmatpush.xpose.msra.mxu0 0.0
        %3124 = vmatpush.xpose.msra.mxu0 0.0
        %3125 = vmatpush.xpose.msra.mxu0 0.0
        %3126 = vmatpush.xpose.msra.mxu0 0.0
        %3127 = vmatpush.xpose.msra.mxu0 0.0
        %3128 = vmatpush.xpose.msra.mxu0 0.0
        %3129 = vmatpush.xpose.msra.mxu0 0.0
        %3130 = vmatpush.xpose.msra.mxu0 0.0
        %3131 = vmatpush.xpose.msra.mxu0 0.0
        %3132 = vmatpush.xpose.msra.mxu0 %v3080
        %3133 = vmatpush.xpose.msra.mxu0 %v3064
        %3134 = vmatpush.xpose.msra.mxu0 %v3048
        %3135 = vmatpush.xpose.msra.mxu0 %v3032
        %3136 = vmatmul.f32.gmra.mxu0 %v3015
        %v3137 = vpop.f32.mrf.mxu0
        %v3138 = vadd.f32 %v3118, %v3137
        %3139 = vdwg.mxu0
        %3140 = vmatpush.xpose.msra.mxu0 0.0
        %3141 = vmatpush.xpose.msra.mxu0 0.0
        %3142 = vmatpush.xpose.msra.mxu0 0.0
        %3143 = vmatpush.xpose.msra.mxu0 0.0
        %3144 = vmatpush.xpose.msra.mxu0 0.0
        %3145 = vmatpush.xpose.msra.mxu0 0.0
        %3146 = vmatpush.xpose.msra.mxu0 0.0
        %3147 = vmatpush.xpose.msra.mxu0 0.0
        %3148 = vmatpush.xpose.msra.mxu0 0.0
        %3149 = vmatpush.xpose.msra.mxu0 0.0
        %3150 = vmatpush.xpose.msra.mxu0 0.0
        %3151 = vmatpush.xpose.msra.mxu0 0.0
        %3152 = vmatpush.xpose.msra.mxu0 %v3081
        %3153 = vmatpush.xpose.msra.mxu0 %v3065
        %3154 = vmatpush.xpose.msra.mxu0 %v3049
        %3155 = vmatpush.xpose.msra.mxu0 %v3033
        %3156 = vmatmul.f32.gmra.mxu0 %v3016
        %v3157 = vpop.f32.mrf.mxu0
        %v3158 = vadd.f32 %v3138, %v3157
        %3159 = vdwg.mxu0
        %3160 = vmatpush.xpose.msra.mxu0 0.0
        %3161 = vmatpush.xpose.msra.mxu0 0.0
        %3162 = vmatpush.xpose.msra.mxu0 0.0
        %3163 = vmatpush.xpose.msra.mxu0 0.0
        %3164 = vmatpush.xpose.msra.mxu0 0.0
        %3165 = vmatpush.xpose.msra.mxu0 0.0
        %3166 = vmatpush.xpose.msra.mxu0 0.0
        %3167 = vmatpush.xpose.msra.mxu0 0.0
        %3168 = vmatpush.xpose.msra.mxu0 0.0
        %3169 = vmatpush.xpose.msra.mxu0 0.0
        %3170 = vmatpush.xpose.msra.mxu0 0.0
        %3171 = vmatpush.xpose.msra.mxu0 0.0
        %3172 = vmatpush.xpose.msra.mxu0 %v3082
        %3173 = vmatpush.xpose.msra.mxu0 %v3066
        %3174 = vmatpush.xpose.msra.mxu0 %v3050
        %3175 = vmatpush.xpose.msra.mxu0 %v3034
        %3176 = vmatmul.f32.gmra.mxu0 %v3017
        %v3177 = vpop.f32.mrf.mxu0
        %v3178 = vadd.f32 %v3158, %v3177
        %3179 = vdwg.mxu0
        %3180 = vmatpush.xpose.msra.mxu0 0.0
        %3181 = vmatpush.xpose.msra.mxu0 0.0
        %3182 = vmatpush.xpose.msra.mxu0 0.0
        %3183 = vmatpush.xpose.msra.mxu0 0.0
        %3184 = vmatpush.xpose.msra.mxu0 0.0
        %3185 = vmatpush.xpose.msra.mxu0 0.0
        %3186 = vmatpush.xpose.msra.mxu0 0.0
        %3187 = vmatpush.xpose.msra.mxu0 0.0
        %3188 = vmatpush.xpose.msra.mxu0 0.0
        %3189 = vmatpush.xpose.msra.mxu0 0.0
        %3190 = vmatpush.xpose.msra.mxu0 0.0
        %3191 = vmatpush.xpose.msra.mxu0 0.0
        %3192 = vmatpush.xpose.msra.mxu0 %v3083
        %3193 = vmatpush.xpose.msra.mxu0 %v3067
        %3194 = vmatpush.xpose.msra.mxu0 %v3051
        %3195 = vmatpush.xpose.msra.mxu0 %v3035
        %3196 = vmatmul.f32.gmra.mxu0 %v3018
        %v3197 = vpop.f32.mrf.mxu0
        %v3198 = vadd.f32 %v3178, %v3197
        %3199 = vdwg.mxu0
        %3200 = vmatpush.xpose.msra.mxu0 0.0
        %3201 = vmatpush.xpose.msra.mxu0 0.0
        %3202 = vmatpush.xpose.msra.mxu0 0.0
        %3203 = vmatpush.xpose.msra.mxu0 0.0
        %3204 = vmatpush.xpose.msra.mxu0 0.0
        %3205 = vmatpush.xpose.msra.mxu0 0.0
        %3206 = vmatpush.xpose.msra.mxu0 0.0
        %3207 = vmatpush.xpose.msra.mxu0 0.0
        %3208 = vmatpush.xpose.msra.mxu0 0.0
        %3209 = vmatpush.xpose.msra.mxu0 0.0
        %3210 = vmatpush.xpose.msra.mxu0 0.0
        %3211 = vmatpush.xpose.msra.mxu0 0.0
        %3212 = vmatpush.xpose.msra.mxu0 %v3084
        %3213 = vmatpush.xpose.msra.mxu0 %v3068
        %3214 = vmatpush.xpose.msra.mxu0 %v3052
        %3215 = vmatpush.xpose.msra.mxu0 %v3036
        %3216 = vmatmul.f32.gmra.mxu0 %v3019
        %v3217 = vpop.f32.mrf.mxu0
        %v3218 = vadd.f32 %v3198, %v3217
        %3219 = vdwg.mxu0
        %3220 = vmatpush.xpose.msra.mxu0 0.0
        %3221 = vmatpush.xpose.msra.mxu0 0.0
        %3222 = vmatpush.xpose.msra.mxu0 0.0
        %3223 = vmatpush.xpose.msra.mxu0 0.0
        %3224 = vmatpush.xpose.msra.mxu0 0.0
        %3225 = vmatpush.xpose.msra.mxu0 0.0
        %3226 = vmatpush.xpose.msra.mxu0 0.0
        %3227 = vmatpush.xpose.msra.mxu0 0.0
        %3228 = vmatpush.xpose.msra.mxu0 0.0
        %3229 = vmatpush.xpose.msra.mxu0 0.0
        %3230 = vmatpush.xpose.msra.mxu0 0.0
        %3231 = vmatpush.xpose.msra.mxu0 0.0
        %3232 = vmatpush.xpose.msra.mxu0 %v3085
        %3233 = vmatpush.xpose.msra.mxu0 %v3069
        %3234 = vmatpush.xpose.msra.mxu0 %v3053
        %3235 = vmatpush.xpose.msra.mxu0 %v3037
        %3236 = vmatmul.f32.gmra.mxu0 %v3020
        %v3237 = vpop.f32.mrf.mxu0
        %v3238 = vadd.f32 %v3218, %v3237
        %3239 = vdwg.mxu0
        %3240 = vmatpush.xpose.msra.mxu0 0.0
        %3241 = vmatpush.xpose.msra.mxu0 0.0
        %3242 = vmatpush.xpose.msra.mxu0 0.0
        %3243 = vmatpush.xpose.msra.mxu0 0.0
        %3244 = vmatpush.xpose.msra.mxu0 0.0
        %3245 = vmatpush.xpose.msra.mxu0 0.0
        %3246 = vmatpush.xpose.msra.mxu0 0.0
        %3247 = vmatpush.xpose.msra.mxu0 0.0
        %3248 = vmatpush.xpose.msra.mxu0 0.0
        %3249 = vmatpush.xpose.msra.mxu0 0.0
        %3250 = vmatpush.xpose.msra.mxu0 0.0
        %3251 = vmatpush.xpose.msra.mxu0 0.0
        %3252 = vmatpush.xpose.msra.mxu0 %v3086
        %3253 = vmatpush.xpose.msra.mxu0 %v3070
        %3254 = vmatpush.xpose.msra.mxu0 %v3054
        %3255 = vmatpush.xpose.msra.mxu0 %v3038
        %3256 = vmatmul.f32.gmra.mxu0 %v3021
        %v3257 = vpop.f32.mrf.mxu0
        %v3258 = vadd.f32 %v3238, %v3257
        %3259 = vdwg.mxu0
        %3260 = vmatpush.xpose.msra.mxu0 0.0
        %3261 = vmatpush.xpose.msra.mxu0 0.0
        %3262 = vmatpush.xpose.msra.mxu0 0.0
        %3263 = vmatpush.xpose.msra.mxu0 0.0
        %3264 = vmatpush.xpose.msra.mxu0 0.0
        %3265 = vmatpush.xpose.msra.mxu0 0.0
        %3266 = vmatpush.xpose.msra.mxu0 0.0
        %3267 = vmatpush.xpose.msra.mxu0 0.0
        %3268 = vmatpush.xpose.msra.mxu0 0.0
        %3269 = vmatpush.xpose.msra.mxu0 0.0
        %3270 = vmatpush.xpose.msra.mxu0 0.0
        %3271 = vmatpush.xpose.msra.mxu0 0.0
        %3272 = vmatpush.xpose.msra.mxu0 %v3087
        %3273 = vmatpush.xpose.msra.mxu0 %v3071
        %3274 = vmatpush.xpose.msra.mxu0 %v3055
        %3275 = vmatpush.xpose.msra.mxu0 %v3039
        %3276 = vmatmul.f32.gmra.mxu0 %v3022
        %v3277 = vpop.f32.mrf.mxu0
        %v3278 = vadd.f32 %v3258, %v3277
        %3279 = vdwg.mxu0
        %3280 = vmatpush.xpose.msra.mxu0 0.0
        %3281 = vmatpush.xpose.msra.mxu0 0.0
        %3282 = vmatpush.xpose.msra.mxu0 0.0
        %3283 = vmatpush.xpose.msra.mxu0 0.0
        %3284 = vmatpush.xpose.msra.mxu0 0.0
        %3285 = vmatpush.xpose.msra.mxu0 0.0
        %3286 = vmatpush.xpose.msra.mxu0 0.0
        %3287 = vmatpush.xpose.msra.mxu0 0.0
        %3288 = vmatpush.xpose.msra.mxu0 0.0
        %3289 = vmatpush.xpose.msra.mxu0 0.0
        %3290 = vmatpush.xpose.msra.mxu0 0.0
        %3291 = vmatpush.xpose.msra.mxu0 0.0
        %3292 = vmatpush.xpose.msra.mxu0 %v3088
        %3293 = vmatpush.xpose.msra.mxu0 %v3072
        %3294 = vmatpush.xpose.msra.mxu0 %v3056
        %3295 = vmatpush.xpose.msra.mxu0 %v3040
        %3296 = vmatmul.f32.gmra.mxu0 %v3023
        %v3297 = vpop.f32.mrf.mxu0
        %v3298 = vadd.f32 %v3278, %v3297
        %3299 = vdwg.mxu0
        %3300 = vmatpush.xpose.msra.mxu0 0.0
        %3301 = vmatpush.xpose.msra.mxu0 0.0
        %3302 = vmatpush.xpose.msra.mxu0 0.0
        %3303 = vmatpush.xpose.msra.mxu0 0.0
        %3304 = vmatpush.xpose.msra.mxu0 0.0
        %3305 = vmatpush.xpose.msra.mxu0 0.0
        %3306 = vmatpush.xpose.msra.mxu0 0.0
        %3307 = vmatpush.xpose.msra.mxu0 0.0
        %3308 = vmatpush.xpose.msra.mxu0 0.0
        %3309 = vmatpush.xpose.msra.mxu0 0.0
        %3310 = vmatpush.xpose.msra.mxu0 0.0
        %3311 = vmatpush.xpose.msra.mxu0 0.0
        %3312 = vmatpush.xpose.msra.mxu0 %v3089
        %3313 = vmatpush.xpose.msra.mxu0 %v3073
        %3314 = vmatpush.xpose.msra.mxu0 %v3057
        %3315 = vmatpush.xpose.msra.mxu0 %v3041
        %3316 = vmatmul.f32.gmra.mxu0 %v3024
        %v3317 = vpop.f32.mrf.mxu0
        %v3318 = vadd.f32 %v3298, %v3317
        %3319 = vdwg.mxu0
        %3320 = vmatpush.xpose.msra.mxu0 0.0
        %3321 = vmatpush.xpose.msra.mxu0 0.0
        %3322 = vmatpush.xpose.msra.mxu0 0.0
        %3323 = vmatpush.xpose.msra.mxu0 0.0
        %3324 = vmatpush.xpose.msra.mxu0 0.0
        %3325 = vmatpush.xpose.msra.mxu0 0.0
        %3326 = vmatpush.xpose.msra.mxu0 0.0
        %3327 = vmatpush.xpose.msra.mxu0 0.0
        %3328 = vmatpush.xpose.msra.mxu0 0.0
        %3329 = vmatpush.xpose.msra.mxu0 0.0
        %3330 = vmatpush.xpose.msra.mxu0 0.0
        %3331 = vmatpush.xpose.msra.mxu0 0.0
        %3332 = vmatpush.xpose.msra.mxu0 %v3090
        %3333 = vmatpush.xpose.msra.mxu0 %v3074
        %3334 = vmatpush.xpose.msra.mxu0 %v3058
        %3335 = vmatpush.xpose.msra.mxu0 %v3042
        %3336 = vmatmul.f32.gmra.mxu0 %v3025
        %v3337 = vpop.f32.mrf.mxu0
        %v3338 = vadd.f32 %v3318, %v3337
        %3339 = vdwg.mxu0
        %3340 = vmatpush.xpose.msra.mxu0 0.0
        %3341 = vmatpush.xpose.msra.mxu0 0.0
        %3342 = vmatpush.xpose.msra.mxu0 0.0
        %3343 = vmatpush.xpose.msra.mxu0 0.0
        %3344 = vmatpush.xpose.msra.mxu0 0.0
        %3345 = vmatpush.xpose.msra.mxu0 0.0
        %3346 = vmatpush.xpose.msra.mxu0 0.0
        %3347 = vmatpush.xpose.msra.mxu0 0.0
        %3348 = vmatpush.xpose.msra.mxu0 0.0
        %3349 = vmatpush.xpose.msra.mxu0 0.0
        %3350 = vmatpush.xpose.msra.mxu0 0.0
        %3351 = vmatpush.xpose.msra.mxu0 0.0
        %3352 = vmatpush.xpose.msra.mxu0 %v3091
        %3353 = vmatpush.xpose.msra.mxu0 %v3075
        %3354 = vmatpush.xpose.msra.mxu0 %v3059
        %3355 = vmatpush.xpose.msra.mxu0 %v3043
        %3356 = vmatmul.f32.gmra.mxu0 %v3026
        %v3357 = vpop.f32.mrf.mxu0
        %v3358 = vadd.f32 %v3338, %v3357
        %3359 = vdwg.mxu0
        %3360 = vmatpush.xpose.msra.mxu0 0.0
        %3361 = vmatpush.xpose.msra.mxu0 0.0
        %3362 = vmatpush.xpose.msra.mxu0 0.0
        %3363 = vmatpush.xpose.msra.mxu0 0.0
        %3364 = vmatpush.xpose.msra.mxu0 0.0
        %3365 = vmatpush.xpose.msra.mxu0 0.0
        %3366 = vmatpush.xpose.msra.mxu0 0.0
        %3367 = vmatpush.xpose.msra.mxu0 0.0
        %3368 = vmatpush.xpose.msra.mxu0 0.0
        %3369 = vmatpush.xpose.msra.mxu0 0.0
        %3370 = vmatpush.xpose.msra.mxu0 0.0
        %3371 = vmatpush.xpose.msra.mxu0 0.0
        %3372 = vmatpush.xpose.msra.mxu0 %v3092
        %3373 = vmatpush.xpose.msra.mxu0 %v3076
        %3374 = vmatpush.xpose.msra.mxu0 %v3060
        %3375 = vmatpush.xpose.msra.mxu0 %v3044
        %3376 = vmatmul.f32.gmra.mxu0 %v3027
        %v3377 = vpop.f32.mrf.mxu0
        %v3378 = vadd.f32 %v3358, %v3377
        %3379 = vdwg.mxu0
        %3380 = vmatpush.xpose.msra.mxu0 0.0
        %3381 = vmatpush.xpose.msra.mxu0 0.0
        %3382 = vmatpush.xpose.msra.mxu0 0.0
        %3383 = vmatpush.xpose.msra.mxu0 0.0
        %3384 = vmatpush.xpose.msra.mxu0 0.0
        %3385 = vmatpush.xpose.msra.mxu0 0.0
        %3386 = vmatpush.xpose.msra.mxu0 0.0
        %3387 = vmatpush.xpose.msra.mxu0 0.0
        %3388 = vmatpush.xpose.msra.mxu0 0.0
        %3389 = vmatpush.xpose.msra.mxu0 0.0
        %3390 = vmatpush.xpose.msra.mxu0 0.0
        %3391 = vmatpush.xpose.msra.mxu0 0.0
        %3392 = vmatpush.xpose.msra.mxu0 %v3093
        %3393 = vmatpush.xpose.msra.mxu0 %v3077
        %3394 = vmatpush.xpose.msra.mxu0 %v3061
        %3395 = vmatpush.xpose.msra.mxu0 %v3045
        %3396 = vmatmul.f32.gmra.mxu0 %v3028
        %v3397 = vpop.f32.mrf.mxu0
        %v3398 = vadd.f32 %v3378, %v3397
        %3399 = vdwg.mxu0
        %3400 = vmatpush.xpose.msra.mxu0 0.0
        %3401 = vmatpush.xpose.msra.mxu0 0.0
        %3402 = vmatpush.xpose.msra.mxu0 0.0
        %3403 = vmatpush.xpose.msra.mxu0 0.0
        %3404 = vmatpush.xpose.msra.mxu0 0.0
        %3405 = vmatpush.xpose.msra.mxu0 0.0
        %3406 = vmatpush.xpose.msra.mxu0 0.0
        %3407 = vmatpush.xpose.msra.mxu0 0.0
        %3408 = vmatpush.xpose.msra.mxu0 0.0
        %3409 = vmatpush.xpose.msra.mxu0 0.0
        %3410 = vmatpush.xpose.msra.mxu0 0.0
        %3411 = vmatpush.xpose.msra.mxu0 0.0
        %3412 = vmatpush.xpose.msra.mxu0 %v3094
        %3413 = vmatpush.xpose.msra.mxu0 %v3078
        %3414 = vmatpush.xpose.msra.mxu0 %v3062
        %3415 = vmatpush.xpose.msra.mxu0 %v3046
        %3416 = vmatmul.f32.gmra.mxu0 %v3029
        %v3417 = vpop.f32.mrf.mxu0
        %v3418 = vadd.f32 %v3398, %v3417
        %3419 = vdwg.mxu0
        %v3420 = vadd.f32 %v2588, %v3418
        %s3421 = scalar_lea.vmem %s14, 1
        %v3422 = vld [vmem:[%s3421] sm:$0x1]
        %s3423 = scalar_lea.vmem [#allocation20], 1
        %v3424 = vld [vmem:[%s3423] sm:$0x1]
        %v3425 = vsel %vm758, %v3420, 0.0
        %3426 = vadd.xlane.f32.xlu0 %v3425
        %v3427 = vpop.xlane.xlu0 %3426
        %v3428 = vmul.f32 %v3427, %v1213
        %v3429 = vsub.f32 %v3420, %v3428
        %v3430 = vmul.f32 %v3429, %v3429
        %v3431 = vsel %vm758, %v3430, 0.0
        %3432 = vadd.xlane.f32.xlu0 %v3431
        %v3433 = vpop.xlane.xlu0 %3432
        %v3434 = vmul.f32 %v3433, %v1213
        %v3435 = vadd.f32 %v3434, 1e-05
        %v3436 = vrsqrt.pop %v3435
        %v3437 = vmul.f32 %v3436, %v3435
        %v3438 = vmul.f32 %v3437, %v3436
        %v3439 = vmul.f32 0.5, %v3438
        %v3440 = vsub.f32 1.5, %v3439
        %v3441 = vmul.f32 %v3436, %v3440
        %vm3442 = vweird.f32 %v3435
        %vm3443 = vweird.f32 %v3436
        %vm3444 = vmor %vm3442, %vm3443
        %v3445 = vsel %vm3444, %v3436, %v3441
        %v3446 = vmul.f32 %v3429, %v3445
        %v3448 = vperm.slane %v3422, 0
        %v3450 = vmul.f32 %v3446, %v3448
        %v3452 = vperm.slane %v3424, 0
        %v3454 = vadd.f32 %v3450, %v3452
        %s3455 = scalar_lea.vmem [#allocation10], 64
        %v3456 = vld [vmem:[%s3455] sm:$0xff]
        %v3457 = vld [vmem:[%s3455 + $0x8] sm:$0xff]
        %v3458 = vld [vmem:[%s3455 + $0x10] sm:$0xff]
        %v3459 = vld [vmem:[%s3455 + $0x18] sm:$0xff]
        %s3460 = scalar_lea.vmem %s5, 2
        %v3461 = vld [vmem:[%s3460] sm:$0x1]
        %v3463 = vperm.slane %v3461, 0
        %v3466 = vsel %vm758, %v3454, 0
        %3468 = vmatpush.msra.mxu0 0.0
        %3469 = vmatpush.msra.mxu0 0.0
        %3470 = vmatpush.msra.mxu0 0.0
        %3471 = vmatpush.msra.mxu0 0.0
        %3472 = vmatpush.msra.mxu0 0.0
        %3473 = vmatpush.msra.mxu0 0.0
        %3474 = vmatpush.msra.mxu0 0.0
        %3475 = vmatpush.msra.mxu0 0.0
        %3476 = vmatpush.msra.mxu0 0.0
        %3477 = vmatpush.msra.mxu0 0.0
        %3478 = vmatpush.msra.mxu0 0.0
        %3479 = vmatpush.msra.mxu0 0.0
        %3480 = vmatpush.msra.mxu0 %v3459
        %3481 = vmatpush.msra.mxu0 %v3458
        %3482 = vmatpush.msra.mxu0 %v3457
        %3483 = vmatpush.msra.mxu0 %v3456
        %3484 = vmatmul.f32.gmra.mxu0 %v3466
        %v3485 = vpop.f32.mrf.mxu0
        %v3486 = vadd.f32 %v3463, %v3485
        %3487 = vdwg.mxu0
        %3489 = vrot.lane.b32.xlu0 %v3486, 120
        %v3490 = vpop.permute.xlu0 %3489
        %3491 = vrot.lane.b32.xlu0 %v3486, 112
        %v3492 = vpop.permute.xlu0 %3491
        %3493 = vrot.lane.b32.xlu0 %v3486, 104
        %v3494 = vpop.permute.xlu0 %3493
        %3495 = vrot.lane.b32.xlu0 %v3486, 96
        %v3496 = vpop.permute.xlu0 %3495
        %v3497 = vsel %vm791, %v3486, 0
        %v3499 = vsel %vm791, %v3496, 0
        %3501 = vmatpush.xpose.msra.mxu0 0.0
        %3502 = vmatpush.xpose.msra.mxu0 0.0
        %3503 = vmatpush.xpose.msra.mxu0 0.0
        %3504 = vmatpush.xpose.msra.mxu0 0.0
        %3505 = vmatpush.xpose.msra.mxu0 0.0
        %3506 = vmatpush.xpose.msra.mxu0 0.0
        %3507 = vmatpush.xpose.msra.mxu0 0.0
        %3508 = vmatpush.xpose.msra.mxu0 0.0
        %3509 = vmatpush.xpose.msra.mxu0 0.0
        %3510 = vmatpush.xpose.msra.mxu0 0.0
        %3511 = vmatpush.xpose.msra.mxu0 0.0
        %3512 = vmatpush.xpose.msra.mxu0 0.0
        %3513 = vmatpush.xpose.msra.mxu0 0.0
        %3514 = vmatpush.xpose.msra.mxu0 0.0
        %3515 = vmatpush.xpose.msra.mxu0 0.0
        %3516 = vmatpush.xpose.msra.mxu0 %v3499
        %3517 = vmatmul.f32.gmra.mxu0 %v3497
        %v3518 = vpop.f32.mrf.mxu0
        %v3519 = vadd.f32 0.0, %v3518
        %3520 = vdwg.mxu0
        %3521 = vrot.lane.b32.xlu0 %v3490, 96
        %v3522 = vpop.permute.xlu0 %3521
        %v3523 = vsel %vm791, %v3490, 0
        %v3525 = vsel %vm791, %v3522, 0
        %3527 = vmatpush.xpose.msra.mxu0 0.0
        %3528 = vmatpush.xpose.msra.mxu0 0.0
        %3529 = vmatpush.xpose.msra.mxu0 0.0
        %3530 = vmatpush.xpose.msra.mxu0 0.0
        %3531 = vmatpush.xpose.msra.mxu0 0.0
        %3532 = vmatpush.xpose.msra.mxu0 0.0
        %3533 = vmatpush.xpose.msra.mxu0 0.0
        %3534 = vmatpush.xpose.msra.mxu0 0.0
        %3535 = vmatpush.xpose.msra.mxu0 0.0
        %3536 = vmatpush.xpose.msra.mxu0 0.0
        %3537 = vmatpush.xpose.msra.mxu0 0.0
        %3538 = vmatpush.xpose.msra.mxu0 0.0
        %3539 = vmatpush.xpose.msra.mxu0 0.0
        %3540 = vmatpush.xpose.msra.mxu0 0.0
        %3541 = vmatpush.xpose.msra.mxu0 0.0
        %3542 = vmatpush.xpose.msra.mxu0 %v3525
        %3543 = vmatmul.f32.gmra.mxu0 %v3523
        %v3544 = vpop.f32.mrf.mxu0
        %v3545 = vadd.f32 0.0, %v3544
        %3546 = vdwg.mxu0
        %3547 = vrot.lane.b32.xlu0 %v3492, 96
        %v3548 = vpop.permute.xlu0 %3547
        %v3549 = vsel %vm791, %v3492, 0
        %v3551 = vsel %vm791, %v3548, 0
        %3553 = vmatpush.xpose.msra.mxu0 0.0
        %3554 = vmatpush.xpose.msra.mxu0 0.0
        %3555 = vmatpush.xpose.msra.mxu0 0.0
        %3556 = vmatpush.xpose.msra.mxu0 0.0
        %3557 = vmatpush.xpose.msra.mxu0 0.0
        %3558 = vmatpush.xpose.msra.mxu0 0.0
        %3559 = vmatpush.xpose.msra.mxu0 0.0
        %3560 = vmatpush.xpose.msra.mxu0 0.0
        %3561 = vmatpush.xpose.msra.mxu0 0.0
        %3562 = vmatpush.xpose.msra.mxu0 0.0
        %3563 = vmatpush.xpose.msra.mxu0 0.0
        %3564 = vmatpush.xpose.msra.mxu0 0.0
        %3565 = vmatpush.xpose.msra.mxu0 0.0
        %3566 = vmatpush.xpose.msra.mxu0 0.0
        %3567 = vmatpush.xpose.msra.mxu0 0.0
        %3568 = vmatpush.xpose.msra.mxu0 %v3551
        %3569 = vmatmul.f32.gmra.mxu0 %v3549
        %v3570 = vpop.f32.mrf.mxu0
        %v3571 = vadd.f32 0.0, %v3570
        %3572 = vdwg.mxu0
        %3573 = vrot.lane.b32.xlu0 %v3494, 96
        %v3574 = vpop.permute.xlu0 %3573
        %v3575 = vsel %vm791, %v3494, 0
        %v3577 = vsel %vm791, %v3574, 0
        %3579 = vmatpush.xpose.msra.mxu0 0.0
        %3580 = vmatpush.xpose.msra.mxu0 0.0
        %3581 = vmatpush.xpose.msra.mxu0 0.0
        %3582 = vmatpush.xpose.msra.mxu0 0.0
        %3583 = vmatpush.xpose.msra.mxu0 0.0
        %3584 = vmatpush.xpose.msra.mxu0 0.0
        %3585 = vmatpush.xpose.msra.mxu0 0.0
        %3586 = vmatpush.xpose.msra.mxu0 0.0
        %3587 = vmatpush.xpose.msra.mxu0 0.0
        %3588 = vmatpush.xpose.msra.mxu0 0.0
        %3589 = vmatpush.xpose.msra.mxu0 0.0
        %3590 = vmatpush.xpose.msra.mxu0 0.0
        %3591 = vmatpush.xpose.msra.mxu0 0.0
        %3592 = vmatpush.xpose.msra.mxu0 0.0
        %3593 = vmatpush.xpose.msra.mxu0 0.0
        %3594 = vmatpush.xpose.msra.mxu0 %v3577
        %3595 = vmatmul.f32.gmra.mxu0 %v3575
        %v3596 = vpop.f32.mrf.mxu0
        %v3597 = vadd.f32 0.0, %v3596
        %3598 = vdwg.mxu0
        %v3599 = vmul.f32 %v3519, 0.35355338
        %v3600 = vmul.f32 %v3545, 0.35355338
        %v3601 = vmul.f32 %v3571, 0.35355338
        %v3602 = vmul.f32 %v3597, 0.35355338
        %v3603 = vsel %vm791, %v3599, -inf
        %3604 = vmax.xlane.f32.xlu0 %v3603
        %v3605 = vpop.xlane.xlu0 %3604
        %v3606 = vsel %vm791, %v3600, -inf
        %3607 = vmax.xlane.f32.xlu0 %v3606
        %v3608 = vpop.xlane.xlu0 %3607
        %v3609 = vsel %vm791, %v3601, -inf
        %3610 = vmax.xlane.f32.xlu0 %v3609
        %v3611 = vpop.xlane.xlu0 %3610
        %v3612 = vsel %vm791, %v3602, -inf
        %3613 = vmax.xlane.f32.xlu0 %v3612
        %v3614 = vpop.xlane.xlu0 %3613
        %v3615 = vsub.f32 %v3599, %v3605
        %v3616 = vsub.f32 %v3600, %v3608
        %v3617 = vsub.f32 %v3601, %v3611
        %v3618 = vsub.f32 %v3602, %v3614
        %v3619 = vmul.f32 %v3615, 1.442695
        %v3620 = vpow.pop %v3619
        %v3621 = vmul.f32 %v3616, 1.442695
        %v3622 = vpow.pop %v3621
        %v3623 = vmul.f32 %v3617, 1.442695
        %v3624 = vpow.pop %v3623
        %v3625 = vmul.f32 %v3618, 1.442695
        %v3626 = vpow.pop %v3625
        %v3627 = vsel %vm791, %v3620, 0.0
        %3628 = vadd.xlane.f32.xlu0 %v3627
        %v3629 = vpop.xlane.xlu0 %3628
        %v3630 = vsel %vm791, %v3622, 0.0
        %3631 = vadd.xlane.f32.xlu0 %v3630
        %v3632 = vpop.xlane.xlu0 %3631
        %v3633 = vsel %vm791, %v3624, 0.0
        %3634 = vadd.xlane.f32.xlu0 %v3633
        %v3635 = vpop.xlane.xlu0 %3634
        %v3636 = vsel %vm791, %v3626, 0.0
        %3637 = vadd.xlane.f32.xlu0 %v3636
        %v3638 = vpop.xlane.xlu0 %3637
        %v3639 = vrcp.pop %v3629
        %v3640 = vmul.f32 %v3629, %v3639
        %v3641 = vsub.f32 1.0, %v3640
        %v3642 = vmul.f32 %v3639, %v3641
        %v3643 = vadd.f32 %v3639, %v3642
        %vm3644 = vweird.f32 %v3629
        %vm3645 = vweird.f32 %v3639
        %vm3646 = vmor %vm3644, %vm3645
        %v3647 = vsel %vm3646, %v3639, %v3643
        %v3648 = vand.u32 2147483647, %v3629
        %vm3649 = vcmp.eq.f32.partialorder %v3648, 8.507059e+37
        %v3650 = vand.u32 %v3629, 2147483648
        %v3651 = vor.u32 1.1754944e-38, %v3650
        %v3652 = vsel %vm3649, %v3651, %v3647
        %v3653 = vmul.f32 %v3620, %v3652
        %v3654 = vrcp.pop %v3632
        %v3655 = vmul.f32 %v3632, %v3654
        %v3656 = vsub.f32 1.0, %v3655
        %v3657 = vmul.f32 %v3654, %v3656
        %v3658 = vadd.f32 %v3654, %v3657
        %vm3659 = vweird.f32 %v3632
        %vm3660 = vweird.f32 %v3654
        %vm3661 = vmor %vm3659, %vm3660
        %v3662 = vsel %vm3661, %v3654, %v3658
        %v3663 = vand.u32 2147483647, %v3632
        %vm3664 = vcmp.eq.f32.partialorder %v3663, 8.507059e+37
        %v3665 = vand.u32 %v3632, 2147483648
        %v3666 = vor.u32 1.1754944e-38, %v3665
        %v3667 = vsel %vm3664, %v3666, %v3662
        %v3668 = vmul.f32 %v3622, %v3667
        %v3669 = vrcp.pop %v3635
        %v3670 = vmul.f32 %v3635, %v3669
        %v3671 = vsub.f32 1.0, %v3670
        %v3672 = vmul.f32 %v3669, %v3671
        %v3673 = vadd.f32 %v3669, %v3672
        %vm3674 = vweird.f32 %v3635
        %vm3675 = vweird.f32 %v3669
        %vm3676 = vmor %vm3674, %vm3675
        %v3677 = vsel %vm3676, %v3669, %v3673
        %v3678 = vand.u32 2147483647, %v3635
        %vm3679 = vcmp.eq.f32.partialorder %v3678, 8.507059e+37
        %v3680 = vand.u32 %v3635, 2147483648
        %v3681 = vor.u32 1.1754944e-38, %v3680
        %v3682 = vsel %vm3679, %v3681, %v3677
        %v3683 = vmul.f32 %v3624, %v3682
        %v3684 = vrcp.pop %v3638
        %v3685 = vmul.f32 %v3638, %v3684
        %v3686 = vsub.f32 1.0, %v3685
        %v3687 = vmul.f32 %v3684, %v3686
        %v3688 = vadd.f32 %v3684, %v3687
        %vm3689 = vweird.f32 %v3638
        %vm3690 = vweird.f32 %v3684
        %vm3691 = vmor %vm3689, %vm3690
        %v3692 = vsel %vm3691, %v3684, %v3688
        %v3693 = vand.u32 2147483647, %v3638
        %vm3694 = vcmp.eq.f32.partialorder %v3693, 8.507059e+37
        %v3695 = vand.u32 %v3638, 2147483648
        %v3696 = vor.u32 1.1754944e-38, %v3695
        %v3697 = vsel %vm3694, %v3696, %v3692
        %v3698 = vmul.f32 %v3626, %v3697
        %3699 = vrot.lane.b32.xlu0 %v3486, 64
        %v3700 = vpop.permute.xlu0 %3699
        %v3703 = vsel %vm791, %v3653, 0
        %3705 = vmatpush.msra.mxu0 0.0
        %3706 = vmatpush.msra.mxu0 0.0
        %3707 = vmatpush.msra.mxu0 0.0
        %3708 = vmatpush.msra.mxu0 0.0
        %3709 = vmatpush.msra.mxu0 0.0
        %3710 = vmatpush.msra.mxu0 0.0
        %3711 = vmatpush.msra.mxu0 0.0
        %3712 = vmatpush.msra.mxu0 0.0
        %3713 = vmatpush.msra.mxu0 0.0
        %3714 = vmatpush.msra.mxu0 0.0
        %3715 = vmatpush.msra.mxu0 0.0
        %3716 = vmatpush.msra.mxu0 0.0
        %3717 = vmatpush.msra.mxu0 0.0
        %3718 = vmatpush.msra.mxu0 0.0
        %3719 = vmatpush.msra.mxu0 0.0
        %3720 = vmatpush.msra.mxu0 %v3700
        %3721 = vmatmul.f32.gmra.mxu0 %v3703
        %v3722 = vpop.f32.mrf.mxu0
        %v3723 = vadd.f32 0.0, %v3722
        %3724 = vdwg.mxu0
        %3725 = vrot.lane.b32.xlu0 %v3490, 64
        %v3726 = vpop.permute.xlu0 %3725
        %v3729 = vsel %vm791, %v3668, 0
        %3731 = vmatpush.msra.mxu0 0.0
        %3732 = vmatpush.msra.mxu0 0.0
        %3733 = vmatpush.msra.mxu0 0.0
        %3734 = vmatpush.msra.mxu0 0.0
        %3735 = vmatpush.msra.mxu0 0.0
        %3736 = vmatpush.msra.mxu0 0.0
        %3737 = vmatpush.msra.mxu0 0.0
        %3738 = vmatpush.msra.mxu0 0.0
        %3739 = vmatpush.msra.mxu0 0.0
        %3740 = vmatpush.msra.mxu0 0.0
        %3741 = vmatpush.msra.mxu0 0.0
        %3742 = vmatpush.msra.mxu0 0.0
        %3743 = vmatpush.msra.mxu0 0.0
        %3744 = vmatpush.msra.mxu0 0.0
        %3745 = vmatpush.msra.mxu0 0.0
        %3746 = vmatpush.msra.mxu0 %v3726
        %3747 = vmatmul.f32.gmra.mxu0 %v3729
        %v3748 = vpop.f32.mrf.mxu0
        %v3749 = vadd.f32 0.0, %v3748
        %3750 = vdwg.mxu0
        %3751 = vrot.lane.b32.xlu0 %v3492, 64
        %v3752 = vpop.permute.xlu0 %3751
        %v3755 = vsel %vm791, %v3683, 0
        %3757 = vmatpush.msra.mxu0 0.0
        %3758 = vmatpush.msra.mxu0 0.0
        %3759 = vmatpush.msra.mxu0 0.0
        %3760 = vmatpush.msra.mxu0 0.0
        %3761 = vmatpush.msra.mxu0 0.0
        %3762 = vmatpush.msra.mxu0 0.0
        %3763 = vmatpush.msra.mxu0 0.0
        %3764 = vmatpush.msra.mxu0 0.0
        %3765 = vmatpush.msra.mxu0 0.0
        %3766 = vmatpush.msra.mxu0 0.0
        %3767 = vmatpush.msra.mxu0 0.0
        %3768 = vmatpush.msra.mxu0 0.0
        %3769 = vmatpush.msra.mxu0 0.0
        %3770 = vmatpush.msra.mxu0 0.0
        %3771 = vmatpush.msra.mxu0 0.0
        %3772 = vmatpush.msra.mxu0 %v3752
        %3773 = vmatmul.f32.gmra.mxu0 %v3755
        %v3774 = vpop.f32.mrf.mxu0
        %v3775 = vadd.f32 0.0, %v3774
        %3776 = vdwg.mxu0
        %3777 = vrot.lane.b32.xlu0 %v3494, 64
        %v3778 = vpop.permute.xlu0 %3777
        %v3781 = vsel %vm791, %v3698, 0
        %3783 = vmatpush.msra.mxu0 0.0
        %3784 = vmatpush.msra.mxu0 0.0
        %3785 = vmatpush.msra.mxu0 0.0
        %3786 = vmatpush.msra.mxu0 0.0
        %3787 = vmatpush.msra.mxu0 0.0
        %3788 = vmatpush.msra.mxu0 0.0
        %3789 = vmatpush.msra.mxu0 0.0
        %3790 = vmatpush.msra.mxu0 0.0
        %3791 = vmatpush.msra.mxu0 0.0
        %3792 = vmatpush.msra.mxu0 0.0
        %3793 = vmatpush.msra.mxu0 0.0
        %3794 = vmatpush.msra.mxu0 0.0
        %3795 = vmatpush.msra.mxu0 0.0
        %3796 = vmatpush.msra.mxu0 0.0
        %3797 = vmatpush.msra.mxu0 0.0
        %3798 = vmatpush.msra.mxu0 %v3778
        %3799 = vmatmul.f32.gmra.mxu0 %v3781
        %v3800 = vpop.f32.mrf.mxu0
        %v3801 = vadd.f32 0.0, %v3800
        %3802 = vdwg.mxu0
        %s3803 = scalar_lea.vmem [#allocation11], 64
        %v3804 = vld [vmem:[%s3803] sm:$0xff]
        %v3805 = vld [vmem:[%s3803 + $0x8] sm:$0xff]
        %v3806 = vld [vmem:[%s3803 + $0x10] sm:$0xff]
        %v3807 = vld [vmem:[%s3803 + $0x18] sm:$0xff]
        %v3809 = vsel %vm791, %v3749, 0
        %3811 = vmatpush.msra.mxu0 0.0
        %3812 = vmatpush.msra.mxu0 0.0
        %3813 = vmatpush.msra.mxu0 0.0
        %3814 = vmatpush.msra.mxu0 0.0
        %3815 = vmatpush.msra.mxu0 0.0
        %3816 = vmatpush.msra.mxu0 0.0
        %3817 = vmatpush.msra.mxu0 0.0
        %3818 = vmatpush.msra.mxu0 0.0
        %3819 = vmatpush.msra.mxu0 0.0
        %3820 = vmatpush.msra.mxu0 0.0
        %3821 = vmatpush.msra.mxu0 0.0
        %3822 = vmatpush.msra.mxu0 0.0
        %3823 = vmatpush.msra.mxu0 0.0
        %3824 = vmatpush.msra.mxu0 0.0
        %3825 = vmatpush.msra.mxu0 0.0
        %3826 = vmatpush.msra.mxu0 %v3805
        %3827 = vmatmul.f32.gmra.mxu0 %v3809
        %v3828 = vpop.f32.mrf.mxu0
        %v3829 = vadd.f32 0.0, %v3828
        %3830 = vdwg.mxu0
        %v3832 = vsel %vm791, %v3723, 0
        %3834 = vmatpush.msra.mxu0 0.0
        %3835 = vmatpush.msra.mxu0 0.0
        %3836 = vmatpush.msra.mxu0 0.0
        %3837 = vmatpush.msra.mxu0 0.0
        %3838 = vmatpush.msra.mxu0 0.0
        %3839 = vmatpush.msra.mxu0 0.0
        %3840 = vmatpush.msra.mxu0 0.0
        %3841 = vmatpush.msra.mxu0 0.0
        %3842 = vmatpush.msra.mxu0 0.0
        %3843 = vmatpush.msra.mxu0 0.0
        %3844 = vmatpush.msra.mxu0 0.0
        %3845 = vmatpush.msra.mxu0 0.0
        %3846 = vmatpush.msra.mxu0 0.0
        %3847 = vmatpush.msra.mxu0 0.0
        %3848 = vmatpush.msra.mxu0 0.0
        %3849 = vmatpush.msra.mxu0 %v3804
        %3850 = vmatmul.f32.gmra.mxu0 %v3832
        %v3851 = vpop.f32.mrf.mxu0
        %v3852 = vadd.f32 %v3829, %v3851
        %3853 = vdwg.mxu0
        %v3855 = vsel %vm791, %v3775, 0
        %3857 = vmatpush.msra.mxu0 0.0
        %3858 = vmatpush.msra.mxu0 0.0
        %3859 = vmatpush.msra.mxu0 0.0
        %3860 = vmatpush.msra.mxu0 0.0
        %3861 = vmatpush.msra.mxu0 0.0
        %3862 = vmatpush.msra.mxu0 0.0
        %3863 = vmatpush.msra.mxu0 0.0
        %3864 = vmatpush.msra.mxu0 0.0
        %3865 = vmatpush.msra.mxu0 0.0
        %3866 = vmatpush.msra.mxu0 0.0
        %3867 = vmatpush.msra.mxu0 0.0
        %3868 = vmatpush.msra.mxu0 0.0
        %3869 = vmatpush.msra.mxu0 0.0
        %3870 = vmatpush.msra.mxu0 0.0
        %3871 = vmatpush.msra.mxu0 0.0
        %3872 = vmatpush.msra.mxu0 %v3806
        %3873 = vmatmul.f32.gmra.mxu0 %v3855
        %v3874 = vpop.f32.mrf.mxu0
        %v3875 = vadd.f32 0.0, %v3874
        %3876 = vdwg.mxu0
        %v3877 = vadd.f32 %v3852, %v3875
        %v3879 = vsel %vm791, %v3801, 0
        %3881 = vmatpush.msra.mxu0 0.0
        %3882 = vmatpush.msra.mxu0 0.0
        %3883 = vmatpush.msra.mxu0 0.0
        %3884 = vmatpush.msra.mxu0 0.0
        %3885 = vmatpush.msra.mxu0 0.0
        %3886 = vmatpush.msra.mxu0 0.0
        %3887 = vmatpush.msra.mxu0 0.0
        %3888 = vmatpush.msra.mxu0 0.0
        %3889 = vmatpush.msra.mxu0 0.0
        %3890 = vmatpush.msra.mxu0 0.0
        %3891 = vmatpush.msra.mxu0 0.0
        %3892 = vmatpush.msra.mxu0 0.0
        %3893 = vmatpush.msra.mxu0 0.0
        %3894 = vmatpush.msra.mxu0 0.0
        %3895 = vmatpush.msra.mxu0 0.0
        %3896 = vmatpush.msra.mxu0 %v3807
        %3897 = vmatmul.f32.gmra.mxu0 %v3879
        %v3898 = vpop.f32.mrf.mxu0
        %v3899 = vadd.f32 0.0, %v3898
        %3900 = vdwg.mxu0
        %v3901 = vadd.f32 %v3877, %v3899
        %s3902 = scalar_lea.vmem %s7, 2
        %v3903 = vld [vmem:[%s3902] sm:$0x1]
        %v3905 = vperm.slane %v3903, 0
        %v3907 = vadd.f32 %v3901, %v3905
        %v3908 = vadd.f32 %v3454, %v3907
        %s3909 = scalar_lea.vmem [#allocation13], 2
        %v3910 = vld [vmem:[%s3909] sm:$0x1]
        %s3911 = scalar_lea.vmem [#allocation14], 2
        %v3912 = vld [vmem:[%s3911] sm:$0x1]
        %v3913 = vsel %vm758, %v3908, 0.0
        %3914 = vadd.xlane.f32.xlu0 %v3913
        %v3915 = vpop.xlane.xlu0 %3914
        %v3916 = vmul.f32 %v3915, %v1213
        %v3917 = vsub.f32 %v3908, %v3916
        %v3918 = vmul.f32 %v3917, %v3917
        %v3919 = vsel %vm758, %v3918, 0.0
        %3920 = vadd.xlane.f32.xlu0 %v3919
        %v3921 = vpop.xlane.xlu0 %3920
        %v3922 = vmul.f32 %v3921, %v1213
        %v3923 = vadd.f32 %v3922, 1e-05
        %v3924 = vrsqrt.pop %v3923
        %v3925 = vmul.f32 %v3924, %v3923
        %v3926 = vmul.f32 %v3925, %v3924
        %v3927 = vmul.f32 0.5, %v3926
        %v3928 = vsub.f32 1.5, %v3927
        %v3929 = vmul.f32 %v3924, %v3928
        %vm3930 = vweird.f32 %v3923
        %vm3931 = vweird.f32 %v3924
        %vm3932 = vmor %vm3930, %vm3931
        %v3933 = vsel %vm3932, %v3924, %v3929
        %v3934 = vmul.f32 %v3917, %v3933
        %v3936 = vperm.slane %v3910, 0
        %v3938 = vmul.f32 %v3934, %v3936
        %v3940 = vperm.slane %v3912, 0
        %v3942 = vadd.f32 %v3938, %v3940
        %s3943 = scalar_lea.vmem [#allocation16], 1024
        %v3944 = vld [vmem:[%s3943] sm:$0xff]
        %v3945 = vld [vmem:[%s3943 + $0x8] sm:$0xff]
        %v3946 = vld [vmem:[%s3943 + $0x10] sm:$0xff]
        %v3947 = vld [vmem:[%s3943 + $0x18] sm:$0xff]
        %v3948 = vld [vmem:[%s3943 + $0x20] sm:$0xff]
        %v3949 = vld [vmem:[%s3943 + $0x28] sm:$0xff]
        %v3950 = vld [vmem:[%s3943 + $0x30] sm:$0xff]
        %v3951 = vld [vmem:[%s3943 + $0x38] sm:$0xff]
        %v3952 = vld [vmem:[%s3943 + $0x40] sm:$0xff]
        %v3953 = vld [vmem:[%s3943 + $0x48] sm:$0xff]
        %v3954 = vld [vmem:[%s3943 + $0x50] sm:$0xff]
        %v3955 = vld [vmem:[%s3943 + $0x58] sm:$0xff]
        %v3956 = vld [vmem:[%s3943 + $0x60] sm:$0xff]
        %v3957 = vld [vmem:[%s3943 + $0x68] sm:$0xff]
        %v3958 = vld [vmem:[%s3943 + $0x70] sm:$0xff]
        %v3959 = vld [vmem:[%s3943 + $0x78] sm:$0xff]
        %v3960 = vld [vmem:[%s3943 + $0x80] sm:$0xff]
        %v3961 = vld [vmem:[%s3943 + $0x88] sm:$0xff]
        %v3962 = vld [vmem:[%s3943 + $0x90] sm:$0xff]
        %v3963 = vld [vmem:[%s3943 + $0x98] sm:$0xff]
        %v3964 = vld [vmem:[%s3943 + $0xa0] sm:$0xff]
        %v3965 = vld [vmem:[%s3943 + $0xa8] sm:$0xff]
        %v3966 = vld [vmem:[%s3943 + $0xb0] sm:$0xff]
        %v3967 = vld [vmem:[%s3943 + $0xb8] sm:$0xff]
        %v3968 = vld [vmem:[%s3943 + $0xc0] sm:$0xff]
        %v3969 = vld [vmem:[%s3943 + $0xc8] sm:$0xff]
        %v3970 = vld [vmem:[%s3943 + $0xd0] sm:$0xff]
        %v3971 = vld [vmem:[%s3943 + $0xd8] sm:$0xff]
        %v3972 = vld [vmem:[%s3943 + $0xe0] sm:$0xff]
        %v3973 = vld [vmem:[%s3943 + $0xe8] sm:$0xff]
        %v3974 = vld [vmem:[%s3943 + $0xf0] sm:$0xff]
        %v3975 = vld [vmem:[%s3943 + $0xf8] sm:$0xff]
        %v3976 = vld [vmem:[%s3943 + $0x100] sm:$0xff]
        %v3977 = vld [vmem:[%s3943 + $0x108] sm:$0xff]
        %v3978 = vld [vmem:[%s3943 + $0x110] sm:$0xff]
        %v3979 = vld [vmem:[%s3943 + $0x118] sm:$0xff]
        %v3980 = vld [vmem:[%s3943 + $0x120] sm:$0xff]
        %v3981 = vld [vmem:[%s3943 + $0x128] sm:$0xff]
        %v3982 = vld [vmem:[%s3943 + $0x130] sm:$0xff]
        %v3983 = vld [vmem:[%s3943 + $0x138] sm:$0xff]
        %v3984 = vld [vmem:[%s3943 + $0x140] sm:$0xff]
        %v3985 = vld [vmem:[%s3943 + $0x148] sm:$0xff]
        %v3986 = vld [vmem:[%s3943 + $0x150] sm:$0xff]
        %v3987 = vld [vmem:[%s3943 + $0x158] sm:$0xff]
        %v3988 = vld [vmem:[%s3943 + $0x160] sm:$0xff]
        %v3989 = vld [vmem:[%s3943 + $0x168] sm:$0xff]
        %v3990 = vld [vmem:[%s3943 + $0x170] sm:$0xff]
        %v3991 = vld [vmem:[%s3943 + $0x178] sm:$0xff]
        %v3992 = vld [vmem:[%s3943 + $0x180] sm:$0xff]
        %v3993 = vld [vmem:[%s3943 + $0x188] sm:$0xff]
        %v3994 = vld [vmem:[%s3943 + $0x190] sm:$0xff]
        %v3995 = vld [vmem:[%s3943 + $0x198] sm:$0xff]
        %v3996 = vld [vmem:[%s3943 + $0x1a0] sm:$0xff]
        %v3997 = vld [vmem:[%s3943 + $0x1a8] sm:$0xff]
        %v3998 = vld [vmem:[%s3943 + $0x1b0] sm:$0xff]
        %v3999 = vld [vmem:[%s3943 + $0x1b8] sm:$0xff]
        %v4000 = vld [vmem:[%s3943 + $0x1c0] sm:$0xff]
        %v4001 = vld [vmem:[%s3943 + $0x1c8] sm:$0xff]
        %v4002 = vld [vmem:[%s3943 + $0x1d0] sm:$0xff]
        %v4003 = vld [vmem:[%s3943 + $0x1d8] sm:$0xff]
        %v4004 = vld [vmem:[%s3943 + $0x1e0] sm:$0xff]
        %v4005 = vld [vmem:[%s3943 + $0x1e8] sm:$0xff]
        %v4006 = vld [vmem:[%s3943 + $0x1f0] sm:$0xff]
        %v4007 = vld [vmem:[%s3943 + $0x1f8] sm:$0xff]
        %s4008 = scalar_lea.vmem [#allocation17], 32
        %v4009 = vld [vmem:[%s4008] sm:$0xff]
        %v4010 = vld [vmem:[%s4008 + $0x8] sm:$0xff]
        %v4013 = vperm.slane %v4009, 0
        %v4014 = vperm.slane %v4009, 1
        %v4015 = vperm.slane %v4009, 2
        %v4016 = vperm.slane %v4009, 3
        %v4017 = vperm.slane %v4009, 4
        %v4018 = vperm.slane %v4009, 5
        %v4019 = vperm.slane %v4009, 6
        %v4020 = vperm.slane %v4009, 7
        %v4021 = vperm.slane %v4010, 0
        %v4022 = vperm.slane %v4010, 1
        %v4023 = vperm.slane %v4010, 2
        %v4024 = vperm.slane %v4010, 3
        %v4025 = vperm.slane %v4010, 4
        %v4026 = vperm.slane %v4010, 5
        %v4027 = vperm.slane %v4010, 6
        %v4028 = vperm.slane %v4010, 7
        %v4046 = vsel %vm758, %v3942, 0
        %4048 = vmatpush.msra.mxu0 0.0
        %4049 = vmatpush.msra.mxu0 0.0
        %4050 = vmatpush.msra.mxu0 0.0
        %4051 = vmatpush.msra.mxu0 0.0
        %4052 = vmatpush.msra.mxu0 0.0
        %4053 = vmatpush.msra.mxu0 0.0
        %4054 = vmatpush.msra.mxu0 0.0
        %4055 = vmatpush.msra.mxu0 0.0
        %4056 = vmatpush.msra.mxu0 0.0
        %4057 = vmatpush.msra.mxu0 0.0
        %4058 = vmatpush.msra.mxu0 0.0
        %4059 = vmatpush.msra.mxu0 0.0
        %4060 = vmatpush.msra.mxu0 %v3992
        %4061 = vmatpush.msra.mxu0 %v3976
        %4062 = vmatpush.msra.mxu0 %v3960
        %4063 = vmatpush.msra.mxu0 %v3944
        %4064 = vmatmul.f32.gmra.mxu0 %v4046
        %v4065 = vpop.f32.mrf.mxu0
        %v4066 = vadd.f32 %v4013, %v4065
        %4067 = vdwg.mxu0
        %4068 = vmatpush.msra.mxu0 0.0
        %4069 = vmatpush.msra.mxu0 0.0
        %4070 = vmatpush.msra.mxu0 0.0
        %4071 = vmatpush.msra.mxu0 0.0
        %4072 = vmatpush.msra.mxu0 0.0
        %4073 = vmatpush.msra.mxu0 0.0
        %4074 = vmatpush.msra.mxu0 0.0
        %4075 = vmatpush.msra.mxu0 0.0
        %4076 = vmatpush.msra.mxu0 0.0
        %4077 = vmatpush.msra.mxu0 0.0
        %4078 = vmatpush.msra.mxu0 0.0
        %4079 = vmatpush.msra.mxu0 0.0
        %4080 = vmatpush.msra.mxu0 %v3993
        %4081 = vmatpush.msra.mxu0 %v3977
        %4082 = vmatpush.msra.mxu0 %v3961
        %4083 = vmatpush.msra.mxu0 %v3945
        %4084 = vmatmul.f32.gmra.mxu0 %v4046
        %v4085 = vpop.f32.mrf.mxu0
        %v4086 = vadd.f32 %v4014, %v4085
        %4087 = vdwg.mxu0
        %4088 = vmatpush.msra.mxu0 0.0
        %4089 = vmatpush.msra.mxu0 0.0
        %4090 = vmatpush.msra.mxu0 0.0
        %4091 = vmatpush.msra.mxu0 0.0
        %4092 = vmatpush.msra.mxu0 0.0
        %4093 = vmatpush.msra.mxu0 0.0
        %4094 = vmatpush.msra.mxu0 0.0
        %4095 = vmatpush.msra.mxu0 0.0
        %4096 = vmatpush.msra.mxu0 0.0
        %4097 = vmatpush.msra.mxu0 0.0
        %4098 = vmatpush.msra.mxu0 0.0
        %4099 = vmatpush.msra.mxu0 0.0
        %4100 = vmatpush.msra.mxu0 %v3994
        %4101 = vmatpush.msra.mxu0 %v3978
        %4102 = vmatpush.msra.mxu0 %v3962
        %4103 = vmatpush.msra.mxu0 %v3946
        %4104 = vmatmul.f32.gmra.mxu0 %v4046
        %v4105 = vpop.f32.mrf.mxu0
        %v4106 = vadd.f32 %v4015, %v4105
        %4107 = vdwg.mxu0
        %4108 = vmatpush.msra.mxu0 0.0
        %4109 = vmatpush.msra.mxu0 0.0
        %4110 = vmatpush.msra.mxu0 0.0
        %4111 = vmatpush.msra.mxu0 0.0
        %4112 = vmatpush.msra.mxu0 0.0
        %4113 = vmatpush.msra.mxu0 0.0
        %4114 = vmatpush.msra.mxu0 0.0
        %4115 = vmatpush.msra.mxu0 0.0
        %4116 = vmatpush.msra.mxu0 0.0
        %4117 = vmatpush.msra.mxu0 0.0
        %4118 = vmatpush.msra.mxu0 0.0
        %4119 = vmatpush.msra.mxu0 0.0
        %4120 = vmatpush.msra.mxu0 %v3995
        %4121 = vmatpush.msra.mxu0 %v3979
        %4122 = vmatpush.msra.mxu0 %v3963
        %4123 = vmatpush.msra.mxu0 %v3947
        %4124 = vmatmul.f32.gmra.mxu0 %v4046
        %v4125 = vpop.f32.mrf.mxu0
        %v4126 = vadd.f32 %v4016, %v4125
        %4127 = vdwg.mxu0
        %4128 = vmatpush.msra.mxu0 0.0
        %4129 = vmatpush.msra.mxu0 0.0
        %4130 = vmatpush.msra.mxu0 0.0
        %4131 = vmatpush.msra.mxu0 0.0
        %4132 = vmatpush.msra.mxu0 0.0
        %4133 = vmatpush.msra.mxu0 0.0
        %4134 = vmatpush.msra.mxu0 0.0
        %4135 = vmatpush.msra.mxu0 0.0
        %4136 = vmatpush.msra.mxu0 0.0
        %4137 = vmatpush.msra.mxu0 0.0
        %4138 = vmatpush.msra.mxu0 0.0
        %4139 = vmatpush.msra.mxu0 0.0
        %4140 = vmatpush.msra.mxu0 %v3996
        %4141 = vmatpush.msra.mxu0 %v3980
        %4142 = vmatpush.msra.mxu0 %v3964
        %4143 = vmatpush.msra.mxu0 %v3948
        %4144 = vmatmul.f32.gmra.mxu0 %v4046
        %v4145 = vpop.f32.mrf.mxu0
        %v4146 = vadd.f32 %v4017, %v4145
        %4147 = vdwg.mxu0
        %4148 = vmatpush.msra.mxu0 0.0
        %4149 = vmatpush.msra.mxu0 0.0
        %4150 = vmatpush.msra.mxu0 0.0
        %4151 = vmatpush.msra.mxu0 0.0
        %4152 = vmatpush.msra.mxu0 0.0
        %4153 = vmatpush.msra.mxu0 0.0
        %4154 = vmatpush.msra.mxu0 0.0
        %4155 = vmatpush.msra.mxu0 0.0
        %4156 = vmatpush.msra.mxu0 0.0
        %4157 = vmatpush.msra.mxu0 0.0
        %4158 = vmatpush.msra.mxu0 0.0
        %4159 = vmatpush.msra.mxu0 0.0
        %4160 = vmatpush.msra.mxu0 %v3997
        %4161 = vmatpush.msra.mxu0 %v3981
        %4162 = vmatpush.msra.mxu0 %v3965
        %4163 = vmatpush.msra.mxu0 %v3949
        %4164 = vmatmul.f32.gmra.mxu0 %v4046
        %v4165 = vpop.f32.mrf.mxu0
        %v4166 = vadd.f32 %v4018, %v4165
        %4167 = vdwg.mxu0
        %4168 = vmatpush.msra.mxu0 0.0
        %4169 = vmatpush.msra.mxu0 0.0
        %4170 = vmatpush.msra.mxu0 0.0
        %4171 = vmatpush.msra.mxu0 0.0
        %4172 = vmatpush.msra.mxu0 0.0
        %4173 = vmatpush.msra.mxu0 0.0
        %4174 = vmatpush.msra.mxu0 0.0
        %4175 = vmatpush.msra.mxu0 0.0
        %4176 = vmatpush.msra.mxu0 0.0
        %4177 = vmatpush.msra.mxu0 0.0
        %4178 = vmatpush.msra.mxu0 0.0
        %4179 = vmatpush.msra.mxu0 0.0
        %4180 = vmatpush.msra.mxu0 %v3998
        %4181 = vmatpush.msra.mxu0 %v3982
        %4182 = vmatpush.msra.mxu0 %v3966
        %4183 = vmatpush.msra.mxu0 %v3950
        %4184 = vmatmul.f32.gmra.mxu0 %v4046
        %v4185 = vpop.f32.mrf.mxu0
        %v4186 = vadd.f32 %v4019, %v4185
        %4187 = vdwg.mxu0
        %4188 = vmatpush.msra.mxu0 0.0
        %4189 = vmatpush.msra.mxu0 0.0
        %4190 = vmatpush.msra.mxu0 0.0
        %4191 = vmatpush.msra.mxu0 0.0
        %4192 = vmatpush.msra.mxu0 0.0
        %4193 = vmatpush.msra.mxu0 0.0
        %4194 = vmatpush.msra.mxu0 0.0
        %4195 = vmatpush.msra.mxu0 0.0
        %4196 = vmatpush.msra.mxu0 0.0
        %4197 = vmatpush.msra.mxu0 0.0
        %4198 = vmatpush.msra.mxu0 0.0
        %4199 = vmatpush.msra.mxu0 0.0
        %4200 = vmatpush.msra.mxu0 %v3999
        %4201 = vmatpush.msra.mxu0 %v3983
        %4202 = vmatpush.msra.mxu0 %v3967
        %4203 = vmatpush.msra.mxu0 %v3951
        %4204 = vmatmul.f32.gmra.mxu0 %v4046
        %v4205 = vpop.f32.mrf.mxu0
        %v4206 = vadd.f32 %v4020, %v4205
        %4207 = vdwg.mxu0
        %4208 = vmatpush.msra.mxu0 0.0
        %4209 = vmatpush.msra.mxu0 0.0
        %4210 = vmatpush.msra.mxu0 0.0
        %4211 = vmatpush.msra.mxu0 0.0
        %4212 = vmatpush.msra.mxu0 0.0
        %4213 = vmatpush.msra.mxu0 0.0
        %4214 = vmatpush.msra.mxu0 0.0
        %4215 = vmatpush.msra.mxu0 0.0
        %4216 = vmatpush.msra.mxu0 0.0
        %4217 = vmatpush.msra.mxu0 0.0
        %4218 = vmatpush.msra.mxu0 0.0
        %4219 = vmatpush.msra.mxu0 0.0
        %4220 = vmatpush.msra.mxu0 %v4000
        %4221 = vmatpush.msra.mxu0 %v3984
        %4222 = vmatpush.msra.mxu0 %v3968
        %4223 = vmatpush.msra.mxu0 %v3952
        %4224 = vmatmul.f32.gmra.mxu0 %v4046
        %v4225 = vpop.f32.mrf.mxu0
        %v4226 = vadd.f32 %v4021, %v4225
        %4227 = vdwg.mxu0
        %4228 = vmatpush.msra.mxu0 0.0
        %4229 = vmatpush.msra.mxu0 0.0
        %4230 = vmatpush.msra.mxu0 0.0
        %4231 = vmatpush.msra.mxu0 0.0
        %4232 = vmatpush.msra.mxu0 0.0
        %4233 = vmatpush.msra.mxu0 0.0
        %4234 = vmatpush.msra.mxu0 0.0
        %4235 = vmatpush.msra.mxu0 0.0
        %4236 = vmatpush.msra.mxu0 0.0
        %4237 = vmatpush.msra.mxu0 0.0
        %4238 = vmatpush.msra.mxu0 0.0
        %4239 = vmatpush.msra.mxu0 0.0
        %4240 = vmatpush.msra.mxu0 %v4001
        %4241 = vmatpush.msra.mxu0 %v3985
        %4242 = vmatpush.msra.mxu0 %v3969
        %4243 = vmatpush.msra.mxu0 %v3953
        %4244 = vmatmul.f32.gmra.mxu0 %v4046
        %v4245 = vpop.f32.mrf.mxu0
        %v4246 = vadd.f32 %v4022, %v4245
        %4247 = vdwg.mxu0
        %4248 = vmatpush.msra.mxu0 0.0
        %4249 = vmatpush.msra.mxu0 0.0
        %4250 = vmatpush.msra.mxu0 0.0
        %4251 = vmatpush.msra.mxu0 0.0
        %4252 = vmatpush.msra.mxu0 0.0
        %4253 = vmatpush.msra.mxu0 0.0
        %4254 = vmatpush.msra.mxu0 0.0
        %4255 = vmatpush.msra.mxu0 0.0
        %4256 = vmatpush.msra.mxu0 0.0
        %4257 = vmatpush.msra.mxu0 0.0
        %4258 = vmatpush.msra.mxu0 0.0
        %4259 = vmatpush.msra.mxu0 0.0
        %4260 = vmatpush.msra.mxu0 %v4002
        %4261 = vmatpush.msra.mxu0 %v3986
        %4262 = vmatpush.msra.mxu0 %v3970
        %4263 = vmatpush.msra.mxu0 %v3954
        %4264 = vmatmul.f32.gmra.mxu0 %v4046
        %v4265 = vpop.f32.mrf.mxu0
        %v4266 = vadd.f32 %v4023, %v4265
        %4267 = vdwg.mxu0
        %4268 = vmatpush.msra.mxu0 0.0
        %4269 = vmatpush.msra.mxu0 0.0
        %4270 = vmatpush.msra.mxu0 0.0
        %4271 = vmatpush.msra.mxu0 0.0
        %4272 = vmatpush.msra.mxu0 0.0
        %4273 = vmatpush.msra.mxu0 0.0
        %4274 = vmatpush.msra.mxu0 0.0
        %4275 = vmatpush.msra.mxu0 0.0
        %4276 = vmatpush.msra.mxu0 0.0
        %4277 = vmatpush.msra.mxu0 0.0
        %4278 = vmatpush.msra.mxu0 0.0
        %4279 = vmatpush.msra.mxu0 0.0
        %4280 = vmatpush.msra.mxu0 %v4003
        %4281 = vmatpush.msra.mxu0 %v3987
        %4282 = vmatpush.msra.mxu0 %v3971
        %4283 = vmatpush.msra.mxu0 %v3955
        %4284 = vmatmul.f32.gmra.mxu0 %v4046
        %v4285 = vpop.f32.mrf.mxu0
        %v4286 = vadd.f32 %v4024, %v4285
        %4287 = vdwg.mxu0
        %4288 = vmatpush.msra.mxu0 0.0
        %4289 = vmatpush.msra.mxu0 0.0
        %4290 = vmatpush.msra.mxu0 0.0
        %4291 = vmatpush.msra.mxu0 0.0
        %4292 = vmatpush.msra.mxu0 0.0
        %4293 = vmatpush.msra.mxu0 0.0
        %4294 = vmatpush.msra.mxu0 0.0
        %4295 = vmatpush.msra.mxu0 0.0
        %4296 = vmatpush.msra.mxu0 0.0
        %4297 = vmatpush.msra.mxu0 0.0
        %4298 = vmatpush.msra.mxu0 0.0
        %4299 = vmatpush.msra.mxu0 0.0
        %4300 = vmatpush.msra.mxu0 %v4004
        %4301 = vmatpush.msra.mxu0 %v3988
        %4302 = vmatpush.msra.mxu0 %v3972
        %4303 = vmatpush.msra.mxu0 %v3956
        %4304 = vmatmul.f32.gmra.mxu0 %v4046
        %v4305 = vpop.f32.mrf.mxu0
        %v4306 = vadd.f32 %v4025, %v4305
        %4307 = vdwg.mxu0
        %4308 = vmatpush.msra.mxu0 0.0
        %4309 = vmatpush.msra.mxu0 0.0
        %4310 = vmatpush.msra.mxu0 0.0
        %4311 = vmatpush.msra.mxu0 0.0
        %4312 = vmatpush.msra.mxu0 0.0
        %4313 = vmatpush.msra.mxu0 0.0
        %4314 = vmatpush.msra.mxu0 0.0
        %4315 = vmatpush.msra.mxu0 0.0
        %4316 = vmatpush.msra.mxu0 0.0
        %4317 = vmatpush.msra.mxu0 0.0
        %4318 = vmatpush.msra.mxu0 0.0
        %4319 = vmatpush.msra.mxu0 0.0
        %4320 = vmatpush.msra.mxu0 %v4005
        %4321 = vmatpush.msra.mxu0 %v3989
        %4322 = vmatpush.msra.mxu0 %v3973
        %4323 = vmatpush.msra.mxu0 %v3957
        %4324 = vmatmul.f32.gmra.mxu0 %v4046
        %v4325 = vpop.f32.mrf.mxu0
        %v4326 = vadd.f32 %v4026, %v4325
        %4327 = vdwg.mxu0
        %4328 = vmatpush.msra.mxu0 0.0
        %4329 = vmatpush.msra.mxu0 0.0
        %4330 = vmatpush.msra.mxu0 0.0
        %4331 = vmatpush.msra.mxu0 0.0
        %4332 = vmatpush.msra.mxu0 0.0
        %4333 = vmatpush.msra.mxu0 0.0
        %4334 = vmatpush.msra.mxu0 0.0
        %4335 = vmatpush.msra.mxu0 0.0
        %4336 = vmatpush.msra.mxu0 0.0
        %4337 = vmatpush.msra.mxu0 0.0
        %4338 = vmatpush.msra.mxu0 0.0
        %4339 = vmatpush.msra.mxu0 0.0
        %4340 = vmatpush.msra.mxu0 %v4006
        %4341 = vmatpush.msra.mxu0 %v3990
        %4342 = vmatpush.msra.mxu0 %v3974
        %4343 = vmatpush.msra.mxu0 %v3958
        %4344 = vmatmul.f32.gmra.mxu0 %v4046
        %v4345 = vpop.f32.mrf.mxu0
        %v4346 = vadd.f32 %v4027, %v4345
        %4347 = vdwg.mxu0
        %4348 = vmatpush.msra.mxu0 0.0
        %4349 = vmatpush.msra.mxu0 0.0
        %4350 = vmatpush.msra.mxu0 0.0
        %4351 = vmatpush.msra.mxu0 0.0
        %4352 = vmatpush.msra.mxu0 0.0
        %4353 = vmatpush.msra.mxu0 0.0
        %4354 = vmatpush.msra.mxu0 0.0
        %4355 = vmatpush.msra.mxu0 0.0
        %4356 = vmatpush.msra.mxu0 0.0
        %4357 = vmatpush.msra.mxu0 0.0
        %4358 = vmatpush.msra.mxu0 0.0
        %4359 = vmatpush.msra.mxu0 0.0
        %4360 = vmatpush.msra.mxu0 %v4007
        %4361 = vmatpush.msra.mxu0 %v3991
        %4362 = vmatpush.msra.mxu0 %v3975
        %4363 = vmatpush.msra.mxu0 %v3959
        %4364 = vmatmul.f32.gmra.mxu0 %v4046
        %v4365 = vpop.f32.mrf.mxu0
        %v4366 = vadd.f32 %v4028, %v4365
        %4367 = vdwg.mxu0
        %v4368 = vmax.f32 %v4066, 0.0
        %v4369 = vmax.f32 %v4086, 0.0
        %v4370 = vmax.f32 %v4106, 0.0
        %v4371 = vmax.f32 %v4126, 0.0
        %v4372 = vmax.f32 %v4146, 0.0
        %v4373 = vmax.f32 %v4166, 0.0
        %v4374 = vmax.f32 %v4186, 0.0
        %v4375 = vmax.f32 %v4206, 0.0
        %v4376 = vmax.f32 %v4226, 0.0
        %v4377 = vmax.f32 %v4246, 0.0
        %v4378 = vmax.f32 %v4266, 0.0
        %v4379 = vmax.f32 %v4286, 0.0
        %v4380 = vmax.f32 %v4306, 0.0
        %v4381 = vmax.f32 %v4326, 0.0
        %v4382 = vmax.f32 %v4346, 0.0
        %v4383 = vmax.f32 %v4366, 0.0
        %s4384 = scalar_lea.vmem [#allocation19], 1024
        %v4385 = vld [vmem:[%s4384] sm:$0xff]
        %v4386 = vld [vmem:[%s4384 + $0x8] sm:$0xff]
        %v4387 = vld [vmem:[%s4384 + $0x10] sm:$0xff]
        %v4388 = vld [vmem:[%s4384 + $0x18] sm:$0xff]
        %v4389 = vld [vmem:[%s4384 + $0x20] sm:$0xff]
        %v4390 = vld [vmem:[%s4384 + $0x28] sm:$0xff]
        %v4391 = vld [vmem:[%s4384 + $0x30] sm:$0xff]
        %v4392 = vld [vmem:[%s4384 + $0x38] sm:$0xff]
        %v4393 = vld [vmem:[%s4384 + $0x40] sm:$0xff]
        %v4394 = vld [vmem:[%s4384 + $0x48] sm:$0xff]
        %v4395 = vld [vmem:[%s4384 + $0x50] sm:$0xff]
        %v4396 = vld [vmem:[%s4384 + $0x58] sm:$0xff]
        %v4397 = vld [vmem:[%s4384 + $0x60] sm:$0xff]
        %v4398 = vld [vmem:[%s4384 + $0x68] sm:$0xff]
        %v4399 = vld [vmem:[%s4384 + $0x70] sm:$0xff]
        %v4400 = vld [vmem:[%s4384 + $0x78] sm:$0xff]
        %v4401 = vld [vmem:[%s4384 + $0x80] sm:$0xff]
        %v4402 = vld [vmem:[%s4384 + $0x88] sm:$0xff]
        %v4403 = vld [vmem:[%s4384 + $0x90] sm:$0xff]
        %v4404 = vld [vmem:[%s4384 + $0x98] sm:$0xff]
        %v4405 = vld [vmem:[%s4384 + $0xa0] sm:$0xff]
        %v4406 = vld [vmem:[%s4384 + $0xa8] sm:$0xff]
        %v4407 = vld [vmem:[%s4384 + $0xb0] sm:$0xff]
        %v4408 = vld [vmem:[%s4384 + $0xb8] sm:$0xff]
        %v4409 = vld [vmem:[%s4384 + $0xc0] sm:$0xff]
        %v4410 = vld [vmem:[%s4384 + $0xc8] sm:$0xff]
        %v4411 = vld [vmem:[%s4384 + $0xd0] sm:$0xff]
        %v4412 = vld [vmem:[%s4384 + $0xd8] sm:$0xff]
        %v4413 = vld [vmem:[%s4384 + $0xe0] sm:$0xff]
        %v4414 = vld [vmem:[%s4384 + $0xe8] sm:$0xff]
        %v4415 = vld [vmem:[%s4384 + $0xf0] sm:$0xff]
        %v4416 = vld [vmem:[%s4384 + $0xf8] sm:$0xff]
        %v4417 = vld [vmem:[%s4384 + $0x100] sm:$0xff]
        %v4418 = vld [vmem:[%s4384 + $0x108] sm:$0xff]
        %v4419 = vld [vmem:[%s4384 + $0x110] sm:$0xff]
        %v4420 = vld [vmem:[%s4384 + $0x118] sm:$0xff]
        %v4421 = vld [vmem:[%s4384 + $0x120] sm:$0xff]
        %v4422 = vld [vmem:[%s4384 + $0x128] sm:$0xff]
        %v4423 = vld [vmem:[%s4384 + $0x130] sm:$0xff]
        %v4424 = vld [vmem:[%s4384 + $0x138] sm:$0xff]
        %v4425 = vld [vmem:[%s4384 + $0x140] sm:$0xff]
        %v4426 = vld [vmem:[%s4384 + $0x148] sm:$0xff]
        %v4427 = vld [vmem:[%s4384 + $0x150] sm:$0xff]
        %v4428 = vld [vmem:[%s4384 + $0x158] sm:$0xff]
        %v4429 = vld [vmem:[%s4384 + $0x160] sm:$0xff]
        %v4430 = vld [vmem:[%s4384 + $0x168] sm:$0xff]
        %v4431 = vld [vmem:[%s4384 + $0x170] sm:$0xff]
        %v4432 = vld [vmem:[%s4384 + $0x178] sm:$0xff]
        %v4433 = vld [vmem:[%s4384 + $0x180] sm:$0xff]
        %v4434 = vld [vmem:[%s4384 + $0x188] sm:$0xff]
        %v4435 = vld [vmem:[%s4384 + $0x190] sm:$0xff]
        %v4436 = vld [vmem:[%s4384 + $0x198] sm:$0xff]
        %v4437 = vld [vmem:[%s4384 + $0x1a0] sm:$0xff]
        %v4438 = vld [vmem:[%s4384 + $0x1a8] sm:$0xff]
        %v4439 = vld [vmem:[%s4384 + $0x1b0] sm:$0xff]
        %v4440 = vld [vmem:[%s4384 + $0x1b8] sm:$0xff]
        %v4441 = vld [vmem:[%s4384 + $0x1c0] sm:$0xff]
        %v4442 = vld [vmem:[%s4384 + $0x1c8] sm:$0xff]
        %v4443 = vld [vmem:[%s4384 + $0x1d0] sm:$0xff]
        %v4444 = vld [vmem:[%s4384 + $0x1d8] sm:$0xff]
        %v4445 = vld [vmem:[%s4384 + $0x1e0] sm:$0xff]
        %v4446 = vld [vmem:[%s4384 + $0x1e8] sm:$0xff]
        %v4447 = vld [vmem:[%s4384 + $0x1f0] sm:$0xff]
        %v4448 = vld [vmem:[%s4384 + $0x1f8] sm:$0xff]
        %s4449 = scalar_lea.vmem %s13, 2
        %v4450 = vld [vmem:[%s4449] sm:$0x1]
        %v4452 = vperm.slane %v4450, 0
        %4454 = vmatpush.xpose.msra.mxu0 0.0
        %4455 = vmatpush.xpose.msra.mxu0 0.0
        %4456 = vmatpush.xpose.msra.mxu0 0.0
        %4457 = vmatpush.xpose.msra.mxu0 0.0
        %4458 = vmatpush.xpose.msra.mxu0 0.0
        %4459 = vmatpush.xpose.msra.mxu0 0.0
        %4460 = vmatpush.xpose.msra.mxu0 0.0
        %4461 = vmatpush.xpose.msra.mxu0 0.0
        %4462 = vmatpush.xpose.msra.mxu0 0.0
        %4463 = vmatpush.xpose.msra.mxu0 0.0
        %4464 = vmatpush.xpose.msra.mxu0 0.0
        %4465 = vmatpush.xpose.msra.mxu0 0.0
        %4466 = vmatpush.xpose.msra.mxu0 %v4433
        %4467 = vmatpush.xpose.msra.mxu0 %v4417
        %4468 = vmatpush.xpose.msra.mxu0 %v4401
        %4469 = vmatpush.xpose.msra.mxu0 %v4385
        %4470 = vmatmul.f32.gmra.mxu0 %v4368
        %v4471 = vpop.f32.mrf.mxu0
        %v4472 = vadd.f32 %v4452, %v4471
        %4473 = vdwg.mxu0
        %4474 = vmatpush.xpose.msra.mxu0 0.0
        %4475 = vmatpush.xpose.msra.mxu0 0.0
        %4476 = vmatpush.xpose.msra.mxu0 0.0
        %4477 = vmatpush.xpose.msra.mxu0 0.0
        %4478 = vmatpush.xpose.msra.mxu0 0.0
        %4479 = vmatpush.xpose.msra.mxu0 0.0
        %4480 = vmatpush.xpose.msra.mxu0 0.0
        %4481 = vmatpush.xpose.msra.mxu0 0.0
        %4482 = vmatpush.xpose.msra.mxu0 0.0
        %4483 = vmatpush.xpose.msra.mxu0 0.0
        %4484 = vmatpush.xpose.msra.mxu0 0.0
        %4485 = vmatpush.xpose.msra.mxu0 0.0
        %4486 = vmatpush.xpose.msra.mxu0 %v4434
        %4487 = vmatpush.xpose.msra.mxu0 %v4418
        %4488 = vmatpush.xpose.msra.mxu0 %v4402
        %4489 = vmatpush.xpose.msra.mxu0 %v4386
        %4490 = vmatmul.f32.gmra.mxu0 %v4369
        %v4491 = vpop.f32.mrf.mxu0
        %v4492 = vadd.f32 %v4472, %v4491
        %4493 = vdwg.mxu0
        %4494 = vmatpush.xpose.msra.mxu0 0.0
        %4495 = vmatpush.xpose.msra.mxu0 0.0
        %4496 = vmatpush.xpose.msra.mxu0 0.0
        %4497 = vmatpush.xpose.msra.mxu0 0.0
        %4498 = vmatpush.xpose.msra.mxu0 0.0
        %4499 = vmatpush.xpose.msra.mxu0 0.0
        %4500 = vmatpush.xpose.msra.mxu0 0.0
        %4501 = vmatpush.xpose.msra.mxu0 0.0
        %4502 = vmatpush.xpose.msra.mxu0 0.0
        %4503 = vmatpush.xpose.msra.mxu0 0.0
        %4504 = vmatpush.xpose.msra.mxu0 0.0
        %4505 = vmatpush.xpose.msra.mxu0 0.0
        %4506 = vmatpush.xpose.msra.mxu0 %v4435
        %4507 = vmatpush.xpose.msra.mxu0 %v4419
        %4508 = vmatpush.xpose.msra.mxu0 %v4403
        %4509 = vmatpush.xpose.msra.mxu0 %v4387
        %4510 = vmatmul.f32.gmra.mxu0 %v4370
        %v4511 = vpop.f32.mrf.mxu0
        %v4512 = vadd.f32 %v4492, %v4511
        %4513 = vdwg.mxu0
        %4514 = vmatpush.xpose.msra.mxu0 0.0
        %4515 = vmatpush.xpose.msra.mxu0 0.0
        %4516 = vmatpush.xpose.msra.mxu0 0.0
        %4517 = vmatpush.xpose.msra.mxu0 0.0
        %4518 = vmatpush.xpose.msra.mxu0 0.0
        %4519 = vmatpush.xpose.msra.mxu0 0.0
        %4520 = vmatpush.xpose.msra.mxu0 0.0
        %4521 = vmatpush.xpose.msra.mxu0 0.0
        %4522 = vmatpush.xpose.msra.mxu0 0.0
        %4523 = vmatpush.xpose.msra.mxu0 0.0
        %4524 = vmatpush.xpose.msra.mxu0 0.0
        %4525 = vmatpush.xpose.msra.mxu0 0.0
        %4526 = vmatpush.xpose.msra.mxu0 %v4436
        %4527 = vmatpush.xpose.msra.mxu0 %v4420
        %4528 = vmatpush.xpose.msra.mxu0 %v4404
        %4529 = vmatpush.xpose.msra.mxu0 %v4388
        %4530 = vmatmul.f32.gmra.mxu0 %v4371
        %v4531 = vpop.f32.mrf.mxu0
        %v4532 = vadd.f32 %v4512, %v4531
        %4533 = vdwg.mxu0
        %4534 = vmatpush.xpose.msra.mxu0 0.0
        %4535 = vmatpush.xpose.msra.mxu0 0.0
        %4536 = vmatpush.xpose.msra.mxu0 0.0
        %4537 = vmatpush.xpose.msra.mxu0 0.0
        %4538 = vmatpush.xpose.msra.mxu0 0.0
        %4539 = vmatpush.xpose.msra.mxu0 0.0
        %4540 = vmatpush.xpose.msra.mxu0 0.0
        %4541 = vmatpush.xpose.msra.mxu0 0.0
        %4542 = vmatpush.xpose.msra.mxu0 0.0
        %4543 = vmatpush.xpose.msra.mxu0 0.0
        %4544 = vmatpush.xpose.msra.mxu0 0.0
        %4545 = vmatpush.xpose.msra.mxu0 0.0
        %4546 = vmatpush.xpose.msra.mxu0 %v4437
        %4547 = vmatpush.xpose.msra.mxu0 %v4421
        %4548 = vmatpush.xpose.msra.mxu0 %v4405
        %4549 = vmatpush.xpose.msra.mxu0 %v4389
        %4550 = vmatmul.f32.gmra.mxu0 %v4372
        %v4551 = vpop.f32.mrf.mxu0
        %v4552 = vadd.f32 %v4532, %v4551
        %4553 = vdwg.mxu0
        %4554 = vmatpush.xpose.msra.mxu0 0.0
        %4555 = vmatpush.xpose.msra.mxu0 0.0
        %4556 = vmatpush.xpose.msra.mxu0 0.0
        %4557 = vmatpush.xpose.msra.mxu0 0.0
        %4558 = vmatpush.xpose.msra.mxu0 0.0
        %4559 = vmatpush.xpose.msra.mxu0 0.0
        %4560 = vmatpush.xpose.msra.mxu0 0.0
        %4561 = vmatpush.xpose.msra.mxu0 0.0
        %4562 = vmatpush.xpose.msra.mxu0 0.0
        %4563 = vmatpush.xpose.msra.mxu0 0.0
        %4564 = vmatpush.xpose.msra.mxu0 0.0
        %4565 = vmatpush.xpose.msra.mxu0 0.0
        %4566 = vmatpush.xpose.msra.mxu0 %v4438
        %4567 = vmatpush.xpose.msra.mxu0 %v4422
        %4568 = vmatpush.xpose.msra.mxu0 %v4406
        %4569 = vmatpush.xpose.msra.mxu0 %v4390
        %4570 = vmatmul.f32.gmra.mxu0 %v4373
        %v4571 = vpop.f32.mrf.mxu0
        %v4572 = vadd.f32 %v4552, %v4571
        %4573 = vdwg.mxu0
        %4574 = vmatpush.xpose.msra.mxu0 0.0
        %4575 = vmatpush.xpose.msra.mxu0 0.0
        %4576 = vmatpush.xpose.msra.mxu0 0.0
        %4577 = vmatpush.xpose.msra.mxu0 0.0
        %4578 = vmatpush.xpose.msra.mxu0 0.0
        %4579 = vmatpush.xpose.msra.mxu0 0.0
        %4580 = vmatpush.xpose.msra.mxu0 0.0
        %4581 = vmatpush.xpose.msra.mxu0 0.0
        %4582 = vmatpush.xpose.msra.mxu0 0.0
        %4583 = vmatpush.xpose.msra.mxu0 0.0
        %4584 = vmatpush.xpose.msra.mxu0 0.0
        %4585 = vmatpush.xpose.msra.mxu0 0.0
        %4586 = vmatpush.xpose.msra.mxu0 %v4439
        %4587 = vmatpush.xpose.msra.mxu0 %v4423
        %4588 = vmatpush.xpose.msra.mxu0 %v4407
        %4589 = vmatpush.xpose.msra.mxu0 %v4391
        %4590 = vmatmul.f32.gmra.mxu0 %v4374
        %v4591 = vpop.f32.mrf.mxu0
        %v4592 = vadd.f32 %v4572, %v4591
        %4593 = vdwg.mxu0
        %4594 = vmatpush.xpose.msra.mxu0 0.0
        %4595 = vmatpush.xpose.msra.mxu0 0.0
        %4596 = vmatpush.xpose.msra.mxu0 0.0
        %4597 = vmatpush.xpose.msra.mxu0 0.0
        %4598 = vmatpush.xpose.msra.mxu0 0.0
        %4599 = vmatpush.xpose.msra.mxu0 0.0
        %4600 = vmatpush.xpose.msra.mxu0 0.0
        %4601 = vmatpush.xpose.msra.mxu0 0.0
        %4602 = vmatpush.xpose.msra.mxu0 0.0
        %4603 = vmatpush.xpose.msra.mxu0 0.0
        %4604 = vmatpush.xpose.msra.mxu0 0.0
        %4605 = vmatpush.xpose.msra.mxu0 0.0
        %4606 = vmatpush.xpose.msra.mxu0 %v4440
        %4607 = vmatpush.xpose.msra.mxu0 %v4424
        %4608 = vmatpush.xpose.msra.mxu0 %v4408
        %4609 = vmatpush.xpose.msra.mxu0 %v4392
        %4610 = vmatmul.f32.gmra.mxu0 %v4375
        %v4611 = vpop.f32.mrf.mxu0
        %v4612 = vadd.f32 %v4592, %v4611
        %4613 = vdwg.mxu0
        %4614 = vmatpush.xpose.msra.mxu0 0.0
        %4615 = vmatpush.xpose.msra.mxu0 0.0
        %4616 = vmatpush.xpose.msra.mxu0 0.0
        %4617 = vmatpush.xpose.msra.mxu0 0.0
        %4618 = vmatpush.xpose.msra.mxu0 0.0
        %4619 = vmatpush.xpose.msra.mxu0 0.0
        %4620 = vmatpush.xpose.msra.mxu0 0.0
        %4621 = vmatpush.xpose.msra.mxu0 0.0
        %4622 = vmatpush.xpose.msra.mxu0 0.0
        %4623 = vmatpush.xpose.msra.mxu0 0.0
        %4624 = vmatpush.xpose.msra.mxu0 0.0
        %4625 = vmatpush.xpose.msra.mxu0 0.0
        %4626 = vmatpush.xpose.msra.mxu0 %v4441
        %4627 = vmatpush.xpose.msra.mxu0 %v4425
        %4628 = vmatpush.xpose.msra.mxu0 %v4409
        %4629 = vmatpush.xpose.msra.mxu0 %v4393
        %4630 = vmatmul.f32.gmra.mxu0 %v4376
        %v4631 = vpop.f32.mrf.mxu0
        %v4632 = vadd.f32 %v4612, %v4631
        %4633 = vdwg.mxu0
        %4634 = vmatpush.xpose.msra.mxu0 0.0
        %4635 = vmatpush.xpose.msra.mxu0 0.0
        %4636 = vmatpush.xpose.msra.mxu0 0.0
        %4637 = vmatpush.xpose.msra.mxu0 0.0
        %4638 = vmatpush.xpose.msra.mxu0 0.0
        %4639 = vmatpush.xpose.msra.mxu0 0.0
        %4640 = vmatpush.xpose.msra.mxu0 0.0
        %4641 = vmatpush.xpose.msra.mxu0 0.0
        %4642 = vmatpush.xpose.msra.mxu0 0.0
        %4643 = vmatpush.xpose.msra.mxu0 0.0
        %4644 = vmatpush.xpose.msra.mxu0 0.0
        %4645 = vmatpush.xpose.msra.mxu0 0.0
        %4646 = vmatpush.xpose.msra.mxu0 %v4442
        %4647 = vmatpush.xpose.msra.mxu0 %v4426
        %4648 = vmatpush.xpose.msra.mxu0 %v4410
        %4649 = vmatpush.xpose.msra.mxu0 %v4394
        %4650 = vmatmul.f32.gmra.mxu0 %v4377
        %v4651 = vpop.f32.mrf.mxu0
        %v4652 = vadd.f32 %v4632, %v4651
        %4653 = vdwg.mxu0
        %4654 = vmatpush.xpose.msra.mxu0 0.0
        %4655 = vmatpush.xpose.msra.mxu0 0.0
        %4656 = vmatpush.xpose.msra.mxu0 0.0
        %4657 = vmatpush.xpose.msra.mxu0 0.0
        %4658 = vmatpush.xpose.msra.mxu0 0.0
        %4659 = vmatpush.xpose.msra.mxu0 0.0
        %4660 = vmatpush.xpose.msra.mxu0 0.0
        %4661 = vmatpush.xpose.msra.mxu0 0.0
        %4662 = vmatpush.xpose.msra.mxu0 0.0
        %4663 = vmatpush.xpose.msra.mxu0 0.0
        %4664 = vmatpush.xpose.msra.mxu0 0.0
        %4665 = vmatpush.xpose.msra.mxu0 0.0
        %4666 = vmatpush.xpose.msra.mxu0 %v4443
        %4667 = vmatpush.xpose.msra.mxu0 %v4427
        %4668 = vmatpush.xpose.msra.mxu0 %v4411
        %4669 = vmatpush.xpose.msra.mxu0 %v4395
        %4670 = vmatmul.f32.gmra.mxu0 %v4378
        %v4671 = vpop.f32.mrf.mxu0
        %v4672 = vadd.f32 %v4652, %v4671
        %4673 = vdwg.mxu0
        %4674 = vmatpush.xpose.msra.mxu0 0.0
        %4675 = vmatpush.xpose.msra.mxu0 0.0
        %4676 = vmatpush.xpose.msra.mxu0 0.0
        %4677 = vmatpush.xpose.msra.mxu0 0.0
        %4678 = vmatpush.xpose.msra.mxu0 0.0
        %4679 = vmatpush.xpose.msra.mxu0 0.0
        %4680 = vmatpush.xpose.msra.mxu0 0.0
        %4681 = vmatpush.xpose.msra.mxu0 0.0
        %4682 = vmatpush.xpose.msra.mxu0 0.0
        %4683 = vmatpush.xpose.msra.mxu0 0.0
        %4684 = vmatpush.xpose.msra.mxu0 0.0
        %4685 = vmatpush.xpose.msra.mxu0 0.0
        %4686 = vmatpush.xpose.msra.mxu0 %v4444
        %4687 = vmatpush.xpose.msra.mxu0 %v4428
        %4688 = vmatpush.xpose.msra.mxu0 %v4412
        %4689 = vmatpush.xpose.msra.mxu0 %v4396
        %4690 = vmatmul.f32.gmra.mxu0 %v4379
        %v4691 = vpop.f32.mrf.mxu0
        %v4692 = vadd.f32 %v4672, %v4691
        %4693 = vdwg.mxu0
        %4694 = vmatpush.xpose.msra.mxu0 0.0
        %4695 = vmatpush.xpose.msra.mxu0 0.0
        %4696 = vmatpush.xpose.msra.mxu0 0.0
        %4697 = vmatpush.xpose.msra.mxu0 0.0
        %4698 = vmatpush.xpose.msra.mxu0 0.0
        %4699 = vmatpush.xpose.msra.mxu0 0.0
        %4700 = vmatpush.xpose.msra.mxu0 0.0
        %4701 = vmatpush.xpose.msra.mxu0 0.0
        %4702 = vmatpush.xpose.msra.mxu0 0.0
        %4703 = vmatpush.xpose.msra.mxu0 0.0
        %4704 = vmatpush.xpose.msra.mxu0 0.0
        %4705 = vmatpush.xpose.msra.mxu0 0.0
        %4706 = vmatpush.xpose.msra.mxu0 %v4445
        %4707 = vmatpush.xpose.msra.mxu0 %v4429
        %4708 = vmatpush.xpose.msra.mxu0 %v4413
        %4709 = vmatpush.xpose.msra.mxu0 %v4397
        %4710 = vmatmul.f32.gmra.mxu0 %v4380
        %v4711 = vpop.f32.mrf.mxu0
        %v4712 = vadd.f32 %v4692, %v4711
        %4713 = vdwg.mxu0
        %4714 = vmatpush.xpose.msra.mxu0 0.0
        %4715 = vmatpush.xpose.msra.mxu0 0.0
        %4716 = vmatpush.xpose.msra.mxu0 0.0
        %4717 = vmatpush.xpose.msra.mxu0 0.0
        %4718 = vmatpush.xpose.msra.mxu0 0.0
        %4719 = vmatpush.xpose.msra.mxu0 0.0
        %4720 = vmatpush.xpose.msra.mxu0 0.0
        %4721 = vmatpush.xpose.msra.mxu0 0.0
        %4722 = vmatpush.xpose.msra.mxu0 0.0
        %4723 = vmatpush.xpose.msra.mxu0 0.0
        %4724 = vmatpush.xpose.msra.mxu0 0.0
        %4725 = vmatpush.xpose.msra.mxu0 0.0
        %4726 = vmatpush.xpose.msra.mxu0 %v4446
        %4727 = vmatpush.xpose.msra.mxu0 %v4430
        %4728 = vmatpush.xpose.msra.mxu0 %v4414
        %4729 = vmatpush.xpose.msra.mxu0 %v4398
        %4730 = vmatmul.f32.gmra.mxu0 %v4381
        %v4731 = vpop.f32.mrf.mxu0
        %v4732 = vadd.f32 %v4712, %v4731
        %4733 = vdwg.mxu0
        %4734 = vmatpush.xpose.msra.mxu0 0.0
        %4735 = vmatpush.xpose.msra.mxu0 0.0
        %4736 = vmatpush.xpose.msra.mxu0 0.0
        %4737 = vmatpush.xpose.msra.mxu0 0.0
        %4738 = vmatpush.xpose.msra.mxu0 0.0
        %4739 = vmatpush.xpose.msra.mxu0 0.0
        %4740 = vmatpush.xpose.msra.mxu0 0.0
        %4741 = vmatpush.xpose.msra.mxu0 0.0
        %4742 = vmatpush.xpose.msra.mxu0 0.0
        %4743 = vmatpush.xpose.msra.mxu0 0.0
        %4744 = vmatpush.xpose.msra.mxu0 0.0
        %4745 = vmatpush.xpose.msra.mxu0 0.0
        %4746 = vmatpush.xpose.msra.mxu0 %v4447
        %4747 = vmatpush.xpose.msra.mxu0 %v4431
        %4748 = vmatpush.xpose.msra.mxu0 %v4415
        %4749 = vmatpush.xpose.msra.mxu0 %v4399
        %4750 = vmatmul.f32.gmra.mxu0 %v4382
        %v4751 = vpop.f32.mrf.mxu0
        %v4752 = vadd.f32 %v4732, %v4751
        %4753 = vdwg.mxu0
        %4754 = vmatpush.xpose.msra.mxu0 0.0
        %4755 = vmatpush.xpose.msra.mxu0 0.0
        %4756 = vmatpush.xpose.msra.mxu0 0.0
        %4757 = vmatpush.xpose.msra.mxu0 0.0
        %4758 = vmatpush.xpose.msra.mxu0 0.0
        %4759 = vmatpush.xpose.msra.mxu0 0.0
        %4760 = vmatpush.xpose.msra.mxu0 0.0
        %4761 = vmatpush.xpose.msra.mxu0 0.0
        %4762 = vmatpush.xpose.msra.mxu0 0.0
        %4763 = vmatpush.xpose.msra.mxu0 0.0
        %4764 = vmatpush.xpose.msra.mxu0 0.0
        %4765 = vmatpush.xpose.msra.mxu0 0.0
        %4766 = vmatpush.xpose.msra.mxu0 %v4448
        %4767 = vmatpush.xpose.msra.mxu0 %v4432
        %4768 = vmatpush.xpose.msra.mxu0 %v4416
        %4769 = vmatpush.xpose.msra.mxu0 %v4400
        %4770 = vmatmul.f32.gmra.mxu0 %v4383
        %v4771 = vpop.f32.mrf.mxu0
        %v4772 = vadd.f32 %v4752, %v4771
        %4773 = vdwg.mxu0
        %v4774 = vadd.f32 %v3942, %v4772
        %s4775 = scalar_lea.vmem %s14, 2
        %v4776 = vld [vmem:[%s4775] sm:$0x1]
        %s4777 = scalar_lea.vmem [#allocation20], 2
        %v4778 = vld [vmem:[%s4777] sm:$0x1]
        %v4779 = vsel %vm758, %v4774, 0.0
        %4780 = vadd.xlane.f32.xlu0 %v4779
        %v4781 = vpop.xlane.xlu0 %4780
        %v4782 = vmul.f32 %v4781, %v1213
        %v4783 = vsub.f32 %v4774, %v4782
        %v4784 = vmul.f32 %v4783, %v4783
        %v4785 = vsel %vm758, %v4784, 0.0
        %4786 = vadd.xlane.f32.xlu0 %v4785
        %v4787 = vpop.xlane.xlu0 %4786
        %v4788 = vmul.f32 %v4787, %v1213
        %v4789 = vadd.f32 %v4788, 1e-05
        %v4790 = vrsqrt.pop %v4789
        %v4791 = vmul.f32 %v4790, %v4789
        %v4792 = vmul.f32 %v4791, %v4790
        %v4793 = vmul.f32 0.5, %v4792
        %v4794 = vsub.f32 1.5, %v4793
        %v4795 = vmul.f32 %v4790, %v4794
        %vm4796 = vweird.f32 %v4789
        %vm4797 = vweird.f32 %v4790
        %vm4798 = vmor %vm4796, %vm4797
        %v4799 = vsel %vm4798, %v4790, %v4795
        %v4800 = vmul.f32 %v4783, %v4799
        %v4802 = vperm.slane %v4776, 0
        %v4804 = vmul.f32 %v4800, %v4802
        %v4806 = vperm.slane %v4778, 0
        %v4808 = vadd.f32 %v4804, %v4806
        %4809 = vst.msk [vmem:[%s716] sm:$0xff] %vm758, %v4808
        %s4810 = sand.u32 %s388, 1
        %s4811 = scalar_lea.sflag [#allocation4], %s4810
        %s4812 = sand.u32 %s388, 1
        %s4813 = smul.addr %s4812, 8
        %s4814 = scalar_lea.vmem [#allocation22], %s4813
        // Predicated region
        $region133: #{tpu_custom_call.1} parent=83 // pred_check
          %p4815 = pneg %p398
        $region134: #{tpu_custom_call.1} parent=83 // pred_check_branch
          %4817 = sbr.rel (%p4815) target = $region136
        $region135: #{tpu_custom_call.1} parent=83 // pred_region
          %4819 = vsyncadd %s4811, 0
          %s4820 = smul.addr %s39, 8
          %s4821 = scalar_lea.hbm %s16, %s4820
          %s4823 = sshll.u32 %s4814, 4
          %s4824 = int_to_ptr.vmem [resolvable:$true] %s4823
          %s4825 = sshll.u32 %s4821, 4
          %s4826 = int_to_ptr.hbm [resolvable:$true] %s4825
          %4828 = dma.vmem_to_hbm [thread:$0]  %s4824, 128, %s4826, %s4811
        $region136: #{tpu_custom_call.1} parent=83 // pred_fallthru
          _
      $region84: #{tpu_custom_call.1} parent=5 // pred_fallthru
        _
      %p4829 = scmp.le.s32.totalorder 2, %s34
      // Predicated region
      $region137: #{tpu_custom_call.1} parent=5 // pred_check
        %p4830 = pneg %p4829
      $region138: #{tpu_custom_call.1} parent=5 // pred_check_branch
        %4832 = sbr.rel (%p4830) target = $region140
      $region139: #{tpu_custom_call.1} parent=5 // pred_region
        %s4833 = ssub.s32 %s34, 2
        // Predicated region
        $region141: #{tpu_custom_call.1} parent=139 // pred_check
          %p4834 = pneg %p404
        $region142: #{tpu_custom_call.1} parent=139 // pred_check_branch
          %4836 = sbr.rel (%p4834) target = $region144
        $region143: #{tpu_custom_call.1} parent=139 // pred_region
          %s4837 = sand.u32 %s389, 1
          %s4838 = scalar_lea.sflag [#allocation4], %s4837
          %s4839 = sand.u32 %s389, 1
          %s4840 = smul.addr %s4839, 8
          %s4841 = scalar_lea.vmem [#allocation22], %s4840
          %4843 = dma.done %s4838, 128
        $region144: #{tpu_custom_call.1} parent=139 // pred_fallthru
          _
      $region140: #{tpu_custom_call.1} parent=5 // pred_fallthru
        _
    $region6: #{tpu_custom_call.1} parent=1 // loop_footer
      %s38 = sadd.s32 1, %s34
    $region7: #{tpu_custom_call.1} parent=1 // loop_footer_branch
      %33 = sbr.rel target = $region3
    $region8: #{tpu_custom_call.1} parent=1 // loop_exit
      _
    %4844 = vsyncpa [#allocation3], 1
    %s4845 = scalar_lea.sflag [#allocation3], 1
    %4846 = vsyncpa %s4845, 1
    %4847 = vsyncpa [#allocation6], 1
    %4848 = vsyncpa [#allocation9], 1
    %4849 = vsyncpa [#allocation12], 1
    %4850 = vsyncpa [#allocation15], 1
    %4851 = vsyncpa [#allocation18], 1
    %4852 = vsyncpa [#allocation21], 1
    %4853 = vsyncpa [#allocation4], 1
    %s4854 = scalar_lea.sflag [#allocation4], 1
    %4855 = vsyncpa %s4854, 1

</llo_original>
